<compile_context>
chip_gen: v6e
topology: v6e:2x2x1
jax: 0.10.0
libtpu: 0.0.40
codegen_flags: <defaults>
</compile_context>

<pallas_src>
import functools

import numpy as np

import jax
import jax.numpy as jnp
from jax.experimental import pallas as pl
from jax.experimental.pallas import tpu as pltpu


def convlstm_cell_kernel(x_ref, w_ref, m_ref, b_ref, c_ref,
                         h_out_ref, c_out_ref, acc_ref, *,
                         hidden, H, W, KH, KW, padding):
    """One batch element per grid step, flattened-NCHW / lane-dense layout.

    x_ref     : (1, C, H*W)        stacked input (input ++ prev_hidden), f32
    w_ref     : (KH*KW, 4h, C)     per-tap conv weights, bf16 (tap-major)
    m_ref     : (KH*KW, 1, H*W)    per-tap 0/1 zero-padding edge masks, f32
    b_ref     : (4h, 1)            conv bias (broadcast along lanes), f32
    c_ref     : (1, hidden, H*W)   previous cell state, f32
    h_out_ref : (1, hidden, H*W)
    c_out_ref : (1, hidden, H*W)
    acc_ref   : (4h, H*W) f32      VMEM scratch gate accumulator
    """
    HW = H * W
    x = x_ref[0]                                            # (C, H*W) f32

    # Gate accumulator starts at the lane-broadcast bias (fresh every step).
    acc_ref[...] = jnp.zeros((4 * hidden, HW), jnp.float32) + b_ref[...]

    # 3x3 conv == 9 accumulating MXU matmuls over lane-rolled, edge-masked
    # views of the same (C, H*W) slab.  roll -> XLU, mask -> VPU, so the MXU
    # critical path is unchanged and no im2col slab is ever materialised.
    for dy in range(KH):
        for dx in range(KW):
            t = dy * KW + dx
            s = (dy - padding) * W + (dx - padding)         # flat source offset
            shift = (-s) % HW
            # rolled[:, i] = x[:, (i + s) % HW]  (jnp.roll semantics)
            shifted = pltpu.roll(x, shift=shift, axis=1) if shift else x
            # Zero out contributions that came from the conv's zero padding
            # (also kills any wrap-around / row-crossing lanes), then feed the
            # native-bf16 MXU with an f32 accumulator.
            tap_x = (shifted * m_ref[t]).astype(jnp.bfloat16)   # (C, H*W)
            acc_ref[...] += jnp.dot(w_ref[t], tap_x,
                                    preferred_element_type=jnp.float32)

    # Gate chunks are sublane windows of the lane-dense scratch; read back one
    # (hidden, H*W) slice at a time to keep vreg pressure bounded (f32 math).
    in_gate       = jax.nn.sigmoid(acc_ref[pl.ds(0 * hidden, hidden), :])
    remember_gate = jax.nn.sigmoid(acc_ref[pl.ds(1 * hidden, hidden), :])
    out_gate      = jax.nn.sigmoid(acc_ref[pl.ds(2 * hidden, hidden), :])
    cell_gate     = jnp.tanh(acc_ref[pl.ds(3 * hidden, hidden), :])

    prev_cell = c_ref[0]                                    # (hidden, H*W) f32
    cell = remember_gate * prev_cell + in_gate * cell_gate
    h_out_ref[0] = out_gate * jnp.tanh(cell)                # unmasked lane-dense
    c_out_ref[0] = cell


def conv_lstm_cell_forward(input_nchw, prev_state_nchw, weight_oihw, bias, *,
                           kernel_size=3, padding=1):
    """Pallas implementation of ConvLSTMCell.forward.

    input_nchw      : (B, input_size, H, W)   float32
    prev_state_nchw : (B, hidden_size, H, W)  float32 (used as BOTH prev_hidden
                                              and prev_cell, like the module)
    weight_oihw     : (4*hidden, input+hidden, kh, kw)   PyTorch Conv2d layout
    bias            : (4*hidden,)
    Returns (hidden, cell), both (B, hidden_size, H, W) NCHW float32.
    """
    B, Cin, H, W = input_nchw.shape
    hidden = prev_state_nchw.shape[1]
    C = Cin + hidden
    KH = KW = kernel_size
    HW = H * W

    assert 2 * padding == kernel_size - 1, "kernel/padding must preserve spatial size"
    assert HW % 128 == 0, "H*W must be a multiple of 128 for lane-dense tiles"
    # TODO(synk): at MSCRED scale (e.g. 64x64 maps, hidden=256) add an HW-tiling
    #             grid axis (>=1024 lanes per tile) to stay inside v7x's 64 MiB
    #             VMEM and to give B==1 a second parallel axis for the 2 TCs.

    # stacked_inputs = cat((input_, prev_hidden), dim=1) -- channel concat,
    # flattened NCHW.  No spatial padding, no im2col: padding is handled by the
    # in-kernel edge masks.
    stacked = jnp.concatenate([input_nchw, prev_state_nchw], axis=1)
    x_slab = stacked.astype(jnp.float32).reshape(B, C, HW)

    # Per-tap weight blocks, tap-major: w_taps[dy*KW+dx, o, c] = weight[o, c, dy, dx].
    w_taps = jnp.transpose(weight_oihw, (2, 3, 0, 1)).reshape(KH * KW, 4 * hidden, C)
    w_taps = w_taps.astype(jnp.bfloat16)                    # native MXU dtype
    b_col = bias.reshape(4 * hidden, 1).astype(jnp.float32)
    c_prev = prev_state_nchw.reshape(B, hidden, HW).astype(jnp.float32)

    # Static 0/1 edge masks (the conv's zero padding), one per tap; built with
    # numpy so they are baked into the executable as constants (~9 KB).
    rows = np.arange(HW, dtype=np.int32) // W
    cols = np.arange(HW, dtype=np.int32) % W
    masks = []
    for dy in range(KH):
        for dx in range(KW):
            rr = rows + dy - padding
            cc = cols + dx - padding
            masks.append((rr >= 0) & (rr < H) & (cc >= 0) & (cc < W))
    tap_masks = jnp.asarray(
        np.stack(masks).astype(np.float32).reshape(KH * KW, 1, HW))

    kern = functools.partial(convlstm_cell_kernel, hidden=hidden, H=H, W=W,
                             KH=KH, KW=KW, padding=padding)

    h_out, c_out = pl.pallas_call(
        kern,
        out_shape=(jax.ShapeDtypeStruct((B, hidden, HW), jnp.float32),
                   jax.ShapeDtypeStruct((B, hidden, HW), jnp.float32)),
        grid=(B,),
        in_specs=[
            pl.BlockSpec((1, C, HW), lambda b: (b, 0, 0)),              # x slab
            pl.BlockSpec((KH * KW, 4 * hidden, C), lambda b: (0, 0, 0)),  # weights (resident)
            pl.BlockSpec((KH * KW, 1, HW), lambda b: (0, 0, 0)),        # edge masks (resident)
            pl.BlockSpec((4 * hidden, 1), lambda b: (0, 0)),            # bias (resident)
            pl.BlockSpec((1, hidden, HW), lambda b: (b, 0, 0)),         # prev cell
        ],
        out_specs=(
            pl.BlockSpec((1, hidden, HW), lambda b: (b, 0, 0)),
            pl.BlockSpec((1, hidden, HW), lambda b: (b, 0, 0)),
        ),
        scratch_shapes=[pltpu.VMEM((4 * hidden, HW), jnp.float32)],
        compiler_params=pltpu.CompilerParams(
            dimension_semantics=("parallel",),
            vmem_limit_bytes=32 * 1024 * 1024),
    )(x_slab, w_taps, tap_masks, b_col, c_prev)

    # Flattened-NCHW -> NCHW is a free reshape.
    return h_out.reshape(B, hidden, H, W), c_out.reshape(B, hidden, H, W)


def reference_forward(input_nchw, prev_state, weight, bias, padding):
    """Pure-JAX f32 reference (mirrors the PyTorch forward)."""
    stacked = jnp.concatenate([input_nchw, prev_state], axis=1)
    gates = jax.lax.conv_general_dilated(
        stacked, weight, window_strides=(1, 1),
        padding=[(padding, padding), (padding, padding)],
        dimension_numbers=("NCHW", "OIHW", "NCHW"))
    gates = gates + bias[None, :, None, None]
    in_g, rem_g, out_g, cel_g = jnp.split(gates, 4, axis=1)
    in_g, rem_g, out_g = (jax.nn.sigmoid(in_g), jax.nn.sigmoid(rem_g),
                          jax.nn.sigmoid(out_g))
    cel_g = jnp.tanh(cel_g)
    cell = rem_g * prev_state + in_g * cel_g
    hidden = out_g * jnp.tanh(cell)
    return hidden, cell


if __name__ == "__main__":
    # Small shapes consistent with how MSCRED uses the module.
    B, input_size, hidden_size, H, W = 2, 4, 32, 16, 16
    kernel_size, padding = 3, 1
    C = input_size + hidden_size

    key = jax.random.PRNGKey(0)
    k_x, k_h, k_w, k_b = jax.random.split(key, 4)

    x = jax.random.normal(k_x, (B, input_size, H, W), jnp.float32)
    prev_state = jax.random.normal(k_h, (B, hidden_size, H, W), jnp.float32)

    # Deterministic Conv2d-style init: U(-1/sqrt(fan_in), 1/sqrt(fan_in)).
    fan_in = C * kernel_size * kernel_size
    bound = 1.0 / jnp.sqrt(jnp.float32(fan_in))
    weight = jax.random.uniform(k_w, (4 * hidden_size, C, kernel_size, kernel_size),
                                jnp.float32, -bound, bound)
    bias = jax.random.uniform(k_b, (4 * hidden_size,), jnp.float32, -bound, bound)

    fwd = jax.jit(functools.partial(conv_lstm_cell_forward,
                                    kernel_size=kernel_size, padding=padding))
    hidden_out, cell_out = fwd(x, prev_state, weight, bias)
    jax.block_until_ready((hidden_out, cell_out))

    h_ref, c_ref = reference_forward(x, prev_state, weight, bias, padding)
    assert hidden_out.shape == (B, hidden_size, H, W)
    assert cell_out.shape == (B, hidden_size, H, W)
    # bf16 MXU operands (f32 accumulate / f32 elementwise) -> ~1e-2 parity.
    assert jnp.allclose(hidden_out, h_ref, atol=2e-2, rtol=2e-2)
    assert jnp.allclose(cell_out, c_ref, atol=2e-2, rtol=2e-2)

    print("KERNEL_OK")
</pallas_src>

<mosaic_0001>
module attributes {stable_mosaic.version = 11 : i64} {
  func.func @convlstm_cell_kernel(%arg0: i32, %arg1: memref<1x36x256xf32, #tpu.memory_space<vmem>>, %arg2: memref<9x128x36xbf16, #tpu.memory_space<vmem>>, %arg3: memref<9x1x256xf32, #tpu.memory_space<vmem>>, %arg4: memref<128x1xf32, #tpu.memory_space<vmem>>, %arg5: memref<1x32x256xf32, #tpu.memory_space<vmem>>, %arg6: memref<1x32x256xf32, #tpu.memory_space<vmem>>, %arg7: memref<1x32x256xf32, #tpu.memory_space<vmem>>, %arg8: memref<128x256xf32, #tpu.memory_space<vmem>>) attributes {dimension_semantics = [#tpu.dimension_semantics<parallel>], iteration_bounds = array<i64: 2>, scalar_prefetch = 0 : i64, scratch_operands = 1 : i64, tpu.core_type = #tpu.core_type<tc>, window_params = [{transform_indices = @transform_0, window_bounds = array<i64: 1, 36, 256>}, {pipeline_mode = #tpu.pipeline_mode<synchronous>, transform_indices = @transform_1, window_bounds = array<i64: 9, 128, 36>}, {pipeline_mode = #tpu.pipeline_mode<synchronous>, transform_indices = @transform_2, window_bounds = array<i64: 9, 1, 256>}, {pipeline_mode = #tpu.pipeline_mode<synchronous>, transform_indices = @transform_3, window_bounds = array<i64: 128, 1>}, {transform_indices = @transform_4, window_bounds = array<i64: 1, 32, 256>}, {transform_indices = @transform_5, window_bounds = array<i64: 1, 32, 256>}, {transform_indices = @transform_6, window_bounds = array<i64: 1, 32, 256>}]} {
    %c0 = arith.constant 0 : index
    %c0_0 = arith.constant 0 : index
    %c0_1 = arith.constant 0 : index
    %0 = vector.load %arg1[%c0, %c0_0, %c0_1] : memref<1x36x256xf32, #tpu.memory_space<vmem>>, vector<1x36x256xf32>
    %1 = vector.shape_cast %0 : vector<1x36x256xf32> to vector<36x256xf32>
    %cst = arith.constant 0.000000e+00 : f32
    %2 = vector.broadcast %cst : f32 to vector<128x256xf32>
    %c0_2 = arith.constant 0 : index
    %c0_3 = arith.constant 0 : index
    %3 = vector.load %arg4[%c0_2, %c0_3] : memref<128x1xf32, #tpu.memory_space<vmem>>, vector<128x1xf32>
    %4 = vector.broadcast %3 : vector<128x1xf32> to vector<128x256xf32>
    %5 = arith.addf %2, %4 : vector<128x256xf32>
    %c0_4 = arith.constant 0 : index
    %c0_5 = arith.constant 0 : index
    %6 = vector.load %arg8[%c0_4, %c0_5] : memref<128x256xf32, #tpu.memory_space<vmem>>, vector<128x256xf32>
    tpu.vector_store %arg8[%c0_4, %c0_5], %5 {strides = array<i32>} : memref<128x256xf32, #tpu.memory_space<vmem>>, vector<128x256xf32>,
    %c17_i32 = arith.constant 17 : i32
    %7 = tpu.dynamic_rotate %1 by %c17_i32 dim 1 : vector<36x256xf32>, i32 -> vector<36x256xf32>
    %c0_6 = arith.constant 0 : index
    %c0_7 = arith.constant 0 : index
    %c0_8 = arith.constant 0 : index
    %8 = vector.load %arg3[%c0_6, %c0_7, %c0_8] : memref<9x1x256xf32, #tpu.memory_space<vmem>>, vector<1x1x256xf32>
    %9 = vector.shape_cast %8 : vector<1x1x256xf32> to vector<1x256xf32>
    %10 = vector.broadcast %9 : vector<1x256xf32> to vector<36x256xf32>
    %11 = arith.mulf %7, %10 : vector<36x256xf32>
    %12 = arith.truncf %11 : vector<36x256xf32> to vector<36x256xbf16>
    %c0_9 = arith.constant 0 : index
    %c0_10 = arith.constant 0 : index
    %13 = vector.load %arg8[%c0_9, %c0_10] : memref<128x256xf32, #tpu.memory_space<vmem>>, vector<128x256xf32>
    %c0_11 = arith.constant 0 : index
    %c0_12 = arith.constant 0 : index
    %c0_13 = arith.constant 0 : index
    %14 = vector.load %arg2[%c0_11, %c0_12, %c0_13] : memref<9x128x36xbf16, #tpu.memory_space<vmem>>, vector<1x128x36xbf16>
    %15 = vector.shape_cast %14 : vector<1x128x36xbf16> to vector<128x36xbf16>
    %cst_14 = arith.constant dense<0.000000e+00> : vector<128x256xf32>
    %16 = tpu.matmul %15, %12, %cst_14 {dimension_numbers = #tpu.dot_dimension_numbers<[1], [0], [0], [1], [0, 0, 1, 1], [], []>} : vector<128x36xbf16>, vector<36x256xbf16>, vector<128x256xf32> -> vector<128x256xf32>
    %17 = arith.addf %13, %16 : vector<128x256xf32>
    %c0_15 = arith.constant 0 : index
    %c0_16 = arith.constant 0 : index
    %18 = vector.load %arg8[%c0_15, %c0_16] : memref<128x256xf32, #tpu.memory_space<vmem>>, vector<128x256xf32>
    tpu.vector_store %arg8[%c0_15, %c0_16], %17 {strides = array<i32>} : memref<128x256xf32, #tpu.memory_space<vmem>>, vector<128x256xf32>,
    %c16_i32 = arith.constant 16 : i32
    %19 = tpu.dynamic_rotate %1 by %c16_i32 dim 1 : vector<36x256xf32>, i32 -> vector<36x256xf32>
    %c1 = arith.constant 1 : index
    %c0_17 = arith.constant 0 : index
    %c0_18 = arith.constant 0 : index
    %20 = vector.load %arg3[%c1, %c0_17, %c0_18] : memref<9x1x256xf32, #tpu.memory_space<vmem>>, vector<1x1x256xf32>
    %21 = vector.shape_cast %20 : vector<1x1x256xf32> to vector<1x256xf32>
    %22 = vector.broadcast %21 : vector<1x256xf32> to vector<36x256xf32>
    %23 = arith.mulf %19, %22 : vector<36x256xf32>
    %24 = arith.truncf %23 : vector<36x256xf32> to vector<36x256xbf16>
    %c0_19 = arith.constant 0 : index
    %c0_20 = arith.constant 0 : index
    %25 = vector.load %arg8[%c0_19, %c0_20] : memref<128x256xf32, #tpu.memory_space<vmem>>, vector<128x256xf32>
    %c1_21 = arith.constant 1 : index
    %c0_22 = arith.constant 0 : index
    %c0_23 = arith.constant 0 : index
    %26 = vector.load %arg2[%c1_21, %c0_22, %c0_23] : memref<9x128x36xbf16, #tpu.memory_space<vmem>>, vector<1x128x36xbf16>
    %27 = vector.shape_cast %26 : vector<1x128x36xbf16> to vector<128x36xbf16>
    %cst_24 = arith.constant dense<0.000000e+00> : vector<128x256xf32>
    %28 = tpu.matmul %27, %24, %cst_24 {dimension_numbers = #tpu.dot_dimension_numbers<[1], [0], [0], [1], [0, 0, 1, 1], [], []>} : vector<128x36xbf16>, vector<36x256xbf16>, vector<128x256xf32> -> vector<128x256xf32>
    %29 = arith.addf %25, %28 : vector<128x256xf32>
    %c0_25 = arith.constant 0 : index
    %c0_26 = arith.constant 0 : index
    %30 = vector.load %arg8[%c0_25, %c0_26] : memref<128x256xf32, #tpu.memory_space<vmem>>, vector<128x256xf32>
    tpu.vector_store %arg8[%c0_25, %c0_26], %29 {strides = array<i32>} : memref<128x256xf32, #tpu.memory_space<vmem>>, vector<128x256xf32>,
    %c15_i32 = arith.constant 15 : i32
    %31 = tpu.dynamic_rotate %1 by %c15_i32 dim 1 : vector<36x256xf32>, i32 -> vector<36x256xf32>
    %c2 = arith.constant 2 : index
    %c0_27 = arith.constant 0 : index
    %c0_28 = arith.constant 0 : index
    %32 = vector.load %arg3[%c2, %c0_27, %c0_28] : memref<9x1x256xf32, #tpu.memory_space<vmem>>, vector<1x1x256xf32>
    %33 = vector.shape_cast %32 : vector<1x1x256xf32> to vector<1x256xf32>
    %34 = vector.broadcast %33 : vector<1x256xf32> to vector<36x256xf32>
    %35 = arith.mulf %31, %34 : vector<36x256xf32>
    %36 = arith.truncf %35 : vector<36x256xf32> to vector<36x256xbf16>
    %c0_29 = arith.constant 0 : index
    %c0_30 = arith.constant 0 : index
    %37 = vector.load %arg8[%c0_29, %c0_30] : memref<128x256xf32, #tpu.memory_space<vmem>>, vector<128x256xf32>
    %c2_31 = arith.constant 2 : index
    %c0_32 = arith.constant 0 : index
    %c0_33 = arith.constant 0 : index
    %38 = vector.load %arg2[%c2_31, %c0_32, %c0_33] : memref<9x128x36xbf16, #tpu.memory_space<vmem>>, vector<1x128x36xbf16>
    %39 = vector.shape_cast %38 : vector<1x128x36xbf16> to vector<128x36xbf16>
    %cst_34 = arith.constant dense<0.000000e+00> : vector<128x256xf32>
    %40 = tpu.matmul %39, %36, %cst_34 {dimension_numbers = #tpu.dot_dimension_numbers<[1], [0], [0], [1], [0, 0, 1, 1], [], []>} : vector<128x36xbf16>, vector<36x256xbf16>, vector<128x256xf32> -> vector<128x256xf32>
    %41 = arith.addf %37, %40 : vector<128x256xf32>
    %c0_35 = arith.constant 0 : index
    %c0_36 = arith.constant 0 : index
    %42 = vector.load %arg8[%c0_35, %c0_36] : memref<128x256xf32, #tpu.memory_space<vmem>>, vector<128x256xf32>
    tpu.vector_store %arg8[%c0_35, %c0_36], %41 {strides = array<i32>} : memref<128x256xf32, #tpu.memory_space<vmem>>, vector<128x256xf32>,
    %c1_i32 = arith.constant 1 : i32
    %43 = tpu.dynamic_rotate %1 by %c1_i32 dim 1 : vector<36x256xf32>, i32 -> vector<36x256xf32>
    %c3 = arith.constant 3 : index
    %c0_37 = arith.constant 0 : index
    %c0_38 = arith.constant 0 : index
    %44 = vector.load %arg3[%c3, %c0_37, %c0_38] : memref<9x1x256xf32, #tpu.memory_space<vmem>>, vector<1x1x256xf32>
    %45 = vector.shape_cast %44 : vector<1x1x256xf32> to vector<1x256xf32>
    %46 = vector.broadcast %45 : vector<1x256xf32> to vector<36x256xf32>
    %47 = arith.mulf %43, %46 : vector<36x256xf32>
    %48 = arith.truncf %47 : vector<36x256xf32> to vector<36x256xbf16>
    %c0_39 = arith.constant 0 : index
    %c0_40 = arith.constant 0 : index
    %49 = vector.load %arg8[%c0_39, %c0_40] : memref<128x256xf32, #tpu.memory_space<vmem>>, vector<128x256xf32>
    %c3_41 = arith.constant 3 : index
    %c0_42 = arith.constant 0 : index
    %c0_43 = arith.constant 0 : index
    %50 = vector.load %arg2[%c3_41, %c0_42, %c0_43] : memref<9x128x36xbf16, #tpu.memory_space<vmem>>, vector<1x128x36xbf16>
    %51 = vector.shape_cast %50 : vector<1x128x36xbf16> to vector<128x36xbf16>
    %cst_44 = arith.constant dense<0.000000e+00> : vector<128x256xf32>
    %52 = tpu.matmul %51, %48, %cst_44 {dimension_numbers = #tpu.dot_dimension_numbers<[1], [0], [0], [1], [0, 0, 1, 1], [], []>} : vector<128x36xbf16>, vector<36x256xbf16>, vector<128x256xf32> -> vector<128x256xf32>
    %53 = arith.addf %49, %52 : vector<128x256xf32>
    %c0_45 = arith.constant 0 : index
    %c0_46 = arith.constant 0 : index
    %54 = vector.load %arg8[%c0_45, %c0_46] : memref<128x256xf32, #tpu.memory_space<vmem>>, vector<128x256xf32>
    tpu.vector_store %arg8[%c0_45, %c0_46], %53 {strides = array<i32>} : memref<128x256xf32, #tpu.memory_space<vmem>>, vector<128x256xf32>,
    %c4 = arith.constant 4 : index
    %c0_47 = arith.constant 0 : index
    %c0_48 = arith.constant 0 : index
    %55 = vector.load %arg3[%c4, %c0_47, %c0_48] : memref<9x1x256xf32, #tpu.memory_space<vmem>>, vector<1x1x256xf32>
    %56 = vector.shape_cast %55 : vector<1x1x256xf32> to vector<1x256xf32>
    %57 = vector.broadcast %56 : vector<1x256xf32> to vector<36x256xf32>
    %58 = arith.mulf %1, %57 : vector<36x256xf32>
    %59 = arith.truncf %58 : vector<36x256xf32> to vector<36x256xbf16>
    %c0_49 = arith.constant 0 : index
    %c0_50 = arith.constant 0 : index
    %60 = vector.load %arg8[%c0_49, %c0_50] : memref<128x256xf32, #tpu.memory_space<vmem>>, vector<128x256xf32>
    %c4_51 = arith.constant 4 : index
    %c0_52 = arith.constant 0 : index
    %c0_53 = arith.constant 0 : index
    %61 = vector.load %arg2[%c4_51, %c0_52, %c0_53] : memref<9x128x36xbf16, #tpu.memory_space<vmem>>, vector<1x128x36xbf16>
    %62 = vector.shape_cast %61 : vector<1x128x36xbf16> to vector<128x36xbf16>
    %cst_54 = arith.constant dense<0.000000e+00> : vector<128x256xf32>
    %63 = tpu.matmul %62, %59, %cst_54 {dimension_numbers = #tpu.dot_dimension_numbers<[1], [0], [0], [1], [0, 0, 1, 1], [], []>} : vector<128x36xbf16>, vector<36x256xbf16>, vector<128x256xf32> -> vector<128x256xf32>
    %64 = arith.addf %60, %63 : vector<128x256xf32>
    %c0_55 = arith.constant 0 : index
    %c0_56 = arith.constant 0 : index
    %65 = vector.load %arg8[%c0_55, %c0_56] : memref<128x256xf32, #tpu.memory_space<vmem>>, vector<128x256xf32>
    tpu.vector_store %arg8[%c0_55, %c0_56], %64 {strides = array<i32>} : memref<128x256xf32, #tpu.memory_space<vmem>>, vector<128x256xf32>,
    %c255_i32 = arith.constant 255 : i32
    %66 = tpu.dynamic_rotate %1 by %c255_i32 dim 1 : vector<36x256xf32>, i32 -> vector<36x256xf32>
    %c5 = arith.constant 5 : index
    %c0_57 = arith.constant 0 : index
    %c0_58 = arith.constant 0 : index
    %67 = vector.load %arg3[%c5, %c0_57, %c0_58] : memref<9x1x256xf32, #tpu.memory_space<vmem>>, vector<1x1x256xf32>
    %68 = vector.shape_cast %67 : vector<1x1x256xf32> to vector<1x256xf32>
    %69 = vector.broadcast %68 : vector<1x256xf32> to vector<36x256xf32>
    %70 = arith.mulf %66, %69 : vector<36x256xf32>
    %71 = arith.truncf %70 : vector<36x256xf32> to vector<36x256xbf16>
    %c0_59 = arith.constant 0 : index
    %c0_60 = arith.constant 0 : index
    %72 = vector.load %arg8[%c0_59, %c0_60] : memref<128x256xf32, #tpu.memory_space<vmem>>, vector<128x256xf32>
    %c5_61 = arith.constant 5 : index
    %c0_62 = arith.constant 0 : index
    %c0_63 = arith.constant 0 : index
    %73 = vector.load %arg2[%c5_61, %c0_62, %c0_63] : memref<9x128x36xbf16, #tpu.memory_space<vmem>>, vector<1x128x36xbf16>
    %74 = vector.shape_cast %73 : vector<1x128x36xbf16> to vector<128x36xbf16>
    %cst_64 = arith.constant dense<0.000000e+00> : vector<128x256xf32>
    %75 = tpu.matmul %74, %71, %cst_64 {dimension_numbers = #tpu.dot_dimension_numbers<[1], [0], [0], [1], [0, 0, 1, 1], [], []>} : vector<128x36xbf16>, vector<36x256xbf16>, vector<128x256xf32> -> vector<128x256xf32>
    %76 = arith.addf %72, %75 : vector<128x256xf32>
    %c0_65 = arith.constant 0 : index
    %c0_66 = arith.constant 0 : index
    %77 = vector.load %arg8[%c0_65, %c0_66] : memref<128x256xf32, #tpu.memory_space<vmem>>, vector<128x256xf32>
    tpu.vector_store %arg8[%c0_65, %c0_66], %76 {strides = array<i32>} : memref<128x256xf32, #tpu.memory_space<vmem>>, vector<128x256xf32>,
    %c241_i32 = arith.constant 241 : i32
    %78 = tpu.dynamic_rotate %1 by %c241_i32 dim 1 : vector<36x256xf32>, i32 -> vector<36x256xf32>
    %c6 = arith.constant 6 : index
    %c0_67 = arith.constant 0 : index
    %c0_68 = arith.constant 0 : index
    %79 = vector.load %arg3[%c6, %c0_67, %c0_68] : memref<9x1x256xf32, #tpu.memory_space<vmem>>, vector<1x1x256xf32>
    %80 = vector.shape_cast %79 : vector<1x1x256xf32> to vector<1x256xf32>
    %81 = vector.broadcast %80 : vector<1x256xf32> to vector<36x256xf32>
    %82 = arith.mulf %78, %81 : vector<36x256xf32>
    %83 = arith.truncf %82 : vector<36x256xf32> to vector<36x256xbf16>
    %c0_69 = arith.constant 0 : index
    %c0_70 = arith.constant 0 : index
    %84 = vector.load %arg8[%c0_69, %c0_70] : memref<128x256xf32, #tpu.memory_space<vmem>>, vector<128x256xf32>
    %c6_71 = arith.constant 6 : index
    %c0_72 = arith.constant 0 : index
    %c0_73 = arith.constant 0 : index
    %85 = vector.load %arg2[%c6_71, %c0_72, %c0_73] : memref<9x128x36xbf16, #tpu.memory_space<vmem>>, vector<1x128x36xbf16>
    %86 = vector.shape_cast %85 : vector<1x128x36xbf16> to vector<128x36xbf16>
    %cst_74 = arith.constant dense<0.000000e+00> : vector<128x256xf32>
    %87 = tpu.matmul %86, %83, %cst_74 {dimension_numbers = #tpu.dot_dimension_numbers<[1], [0], [0], [1], [0, 0, 1, 1], [], []>} : vector<128x36xbf16>, vector<36x256xbf16>, vector<128x256xf32> -> vector<128x256xf32>
    %88 = arith.addf %84, %87 : vector<128x256xf32>
    %c0_75 = arith.constant 0 : index
    %c0_76 = arith.constant 0 : index
    %89 = vector.load %arg8[%c0_75, %c0_76] : memref<128x256xf32, #tpu.memory_space<vmem>>, vector<128x256xf32>
    tpu.vector_store %arg8[%c0_75, %c0_76], %88 {strides = array<i32>} : memref<128x256xf32, #tpu.memory_space<vmem>>, vector<128x256xf32>,
    %c240_i32 = arith.constant 240 : i32
    %90 = tpu.dynamic_rotate %1 by %c240_i32 dim 1 : vector<36x256xf32>, i32 -> vector<36x256xf32>
    %c7 = arith.constant 7 : index
    %c0_77 = arith.constant 0 : index
    %c0_78 = arith.constant 0 : index
    %91 = vector.load %arg3[%c7, %c0_77, %c0_78] : memref<9x1x256xf32, #tpu.memory_space<vmem>>, vector<1x1x256xf32>
    %92 = vector.shape_cast %91 : vector<1x1x256xf32> to vector<1x256xf32>
    %93 = vector.broadcast %92 : vector<1x256xf32> to vector<36x256xf32>
    %94 = arith.mulf %90, %93 : vector<36x256xf32>
    %95 = arith.truncf %94 : vector<36x256xf32> to vector<36x256xbf16>
    %c0_79 = arith.constant 0 : index
    %c0_80 = arith.constant 0 : index
    %96 = vector.load %arg8[%c0_79, %c0_80] : memref<128x256xf32, #tpu.memory_space<vmem>>, vector<128x256xf32>
    %c7_81 = arith.constant 7 : index
    %c0_82 = arith.constant 0 : index
    %c0_83 = arith.constant 0 : index
    %97 = vector.load %arg2[%c7_81, %c0_82, %c0_83] : memref<9x128x36xbf16, #tpu.memory_space<vmem>>, vector<1x128x36xbf16>
    %98 = vector.shape_cast %97 : vector<1x128x36xbf16> to vector<128x36xbf16>
    %cst_84 = arith.constant dense<0.000000e+00> : vector<128x256xf32>
    %99 = tpu.matmul %98, %95, %cst_84 {dimension_numbers = #tpu.dot_dimension_numbers<[1], [0], [0], [1], [0, 0, 1, 1], [], []>} : vector<128x36xbf16>, vector<36x256xbf16>, vector<128x256xf32> -> vector<128x256xf32>
    %100 = arith.addf %96, %99 : vector<128x256xf32>
    %c0_85 = arith.constant 0 : index
    %c0_86 = arith.constant 0 : index
    %101 = vector.load %arg8[%c0_85, %c0_86] : memref<128x256xf32, #tpu.memory_space<vmem>>, vector<128x256xf32>
    tpu.vector_store %arg8[%c0_85, %c0_86], %100 {strides = array<i32>} : memref<128x256xf32, #tpu.memory_space<vmem>>, vector<128x256xf32>,
    %c239_i32 = arith.constant 239 : i32
    %102 = tpu.dynamic_rotate %1 by %c239_i32 dim 1 : vector<36x256xf32>, i32 -> vector<36x256xf32>
    %c8 = arith.constant 8 : index
    %c0_87 = arith.constant 0 : index
    %c0_88 = arith.constant 0 : index
    %103 = vector.load %arg3[%c8, %c0_87, %c0_88] : memref<9x1x256xf32, #tpu.memory_space<vmem>>, vector<1x1x256xf32>
    %104 = vector.shape_cast %103 : vector<1x1x256xf32> to vector<1x256xf32>
    %105 = vector.broadcast %104 : vector<1x256xf32> to vector<36x256xf32>
    %106 = arith.mulf %102, %105 : vector<36x256xf32>
    %107 = arith.truncf %106 : vector<36x256xf32> to vector<36x256xbf16>
    %c0_89 = arith.constant 0 : index
    %c0_90 = arith.constant 0 : index
    %108 = vector.load %arg8[%c0_89, %c0_90] : memref<128x256xf32, #tpu.memory_space<vmem>>, vector<128x256xf32>
    %c8_91 = arith.constant 8 : index
    %c0_92 = arith.constant 0 : index
    %c0_93 = arith.constant 0 : index
    %109 = vector.load %arg2[%c8_91, %c0_92, %c0_93] : memref<9x128x36xbf16, #tpu.memory_space<vmem>>, vector<1x128x36xbf16>
    %110 = vector.shape_cast %109 : vector<1x128x36xbf16> to vector<128x36xbf16>
    %cst_94 = arith.constant dense<0.000000e+00> : vector<128x256xf32>
    %111 = tpu.matmul %110, %107, %cst_94 {dimension_numbers = #tpu.dot_dimension_numbers<[1], [0], [0], [1], [0, 0, 1, 1], [], []>} : vector<128x36xbf16>, vector<36x256xbf16>, vector<128x256xf32> -> vector<128x256xf32>
    %112 = arith.addf %108, %111 : vector<128x256xf32>
    %c0_95 = arith.constant 0 : index
    %c0_96 = arith.constant 0 : index
    %113 = vector.load %arg8[%c0_95, %c0_96] : memref<128x256xf32, #tpu.memory_space<vmem>>, vector<128x256xf32>
    tpu.vector_store %arg8[%c0_95, %c0_96], %112 {strides = array<i32>} : memref<128x256xf32, #tpu.memory_space<vmem>>, vector<128x256xf32>,
    %c0_97 = arith.constant 0 : index
    %c0_98 = arith.constant 0 : index
    %114 = vector.load %arg8[%c0_97, %c0_98] : memref<128x256xf32, #tpu.memory_space<vmem>>, vector<32x256xf32>
    %115 = arith.negf %114 : vector<32x256xf32>
    %116 = math.exp %115 : vector<32x256xf32>
    %cst_99 = arith.constant 1.000000e+00 : f32
    %117 = vector.broadcast %cst_99 : f32 to vector<32x256xf32>
    %118 = arith.addf %117, %116 : vector<32x256xf32>
    %119 = arith.divf %117, %118 : vector<32x256xf32>
    %c32 = arith.constant 32 : index
    %c0_100 = arith.constant 0 : index
    %120 = vector.load %arg8[%c32, %c0_100] : memref<128x256xf32, #tpu.memory_space<vmem>>, vector<32x256xf32>
    %121 = arith.negf %120 : vector<32x256xf32>
    %122 = math.exp %121 : vector<32x256xf32>
    %cst_101 = arith.constant 1.000000e+00 : f32
    %123 = vector.broadcast %cst_101 : f32 to vector<32x256xf32>
    %124 = arith.addf %123, %122 : vector<32x256xf32>
    %125 = arith.divf %123, %124 : vector<32x256xf32>
    %c64 = arith.constant 64 : index
    %c0_102 = arith.constant 0 : index
    %126 = vector.load %arg8[%c64, %c0_102] : memref<128x256xf32, #tpu.memory_space<vmem>>, vector<32x256xf32>
    %127 = arith.negf %126 : vector<32x256xf32>
    %128 = math.exp %127 : vector<32x256xf32>
    %cst_103 = arith.constant 1.000000e+00 : f32
    %129 = vector.broadcast %cst_103 : f32 to vector<32x256xf32>
    %130 = arith.addf %129, %128 : vector<32x256xf32>
    %131 = arith.divf %129, %130 : vector<32x256xf32>
    %c96 = arith.constant 96 : index
    %c0_104 = arith.constant 0 : index
    %132 = vector.load %arg8[%c96, %c0_104] : memref<128x256xf32, #tpu.memory_space<vmem>>, vector<32x256xf32>
    %133 = math.tanh %132 : vector<32x256xf32>
    %c0_105 = arith.constant 0 : index
    %c0_106 = arith.constant 0 : index
    %c0_107 = arith.constant 0 : index
    %134 = vector.load %arg5[%c0_105, %c0_106, %c0_107] : memref<1x32x256xf32, #tpu.memory_space<vmem>>, vector<1x32x256xf32>
    %135 = vector.shape_cast %134 : vector<1x32x256xf32> to vector<32x256xf32>
    %136 = arith.mulf %125, %135 : vector<32x256xf32>
    %137 = arith.mulf %119, %133 : vector<32x256xf32>
    %138 = arith.addf %136, %137 : vector<32x256xf32>
    %139 = math.tanh %138 : vector<32x256xf32>
    %140 = arith.mulf %131, %139 : vector<32x256xf32>
    %c0_108 = arith.constant 0 : index
    %c0_109 = arith.constant 0 : index
    %c0_110 = arith.constant 0 : index
    %141 = vector.load %arg6[%c0_108, %c0_109, %c0_110] : memref<1x32x256xf32, #tpu.memory_space<vmem>>, vector<1x32x256xf32>
    %142 = vector.shape_cast %141 : vector<1x32x256xf32> to vector<32x256xf32>
    %143 = vector.shape_cast %140 : vector<32x256xf32> to vector<1x32x256xf32>
    tpu.vector_store %arg6[%c0_108, %c0_109, %c0_110], %143 {strides = array<i32>} : memref<1x32x256xf32, #tpu.memory_space<vmem>>, vector<1x32x256xf32>,
    %c0_111 = arith.constant 0 : index
    %c0_112 = arith.constant 0 : index
    %c0_113 = arith.constant 0 : index
    %144 = vector.load %arg7[%c0_111, %c0_112, %c0_113] : memref<1x32x256xf32, #tpu.memory_space<vmem>>, vector<1x32x256xf32>
    %145 = vector.shape_cast %144 : vector<1x32x256xf32> to vector<32x256xf32>
    %146 = vector.shape_cast %138 : vector<32x256xf32> to vector<1x32x256xf32>
    tpu.vector_store %arg7[%c0_111, %c0_112, %c0_113], %146 {strides = array<i32>} : memref<1x32x256xf32, #tpu.memory_space<vmem>>, vector<1x32x256xf32>,
    return
  }
  func.func @transform_0(%arg0: i32) -> (i32, i32, i32) {
    %c0_i32 = arith.constant 0 : i32
    %c0_i32_0 = arith.constant 0 : i32
    %c0_i32_1 = arith.constant 0 : i32
    return %arg0, %c0_i32, %c0_i32_0 : i32, i32, i32
  }
  func.func @transform_1(%arg0: i32) -> (i32, i32, i32) {
    %c0_i32 = arith.constant 0 : i32
    %c0_i32_0 = arith.constant 0 : i32
    %c0_i32_1 = arith.constant 0 : i32
    %c0_i32_2 = arith.constant 0 : i32
    return %c0_i32, %c0_i32_0, %c0_i32_1 : i32, i32, i32
  }
  func.func @transform_2(%arg0: i32) -> (i32, i32, i32) {
    %c0_i32 = arith.constant 0 : i32
    %c0_i32_0 = arith.constant 0 : i32
    %c0_i32_1 = arith.constant 0 : i32
    %c0_i32_2 = arith.constant 0 : i32
    return %c0_i32, %c0_i32_0, %c0_i32_1 : i32, i32, i32
  }
  func.func @transform_3(%arg0: i32) -> (i32, i32) {
    %c0_i32 = arith.constant 0 : i32
    %c0_i32_0 = arith.constant 0 : i32
    %c0_i32_1 = arith.constant 0 : i32
    return %c0_i32, %c0_i32_0 : i32, i32
  }
  func.func @transform_4(%arg0: i32) -> (i32, i32, i32) {
    %c0_i32 = arith.constant 0 : i32
    %c0_i32_0 = arith.constant 0 : i32
    %c0_i32_1 = arith.constant 0 : i32
    return %arg0, %c0_i32, %c0_i32_0 : i32, i32, i32
  }
  func.func @transform_5(%arg0: i32) -> (i32, i32, i32) {
    %c0_i32 = arith.constant 0 : i32
    %c0_i32_0 = arith.constant 0 : i32
    %c0_i32_1 = arith.constant 0 : i32
    return %arg0, %c0_i32, %c0_i32_0 : i32, i32, i32
  }
  func.func @transform_6(%arg0: i32) -> (i32, i32, i32) {
    %c0_i32 = arith.constant 0 : i32
    %c0_i32_0 = arith.constant 0 : i32
    %c0_i32_1 = arith.constant 0 : i32
    return %arg0, %c0_i32, %c0_i32_0 : i32, i32, i32
  }
}

</mosaic_0001>

<llo_original>
// kernel: conv_lstm_cell_forward.1
$region0: #{conv_lstm_cell_forward.1}
  #allocation0 [shape = 'u32[]', space=smem, size = 0x4, offset = 0x4, fixed_abs, tag = 'smem constant byte address 0x4 - core index']
  #allocation1 [shape = 'u32[144,128]{1,0:T(1,128)}', space=vmem, size = 0x12000, scoped, tag = 'internal scratch']
  #allocation2 [shape = 'f32[128,256]{1,0:T(8,128)}', space=vmem, size = 0x20000, scoped, tag = 'scratch operand']
  %s0 = inlined_call_operand.vmem [shape: f32[2,36,256], index: 0, kind: input, shape index: {}]
  %s1 = inlined_call_operand.vmem [shape: bf16[9,128,36], index: 1, kind: input, shape index: {}]
  %s2 = inlined_call_operand.vmem [shape: f32[9,1,256], index: 2, kind: input, shape index: {}]
  %s3 = inlined_call_operand.vmem [shape: f32[128,1], index: 3, kind: input, shape index: {}]
  %s4 = inlined_call_operand.vmem [shape: f32[2,32,256], index: 4, kind: input, shape index: {}]
  %s5 = inlined_call_operand.vmem [shape: f32[2,32,256], index: 5, kind: output, shape index: {0}]
  %s6 = inlined_call_operand.vmem [shape: f32[2,32,256], index: 6, kind: output, shape index: {1}]
  %7 = xla_tuple %s5, %s6
  %s8 = sld [smem:[#allocation0]]
  $region61: #{conv_lstm_cell_forward.1} parent=0
    _
  %s10 = ssub.s32 1, %s8
  %s11 = scalar_select 0, %s10, %s8
  loop: start=0, step=1, limit=4
  $region2: #{conv_lstm_cell_forward.1} parent=0 // loop_pre_header
    _
  $region3: #{conv_lstm_cell_forward.1} parent=0 // loop_header
    %s13 = sphi 0, %s17
    %p14 = scmp.ge.s32.totalorder %s13, 4
    %s23 = sphi 0, %s25
    %s26 = sphi 0, %s23
    %s27 = sphi 0, %s26
    %s43 = sphi 0, %s27
    %s47 = sphi 0, %s47
    %s49 = sphi 0, %s47
    %s50 = sphi 0, %s49
    %s64 = sphi 0, %s50
    %s68 = sphi 0, %s68
    %s70 = sphi 0, %s68
    %s71 = sphi 0, %s70
    %s85 = sphi 0, %s71
    %s89 = sphi 0, %s89
    %s91 = sphi 0, %s89
    %s92 = sphi 0, %s91
    %s106 = sphi 0, %s92
    %s112 = sphi 0, %s114
    %s115 = sphi 0, %s112
    %s116 = sphi 0, %s115
    %s132 = sphi 0, %s116
    %s138 = sphi 0, %s140
    %s141 = sphi 0, %s138
    %s142 = sphi 0, %s141
    %s158 = sphi 0, %s142
    %s164 = sphi 0, %s166
    %s167 = sphi 0, %s164
    %s168 = sphi 0, %s167
    %s184 = sphi 0, %s168
  $region4: #{conv_lstm_cell_forward.1} parent=0 // loop_header_branch
    %16 = sbr.rel (%p14) target = $region8
  $region5: #{conv_lstm_cell_forward.1} parent=0 // loop_body
    %s18 = ssub.s32 %s13, 1
    %s19 = ssub.s32 %s13, 2
    %s20 = sadd.s32 %s13, 1
    %s21 = ssub.s32 %s13, %s20
    %p22 = scmp.eq.s32.totalorder %s21, 0
    %s24 = sadd.s32 %s23, 1
    %s25 = scalar_select %p22, %s23, %s24
    %p28 = pneg %p22
    %p29 = scmp.eq.s32.totalorder %s13, 1
    %p30 = por %p28, %p29
    %p31 = scmp.ne.s32.totalorder %s23, %s26
    %p32 = scmp.eq.s32.totalorder %s13, 0
    %p33 = por %p31, %p32
    %p34 = scmp.ne.s32.totalorder %s23, %s26
    %p35 = scmp.eq.s32.totalorder %s18, 1
    %p36 = por %p34, %p35
    %p37 = scmp.ne.s32.totalorder %s26, %s27
    %p38 = scmp.eq.s32.totalorder %s18, 0
    %p39 = por %p37, %p38
    %p40 = scmp.ne.s32.totalorder %s26, %s27
    %p41 = scmp.eq.s32.totalorder %s19, 1
    %p42 = por %p40, %p41
    %p44 = scmp.ne.s32.totalorder %s27, %s43
    %p45 = scmp.eq.s32.totalorder %s19, 0
    %p46 = por %p44, %p45
    %s48 = sadd.s32 %s47, 1
    %p51 = scmp.eq.s32.totalorder %s13, 1
    %p52 = scmp.ne.s32.totalorder %s47, %s49
    %p53 = scmp.eq.s32.totalorder %s13, 0
    %p54 = por %p52, %p53
    %p55 = scmp.ne.s32.totalorder %s47, %s49
    %p56 = scmp.eq.s32.totalorder %s18, 1
    %p57 = por %p55, %p56
    %p58 = scmp.ne.s32.totalorder %s49, %s50
    %p59 = scmp.eq.s32.totalorder %s18, 0
    %p60 = por %p58, %p59
    %p61 = scmp.ne.s32.totalorder %s49, %s50
    %p62 = scmp.eq.s32.totalorder %s19, 1
    %p63 = por %p61, %p62
    %p65 = scmp.ne.s32.totalorder %s50, %s64
    %p66 = scmp.eq.s32.totalorder %s19, 0
    %p67 = por %p65, %p66
    %s69 = sadd.s32 %s68, 1
    %p72 = scmp.eq.s32.totalorder %s13, 1
    %p73 = scmp.ne.s32.totalorder %s68, %s70
    %p74 = scmp.eq.s32.totalorder %s13, 0
    %p75 = por %p73, %p74
    %p76 = scmp.ne.s32.totalorder %s68, %s70
    %p77 = scmp.eq.s32.totalorder %s18, 1
    %p78 = por %p76, %p77
    %p79 = scmp.ne.s32.totalorder %s70, %s71
    %p80 = scmp.eq.s32.totalorder %s18, 0
    %p81 = por %p79, %p80
    %p82 = scmp.ne.s32.totalorder %s70, %s71
    %p83 = scmp.eq.s32.totalorder %s19, 1
    %p84 = por %p82, %p83
    %p86 = scmp.ne.s32.totalorder %s71, %s85
    %p87 = scmp.eq.s32.totalorder %s19, 0
    %p88 = por %p86, %p87
    %s90 = sadd.s32 %s89, 1
    %p93 = scmp.eq.s32.totalorder %s13, 1
    %p94 = scmp.ne.s32.totalorder %s89, %s91
    %p95 = scmp.eq.s32.totalorder %s13, 0
    %p96 = por %p94, %p95
    %p97 = scmp.ne.s32.totalorder %s89, %s91
    %p98 = scmp.eq.s32.totalorder %s18, 1
    %p99 = por %p97, %p98
    %p100 = scmp.ne.s32.totalorder %s91, %s92
    %p101 = scmp.eq.s32.totalorder %s18, 0
    %p102 = por %p100, %p101
    %p103 = scmp.ne.s32.totalorder %s91, %s92
    %p104 = scmp.eq.s32.totalorder %s19, 1
    %p105 = por %p103, %p104
    %p107 = scmp.ne.s32.totalorder %s92, %s106
    %p108 = scmp.eq.s32.totalorder %s19, 0
    %p109 = por %p107, %p108
    %s110 = ssub.s32 %s13, %s20
    %p111 = scmp.eq.s32.totalorder %s110, 0
    %s113 = sadd.s32 %s112, 1
    %s114 = scalar_select %p111, %s112, %s113
    %p117 = pneg %p111
    %p118 = scmp.eq.s32.totalorder %s13, 1
    %p119 = por %p117, %p118
    %p120 = scmp.ne.s32.totalorder %s112, %s115
    %p121 = scmp.eq.s32.totalorder %s13, 0
    %p122 = por %p120, %p121
    %p123 = scmp.ne.s32.totalorder %s112, %s115
    %p124 = scmp.eq.s32.totalorder %s18, 1
    %p125 = por %p123, %p124
    %p126 = scmp.ne.s32.totalorder %s115, %s116
    %p127 = scmp.eq.s32.totalorder %s18, 0
    %p128 = por %p126, %p127
    %p129 = scmp.ne.s32.totalorder %s115, %s116
    %p130 = scmp.eq.s32.totalorder %s19, 1
    %p131 = por %p129, %p130
    %p133 = scmp.ne.s32.totalorder %s116, %s132
    %p134 = scmp.eq.s32.totalorder %s19, 0
    %p135 = por %p133, %p134
    %s136 = ssub.s32 %s13, %s20
    %p137 = scmp.eq.s32.totalorder %s136, 0
    %s139 = sadd.s32 %s138, 1
    %s140 = scalar_select %p137, %s138, %s139
    %p143 = pneg %p137
    %p144 = scmp.eq.s32.totalorder %s13, 1
    %p145 = por %p143, %p144
    %p146 = scmp.ne.s32.totalorder %s138, %s141
    %p147 = scmp.eq.s32.totalorder %s13, 0
    %p148 = por %p146, %p147
    %p149 = scmp.ne.s32.totalorder %s138, %s141
    %p150 = scmp.eq.s32.totalorder %s18, 1
    %p151 = por %p149, %p150
    %p152 = scmp.ne.s32.totalorder %s141, %s142
    %p153 = scmp.eq.s32.totalorder %s18, 0
    %p154 = por %p152, %p153
    %p155 = scmp.ne.s32.totalorder %s141, %s142
    %p156 = scmp.eq.s32.totalorder %s19, 1
    %p157 = por %p155, %p156
    %p159 = scmp.ne.s32.totalorder %s142, %s158
    %p160 = scmp.eq.s32.totalorder %s19, 0
    %p161 = por %p159, %p160
    %s162 = ssub.s32 %s13, %s20
    %p163 = scmp.eq.s32.totalorder %s162, 0
    %s165 = sadd.s32 %s164, 1
    %s166 = scalar_select %p163, %s164, %s165
    %p169 = pneg %p163
    %p170 = scmp.eq.s32.totalorder %s13, 1
    %p171 = por %p169, %p170
    %p172 = scmp.ne.s32.totalorder %s164, %s167
    %p173 = scmp.eq.s32.totalorder %s13, 0
    %p174 = por %p172, %p173
    %p175 = scmp.ne.s32.totalorder %s164, %s167
    %p176 = scmp.eq.s32.totalorder %s18, 1
    %p177 = por %p175, %p176
    %p178 = scmp.ne.s32.totalorder %s167, %s168
    %p179 = scmp.eq.s32.totalorder %s18, 0
    %p180 = por %p178, %p179
    %p181 = scmp.ne.s32.totalorder %s167, %s168
    %p182 = scmp.eq.s32.totalorder %s19, 1
    %p183 = por %p181, %p182
    %p185 = scmp.ne.s32.totalorder %s168, %s184
    %p186 = scmp.eq.s32.totalorder %s19, 0
    %p187 = por %p185, %p186
    %p188 = scmp.le.s32.totalorder 1, %s13
    %p189 = scmp.lt.s32.totalorder %s13, 3
    %p190 = pnand %p188, %p189
    %p191 = pneg %p190
    // Predicated region
    $region9: #{conv_lstm_cell_forward.1} parent=5 // pred_check
      _
    $region10: #{conv_lstm_cell_forward.1} parent=5 // pred_check_branch
      %193 = sbr.rel (%p190) target = $region12
    $region11: #{conv_lstm_cell_forward.1} parent=5 // pred_region
      %s194 = ssub.s32 %s13, 1
      // Predicated region
      $region13: #{conv_lstm_cell_forward.1} parent=11 // pred_check
        %p195 = pneg %p60
      $region14: #{conv_lstm_cell_forward.1} parent=11 // pred_check_branch
        %197 = sbr.rel (%p195) target = $region16
      $region15: #{conv_lstm_cell_forward.1} parent=11 // pred_region
        _
      $region16: #{conv_lstm_cell_forward.1} parent=11 // pred_fallthru
        _
      // Predicated region
      $region17: #{conv_lstm_cell_forward.1} parent=11 // pred_check
        %p198 = pneg %p81
      $region18: #{conv_lstm_cell_forward.1} parent=11 // pred_check_branch
        %200 = sbr.rel (%p198) target = $region20
      $region19: #{conv_lstm_cell_forward.1} parent=11 // pred_region
        _
      $region20: #{conv_lstm_cell_forward.1} parent=11 // pred_fallthru
        _
      // Predicated region
      $region21: #{conv_lstm_cell_forward.1} parent=11 // pred_check
        %p201 = pneg %p102
      $region22: #{conv_lstm_cell_forward.1} parent=11 // pred_check_branch
        %203 = sbr.rel (%p201) target = $region24
      $region23: #{conv_lstm_cell_forward.1} parent=11 // pred_region
        _
      $region24: #{conv_lstm_cell_forward.1} parent=11 // pred_fallthru
        _
    $region12: #{conv_lstm_cell_forward.1} parent=5 // pred_fallthru
      _
    %p204 = scmp.lt.s32.totalorder %s13, 2
    // Predicated region
    $region25: #{conv_lstm_cell_forward.1} parent=5 // pred_check
      %p205 = pneg %p204
    $region26: #{conv_lstm_cell_forward.1} parent=5 // pred_check_branch
      %207 = sbr.rel (%p205) target = $region28
    $region27: #{conv_lstm_cell_forward.1} parent=5 // pred_region
      // Predicated region
      $region29: #{conv_lstm_cell_forward.1} parent=27 // pred_check
        %p208 = pneg %p33
      $region30: #{conv_lstm_cell_forward.1} parent=27 // pred_check_branch
        %210 = sbr.rel (%p208) target = $region32
      $region31: #{conv_lstm_cell_forward.1} parent=27 // pred_region
        %p211 = scmp.lt.s32.totalorder %s13, 1
        %s212 = scalar_select %p211, %s13, 1
        %s213 = smul.addr %s212, 10
        %s214 = smul.addr %s213, 8
        %s215 = scalar_lea.vmem %s0, %s214
      $region32: #{conv_lstm_cell_forward.1} parent=27 // pred_fallthru
        _
      // Predicated region
      $region33: #{conv_lstm_cell_forward.1} parent=27 // pred_check
        %p216 = pneg %p122
      $region34: #{conv_lstm_cell_forward.1} parent=27 // pred_check_branch
        %218 = sbr.rel (%p216) target = $region36
      $region35: #{conv_lstm_cell_forward.1} parent=27 // pred_region
        %p219 = scmp.lt.s32.totalorder %s13, 1
        %s220 = scalar_select %p219, %s13, 1
        %s221 = smul.addr %s220, 8
        %s222 = smul.addr %s221, 8
        %s223 = scalar_lea.vmem %s4, %s222
      $region36: #{conv_lstm_cell_forward.1} parent=27 // pred_fallthru
        _
    $region28: #{conv_lstm_cell_forward.1} parent=5 // pred_fallthru
      _
    %p224 = scmp.le.s32.totalorder 1, %s13
    %p225 = scmp.lt.s32.totalorder %s13, 3
    %p226 = pnand %p224, %p225
    %p227 = pneg %p226
    // Predicated region
    $region37: #{conv_lstm_cell_forward.1} parent=5 // pred_check
      _
    $region38: #{conv_lstm_cell_forward.1} parent=5 // pred_check_branch
      %229 = sbr.rel (%p226) target = $region40
    $region39: #{conv_lstm_cell_forward.1} parent=5 // pred_region
      %s230 = ssub.s32 %s13, 1
      %p231 = scmp.lt.s32.totalorder %s18, 1
      %s232 = scalar_select %p231, %s18, 1
      %s233 = smul.addr %s232, 10
      %s234 = smul.addr %s233, 8
      %s235 = scalar_lea.vmem %s0, %s234
      %p236 = pneg %p39
      %p237 = pneg %p36
      %p238 = pneg %p60
      %p239 = pneg %p57
      %p240 = pneg %p81
      %p241 = pneg %p78
      %p242 = pneg %p102
      %p243 = pneg %p99
      %p244 = scmp.lt.s32.totalorder %s18, 1
      %s245 = scalar_select %p244, %s18, 1
      %s246 = smul.addr %s245, 8
      %s247 = smul.addr %s246, 8
      %s248 = scalar_lea.vmem %s4, %s247
      %p249 = pneg %p128
      %p250 = pneg %p125
      %p251 = pneg %p154
      %p252 = pneg %p151
      %p253 = scmp.lt.s32.totalorder %s18, 1
      %s254 = scalar_select %p253, %s18, 1
      %s255 = smul.addr %s254, 8
      %s256 = smul.addr %s255, 8
      %s257 = scalar_lea.vmem %s5, %s256
      %p258 = pneg %p180
      %p259 = pneg %p177
      %p260 = scmp.lt.s32.totalorder %s18, 1
      %s261 = scalar_select %p260, %s18, 1
      %s262 = smul.addr %s261, 8
      %s263 = smul.addr %s262, 8
      %s264 = scalar_lea.vmem %s6, %s263
      %p265 = scmp.lt.s32.totalorder %s18, 1
      %s266 = scalar_select %p265, %s18, 1
      %s267 = smul.addr %s266, 10
      %s268 = smul.addr %s267, 8
      %s269 = scalar_lea.vmem %s0, %s268
      %p270 = scmp.lt.s32.totalorder %s18, 1
      %s271 = scalar_select %p270, %s18, 1
      %s272 = smul.addr %s271, 8
      %s273 = smul.addr %s272, 8
      %s274 = scalar_lea.vmem %s4, %s273
      %p275 = scmp.lt.s32.totalorder %s18, 1
      %s276 = scalar_select %p275, %s18, 1
      %s277 = smul.addr %s276, 8
      %s278 = smul.addr %s277, 8
      %s279 = scalar_lea.vmem %s5, %s278
      %p280 = scmp.lt.s32.totalorder %s18, 1
      %s281 = scalar_select %p280, %s18, 1
      %s282 = smul.addr %s281, 8
      %s283 = smul.addr %s282, 8
      %s284 = scalar_lea.vmem %s6, %s283
      %v286 = vld [vmem:[%s269] sm:$0xff]
      %v287 = vld [vmem:[%s269 + $0x8] sm:$0xff]
      %v288 = vld [vmem:[%s269 + $0x10] sm:$0xff]
      %v289 = vld [vmem:[%s269 + $0x18] sm:$0xff]
      %v290 = vld [vmem:[%s269 + $0x20] sm:$0xff]
      %v291 = vld [vmem:[%s269 + $0x28] sm:$0xff]
      %v292 = vld [vmem:[%s269 + $0x30] sm:$0xff]
      %v293 = vld [vmem:[%s269 + $0x38] sm:$0xff]
      %v294 = vld [vmem:[%s269 + $0x40] sm:$0xf]
      %v295 = vld [vmem:[%s269 + $0x48] sm:$0xf]
      %v296 = vld [vmem:[%s3] sm:$0xff]
      %v297 = vld [vmem:[%s3 + $0x8] sm:$0xff]
      %v298 = vld [vmem:[%s3 + $0x10] sm:$0xff]
      %v299 = vld [vmem:[%s3 + $0x18] sm:$0xff]
      %v300 = vld [vmem:[%s3 + $0x20] sm:$0xff]
      %v301 = vld [vmem:[%s3 + $0x28] sm:$0xff]
      %v302 = vld [vmem:[%s3 + $0x30] sm:$0xff]
      %v303 = vld [vmem:[%s3 + $0x38] sm:$0xff]
      %v304 = vld [vmem:[%s3 + $0x40] sm:$0xff]
      %v305 = vld [vmem:[%s3 + $0x48] sm:$0xff]
      %v306 = vld [vmem:[%s3 + $0x50] sm:$0xff]
      %v307 = vld [vmem:[%s3 + $0x58] sm:$0xff]
      %v308 = vld [vmem:[%s3 + $0x60] sm:$0xff]
      %v309 = vld [vmem:[%s3 + $0x68] sm:$0xff]
      %v310 = vld [vmem:[%s3 + $0x70] sm:$0xff]
      %v311 = vld [vmem:[%s3 + $0x78] sm:$0xff]
      %313 = vset.pattern.permute.xlu0 0
      %314 = vperm.xlu0 %313, %v296
      %v315 = vpop.permute.xlu0 %314
      %318 = vset.pattern.permute.xlu0 0
      %319 = vperm.xlu0 %318, %v297
      %v320 = vpop.permute.xlu0 %319
      %323 = vset.pattern.permute.xlu0 0
      %324 = vperm.xlu0 %323, %v298
      %v325 = vpop.permute.xlu0 %324
      %328 = vset.pattern.permute.xlu0 0
      %329 = vperm.xlu0 %328, %v299
      %v330 = vpop.permute.xlu0 %329
      %333 = vset.pattern.permute.xlu0 0
      %334 = vperm.xlu0 %333, %v300
      %v335 = vpop.permute.xlu0 %334
      %338 = vset.pattern.permute.xlu0 0
      %339 = vperm.xlu0 %338, %v301
      %v340 = vpop.permute.xlu0 %339
      %343 = vset.pattern.permute.xlu0 0
      %344 = vperm.xlu0 %343, %v302
      %v345 = vpop.permute.xlu0 %344
      %348 = vset.pattern.permute.xlu0 0
      %349 = vperm.xlu0 %348, %v303
      %v350 = vpop.permute.xlu0 %349
      %353 = vset.pattern.permute.xlu0 0
      %354 = vperm.xlu0 %353, %v304
      %v355 = vpop.permute.xlu0 %354
      %358 = vset.pattern.permute.xlu0 0
      %359 = vperm.xlu0 %358, %v305
      %v360 = vpop.permute.xlu0 %359
      %363 = vset.pattern.permute.xlu0 0
      %364 = vperm.xlu0 %363, %v306
      %v365 = vpop.permute.xlu0 %364
      %368 = vset.pattern.permute.xlu0 0
      %369 = vperm.xlu0 %368, %v307
      %v370 = vpop.permute.xlu0 %369
      %373 = vset.pattern.permute.xlu0 0
      %374 = vperm.xlu0 %373, %v308
      %v375 = vpop.permute.xlu0 %374
      %378 = vset.pattern.permute.xlu0 0
      %379 = vperm.xlu0 %378, %v309
      %v380 = vpop.permute.xlu0 %379
      %383 = vset.pattern.permute.xlu0 0
      %384 = vperm.xlu0 %383, %v310
      %v385 = vpop.permute.xlu0 %384
      %388 = vset.pattern.permute.xlu0 0
      %389 = vperm.xlu0 %388, %v311
      %v390 = vpop.permute.xlu0 %389
      %v392 = vadd.f32 %v315, 0.0
      %v393 = vadd.f32 %v320, 0.0
      %v394 = vadd.f32 %v325, 0.0
      %v395 = vadd.f32 %v330, 0.0
      %v396 = vadd.f32 %v335, 0.0
      %v397 = vadd.f32 %v340, 0.0
      %v398 = vadd.f32 %v345, 0.0
      %v399 = vadd.f32 %v350, 0.0
      %v400 = vadd.f32 %v355, 0.0
      %v401 = vadd.f32 %v360, 0.0
      %v402 = vadd.f32 %v365, 0.0
      %v403 = vadd.f32 %v370, 0.0
      %v404 = vadd.f32 %v375, 0.0
      %v405 = vadd.f32 %v380, 0.0
      %v406 = vadd.f32 %v385, 0.0
      %v407 = vadd.f32 %v390, 0.0
      %408 = vst [vmem:[#allocation2] sm:$0xff] %v392
      %409 = vst [vmem:[#allocation2 + $0x8] sm:$0xff] %v392
      %410 = vst [vmem:[#allocation2 + $0x10] sm:$0xff] %v393
      %411 = vst [vmem:[#allocation2 + $0x18] sm:$0xff] %v393
      %412 = vst [vmem:[#allocation2 + $0x20] sm:$0xff] %v394
      %413 = vst [vmem:[#allocation2 + $0x28] sm:$0xff] %v394
      %414 = vst [vmem:[#allocation2 + $0x30] sm:$0xff] %v395
      %415 = vst [vmem:[#allocation2 + $0x38] sm:$0xff] %v395
      %416 = vst [vmem:[#allocation2 + $0x40] sm:$0xff] %v396
      %417 = vst [vmem:[#allocation2 + $0x48] sm:$0xff] %v396
      %418 = vst [vmem:[#allocation2 + $0x50] sm:$0xff] %v397
      %419 = vst [vmem:[#allocation2 + $0x58] sm:$0xff] %v397
      %420 = vst [vmem:[#allocation2 + $0x60] sm:$0xff] %v398
      %421 = vst [vmem:[#allocation2 + $0x68] sm:$0xff] %v398
      %422 = vst [vmem:[#allocation2 + $0x70] sm:$0xff] %v399
      %423 = vst [vmem:[#allocation2 + $0x78] sm:$0xff] %v399
      %424 = vst [vmem:[#allocation2 + $0x80] sm:$0xff] %v400
      %425 = vst [vmem:[#allocation2 + $0x88] sm:$0xff] %v400
      %426 = vst [vmem:[#allocation2 + $0x90] sm:$0xff] %v401
      %427 = vst [vmem:[#allocation2 + $0x98] sm:$0xff] %v401
      %428 = vst [vmem:[#allocation2 + $0xa0] sm:$0xff] %v402
      %429 = vst [vmem:[#allocation2 + $0xa8] sm:$0xff] %v402
      %430 = vst [vmem:[#allocation2 + $0xb0] sm:$0xff] %v403
      %431 = vst [vmem:[#allocation2 + $0xb8] sm:$0xff] %v403
      %432 = vst [vmem:[#allocation2 + $0xc0] sm:$0xff] %v404
      %433 = vst [vmem:[#allocation2 + $0xc8] sm:$0xff] %v404
      %434 = vst [vmem:[#allocation2 + $0xd0] sm:$0xff] %v405
      %435 = vst [vmem:[#allocation2 + $0xd8] sm:$0xff] %v405
      %436 = vst [vmem:[#allocation2 + $0xe0] sm:$0xff] %v406
      %437 = vst [vmem:[#allocation2 + $0xe8] sm:$0xff] %v406
      %438 = vst [vmem:[#allocation2 + $0xf0] sm:$0xff] %v407
      %439 = vst [vmem:[#allocation2 + $0xf8] sm:$0xff] %v407
      %440 = vrot.lane.b32.xlu0 %v286, 17
      %v441 = vpop.permute.xlu0 %440
      %442 = vrot.lane.b32.xlu0 %v288, 17
      %v443 = vpop.permute.xlu0 %442
      %444 = vrot.lane.b32.xlu0 %v290, 17
      %v445 = vpop.permute.xlu0 %444
      %446 = vrot.lane.b32.xlu0 %v292, 17
      %v447 = vpop.permute.xlu0 %446
      %448 = vrot.lane.b32.xlu0 %v294, 17
      %v449 = vpop.permute.xlu0 %448
      %450 = vrot.lane.b32.xlu0 %v287, 17
      %v451 = vpop.permute.xlu0 %450
      %452 = vrot.lane.b32.xlu0 %v289, 17
      %v453 = vpop.permute.xlu0 %452
      %454 = vrot.lane.b32.xlu0 %v291, 17
      %v455 = vpop.permute.xlu0 %454
      %456 = vrot.lane.b32.xlu0 %v293, 17
      %v457 = vpop.permute.xlu0 %456
      %458 = vrot.lane.b32.xlu0 %v295, 17
      %v459 = vpop.permute.xlu0 %458
      %v460 = vlaneseq
      %v461 = vand.u32 %v460, 127
      %vm462 = vcmp.lt.s32.totalorder %v461, 17
      %v463 = vsel %vm462, %v441, %v451
      %v464 = vsel %vm462, %v443, %v453
      %v465 = vsel %vm462, %v445, %v455
      %v466 = vsel %vm462, %v447, %v457
      %v467 = vsel %vm462, %v449, %v459
      %v468 = vsel %vm462, %v451, %v441
      %v469 = vsel %vm462, %v453, %v443
      %v470 = vsel %vm462, %v455, %v445
      %v471 = vsel %vm462, %v457, %v447
      %v472 = vsel %vm462, %v459, %v449
      %v473 = vld [vmem:[%s2] sm:$0x3]
      %v475 = vlaneseq
      %v476 = vshrl.u32 %v475, 7
      %v477 = vsub.s32 0, %v476
      %v478 = vrot.slane %v473, %v477
      %v479 = vlaneseq
      %v480 = vshrl.u32 %v479, 7
      %v481 = vsub.s32 1, %v480
      %v482 = vrot.slane %v473, %v481
      %v485 = vmul.f32 %v468, %v478
      %v486 = vmul.f32 %v463, %v482
      %v487 = vmul.f32 %v469, %v478
      %v488 = vmul.f32 %v464, %v482
      %v489 = vmul.f32 %v470, %v478
      %v490 = vmul.f32 %v465, %v482
      %v491 = vmul.f32 %v471, %v478
      %v492 = vmul.f32 %v466, %v482
      %v493 = vmul.f32 %v472, %v478
      %v494 = vmul.f32 %v467, %v482
      %v495 = vpack.c.bf16 %v487, %v485
      %v496 = vpack.c.bf16 %v488, %v486
      %v497 = vpack.c.bf16 %v491, %v489
      %v498 = vpack.c.bf16 %v492, %v490
      %v499 = vpack.c.bf16 %v493, %v493
      %v500 = vpack.c.bf16 %v494, %v494
      %v501 = vld [vmem:[#allocation2] sm:$0xff]
      %v502 = vld [vmem:[#allocation2 + $0x8] sm:$0xff]
      %v503 = vld [vmem:[#allocation2 + $0x10] sm:$0xff]
      %v504 = vld [vmem:[#allocation2 + $0x18] sm:$0xff]
      %v505 = vld [vmem:[#allocation2 + $0x20] sm:$0xff]
      %v506 = vld [vmem:[#allocation2 + $0x28] sm:$0xff]
      %v507 = vld [vmem:[#allocation2 + $0x30] sm:$0xff]
      %v508 = vld [vmem:[#allocation2 + $0x38] sm:$0xff]
      %v509 = vld [vmem:[#allocation2 + $0x40] sm:$0xff]
      %v510 = vld [vmem:[#allocation2 + $0x48] sm:$0xff]
      %v511 = vld [vmem:[#allocation2 + $0x50] sm:$0xff]
      %v512 = vld [vmem:[#allocation2 + $0x58] sm:$0xff]
      %v513 = vld [vmem:[#allocation2 + $0x60] sm:$0xff]
      %v514 = vld [vmem:[#allocation2 + $0x68] sm:$0xff]
      %v515 = vld [vmem:[#allocation2 + $0x70] sm:$0xff]
      %v516 = vld [vmem:[#allocation2 + $0x78] sm:$0xff]
      %v517 = vld [vmem:[#allocation2 + $0x80] sm:$0xff]
      %v518 = vld [vmem:[#allocation2 + $0x88] sm:$0xff]
      %v519 = vld [vmem:[#allocation2 + $0x90] sm:$0xff]
      %v520 = vld [vmem:[#allocation2 + $0x98] sm:$0xff]
      %v521 = vld [vmem:[#allocation2 + $0xa0] sm:$0xff]
      %v522 = vld [vmem:[#allocation2 + $0xa8] sm:$0xff]
      %v523 = vld [vmem:[#allocation2 + $0xb0] sm:$0xff]
      %v524 = vld [vmem:[#allocation2 + $0xb8] sm:$0xff]
      %v525 = vld [vmem:[#allocation2 + $0xc0] sm:$0xff]
      %v526 = vld [vmem:[#allocation2 + $0xc8] sm:$0xff]
      %v527 = vld [vmem:[#allocation2 + $0xd0] sm:$0xff]
      %v528 = vld [vmem:[#allocation2 + $0xd8] sm:$0xff]
      %v529 = vld [vmem:[#allocation2 + $0xe0] sm:$0xff]
      %v530 = vld [vmem:[#allocation2 + $0xe8] sm:$0xff]
      %v531 = vld [vmem:[#allocation2 + $0xf0] sm:$0xff]
      %v532 = vld [vmem:[#allocation2 + $0xf8] sm:$0xff]
      %v533 = vld [vmem:[%s1] sm:$0xf]
      %v534 = vld [vmem:[%s1 + $0x4] sm:$0xf]
      %v535 = vld [vmem:[%s1 + $0x8] sm:$0xf]
      %v536 = vld [vmem:[%s1 + $0xc] sm:$0xf]
      %v537 = vld [vmem:[%s1 + $0x10] sm:$0xf]
      %v538 = vld [vmem:[%s1 + $0x14] sm:$0xf]
      %v539 = vld [vmem:[%s1 + $0x18] sm:$0xf]
      %v540 = vld [vmem:[%s1 + $0x1c] sm:$0xf]
      %v541 = vld [vmem:[%s1 + $0x20] sm:$0xf]
      %v542 = vld [vmem:[%s1 + $0x24] sm:$0xf]
      %v543 = vld [vmem:[%s1 + $0x28] sm:$0xf]
      %v544 = vld [vmem:[%s1 + $0x2c] sm:$0xf]
      %v545 = vld [vmem:[%s1 + $0x30] sm:$0xf]
      %v546 = vld [vmem:[%s1 + $0x34] sm:$0xf]
      %v547 = vld [vmem:[%s1 + $0x38] sm:$0xf]
      %v548 = vld [vmem:[%s1 + $0x3c] sm:$0xf]
      %v565 = vunpack.c.l.b16 %v533
      %v566 = vunpack.c.l.b16 %v534
      %v567 = vunpack.c.l.b16 %v535
      %v568 = vunpack.c.l.b16 %v536
      %v569 = vunpack.c.l.b16 %v537
      %v570 = vunpack.c.l.b16 %v538
      %v571 = vunpack.c.l.b16 %v539
      %v572 = vunpack.c.l.b16 %v540
      %v573 = vunpack.c.l.b16 %v541
      %v574 = vunpack.c.l.b16 %v542
      %v575 = vunpack.c.l.b16 %v543
      %v576 = vunpack.c.l.b16 %v544
      %v577 = vunpack.c.l.b16 %v545
      %v578 = vunpack.c.l.b16 %v546
      %v579 = vunpack.c.l.b16 %v547
      %v580 = vunpack.c.l.b16 %v548
      %v581 = vpack.c.b16 %v566, %v565
      %v582 = vpack.c.b16 %v568, %v567
      %v583 = vpack.c.b16 %v570, %v569
      %v584 = vpack.c.b16 %v572, %v571
      %v585 = vpack.c.b16 %v574, %v573
      %v586 = vpack.c.b16 %v576, %v575
      %v587 = vpack.c.b16 %v578, %v577
      %v588 = vpack.c.b16 %v580, %v579
      %vm589 = vcmask 293888
      %v591 = vsel %vm589, %v581, 0
      %v594 = vsel %vm589, %v582, 0
      %v597 = vsel %vm589, %v583, 0
      %v600 = vsel %vm589, %v584, 0
      %v603 = vsel %vm589, %v585, 0
      %v606 = vsel %vm589, %v586, 0
      %v609 = vsel %vm589, %v587, 0
      %v612 = vsel %vm589, %v588, 0
      %vm614 = vcmask 1041408
      %v616 = vsel %vm614, %v499, 0
      %v619 = vsel %vm614, %v500, 0
      %621 = vmatprep.subr.bf16.mxu0 0
      %622 = vmatpush1.bf16.msra.mxu0 0
      %623 = vmatprep.subr.bf16.mxu0 0
      %624 = vmatpush1.bf16.msra.mxu0 0
      %625 = vmatprep.subr.bf16.mxu0 0
      %626 = vmatpush1.bf16.msra.mxu0 0
      %627 = vmatprep.subr.bf16.mxu0 0
      %628 = vmatpush1.bf16.msra.mxu0 0
      %629 = vmatprep.subr.bf16.mxu0 0
      %630 = vmatpush1.bf16.msra.mxu0 0
      %631 = vmatprep.subr.bf16.mxu0 %v619
      %632 = vmatpush1.bf16.msra.mxu0 %v616
      %633 = vmatprep.subr.bf16.mxu0 %v498
      %634 = vmatpush1.bf16.msra.mxu0 %v497
      %635 = vmatprep.subr.bf16.mxu0 %v496
      %636 = vmatpush1.bf16.msra.mxu0 %v495
      %637 = vmatprep.subr.bf16.mxu0 0
      %638 = vmatpush2.bf16.msra.mxu0 0
      %639 = vmatprep.subr.bf16.mxu0 0
      %640 = vmatpush2.bf16.msra.mxu0 0
      %641 = vmatprep.subr.bf16.mxu0 0
      %642 = vmatpush2.bf16.msra.mxu0 0
      %643 = vmatprep.subr.bf16.mxu0 0
      %644 = vmatpush2.bf16.msra.mxu0 0
      %645 = vmatprep.subr.bf16.mxu0 0
      %646 = vmatpush2.bf16.msra.mxu0 0
      %647 = vmatprep.subr.bf16.mxu0 0
      %648 = vmatpush2.bf16.msra.mxu0 0
      %649 = vmatprep.subr.bf16.mxu0 0
      %650 = vmatpush2.bf16.msra.mxu0 0
      %651 = vmatprep.subr.bf16.mxu0 0
      %652 = vmatpush2.bf16.msra.mxu0 0
      %653 = vmatprep.mubr.bf16.mxu0 0
      %654 = vmatmul.mubr.bf16.gmra.mxu0 %v591
      %v655 = vpop.f32.mrf.mxu0
      %v656 = vadd.f32 0.0, %v655
      %v657 = vpop.f32.mrf.mxu0
      %v658 = vadd.f32 0.0, %v657
      %v659 = vpop.f32.mrf.mxu0
      %v660 = vadd.f32 0.0, %v659
      %v661 = vpop.f32.mrf.mxu0
      %v662 = vadd.f32 0.0, %v661
      %663 = vmatprep.mubr.bf16.mxu0 0
      %664 = vmatmul.mubr.bf16.gmra.mxu0 %v594
      %v665 = vpop.f32.mrf.mxu0
      %v666 = vadd.f32 0.0, %v665
      %v667 = vpop.f32.mrf.mxu0
      %v668 = vadd.f32 0.0, %v667
      %v669 = vpop.f32.mrf.mxu0
      %v670 = vadd.f32 0.0, %v669
      %v671 = vpop.f32.mrf.mxu0
      %v672 = vadd.f32 0.0, %v671
      %673 = vmatprep.mubr.bf16.mxu0 0
      %674 = vmatmul.mubr.bf16.gmra.mxu0 %v597
      %v675 = vpop.f32.mrf.mxu0
      %v676 = vadd.f32 0.0, %v675
      %v677 = vpop.f32.mrf.mxu0
      %v678 = vadd.f32 0.0, %v677
      %v679 = vpop.f32.mrf.mxu0
      %v680 = vadd.f32 0.0, %v679
      %v681 = vpop.f32.mrf.mxu0
      %v682 = vadd.f32 0.0, %v681
      %683 = vmatprep.mubr.bf16.mxu0 0
      %684 = vmatmul.mubr.bf16.gmra.mxu0 %v600
      %v685 = vpop.f32.mrf.mxu0
      %v686 = vadd.f32 0.0, %v685
      %v687 = vpop.f32.mrf.mxu0
      %v688 = vadd.f32 0.0, %v687
      %v689 = vpop.f32.mrf.mxu0
      %v690 = vadd.f32 0.0, %v689
      %v691 = vpop.f32.mrf.mxu0
      %v692 = vadd.f32 0.0, %v691
      %693 = vmatprep.mubr.bf16.mxu0 0
      %694 = vmatmul.mubr.bf16.gmra.mxu0 %v603
      %v695 = vpop.f32.mrf.mxu0
      %v696 = vadd.f32 0.0, %v695
      %v697 = vpop.f32.mrf.mxu0
      %v698 = vadd.f32 0.0, %v697
      %v699 = vpop.f32.mrf.mxu0
      %v700 = vadd.f32 0.0, %v699
      %v701 = vpop.f32.mrf.mxu0
      %v702 = vadd.f32 0.0, %v701
      %703 = vmatprep.mubr.bf16.mxu0 0
      %704 = vmatmul.mubr.bf16.gmra.mxu0 %v606
      %v705 = vpop.f32.mrf.mxu0
      %v706 = vadd.f32 0.0, %v705
      %v707 = vpop.f32.mrf.mxu0
      %v708 = vadd.f32 0.0, %v707
      %v709 = vpop.f32.mrf.mxu0
      %v710 = vadd.f32 0.0, %v709
      %v711 = vpop.f32.mrf.mxu0
      %v712 = vadd.f32 0.0, %v711
      %713 = vmatprep.mubr.bf16.mxu0 0
      %714 = vmatmul.mubr.bf16.gmra.mxu0 %v609
      %v715 = vpop.f32.mrf.mxu0
      %v716 = vadd.f32 0.0, %v715
      %v717 = vpop.f32.mrf.mxu0
      %v718 = vadd.f32 0.0, %v717
      %v719 = vpop.f32.mrf.mxu0
      %v720 = vadd.f32 0.0, %v719
      %v721 = vpop.f32.mrf.mxu0
      %v722 = vadd.f32 0.0, %v721
      %723 = vmatprep.mubr.bf16.mxu0 0
      %724 = vmatmul.mubr.bf16.gmra.mxu0 %v612
      %v725 = vpop.f32.mrf.mxu0
      %v726 = vadd.f32 0.0, %v725
      %v727 = vpop.f32.mrf.mxu0
      %v728 = vadd.f32 0.0, %v727
      %v729 = vpop.f32.mrf.mxu0
      %v730 = vadd.f32 0.0, %v729
      %v731 = vpop.f32.mrf.mxu0
      %v732 = vadd.f32 0.0, %v731
      %733 = vdwg.mxu0
      %v734 = vadd.f32 %v501, %v656
      %v735 = vadd.f32 %v502, %v658
      %v736 = vadd.f32 %v503, %v660
      %v737 = vadd.f32 %v504, %v662
      %v738 = vadd.f32 %v505, %v666
      %v739 = vadd.f32 %v506, %v668
      %v740 = vadd.f32 %v507, %v670
      %v741 = vadd.f32 %v508, %v672
      %v742 = vadd.f32 %v509, %v676
      %v743 = vadd.f32 %v510, %v678
      %v744 = vadd.f32 %v511, %v680
      %v745 = vadd.f32 %v512, %v682
      %v746 = vadd.f32 %v513, %v686
      %v747 = vadd.f32 %v514, %v688
      %v748 = vadd.f32 %v515, %v690
      %v749 = vadd.f32 %v516, %v692
      %v750 = vadd.f32 %v517, %v696
      %v751 = vadd.f32 %v518, %v698
      %v752 = vadd.f32 %v519, %v700
      %v753 = vadd.f32 %v520, %v702
      %v754 = vadd.f32 %v521, %v706
      %v755 = vadd.f32 %v522, %v708
      %v756 = vadd.f32 %v523, %v710
      %v757 = vadd.f32 %v524, %v712
      %v758 = vadd.f32 %v525, %v716
      %v759 = vadd.f32 %v526, %v718
      %v760 = vadd.f32 %v527, %v720
      %v761 = vadd.f32 %v528, %v722
      %v762 = vadd.f32 %v529, %v726
      %v763 = vadd.f32 %v530, %v728
      %v764 = vadd.f32 %v531, %v730
      %v765 = vadd.f32 %v532, %v732
      %766 = vst [vmem:[#allocation2] sm:$0xff] %v734
      %767 = vst [vmem:[#allocation2 + $0x8] sm:$0xff] %v735
      %768 = vst [vmem:[#allocation2 + $0x10] sm:$0xff] %v736
      %769 = vst [vmem:[#allocation2 + $0x18] sm:$0xff] %v737
      %770 = vst [vmem:[#allocation2 + $0x20] sm:$0xff] %v738
      %771 = vst [vmem:[#allocation2 + $0x28] sm:$0xff] %v739
      %772 = vst [vmem:[#allocation2 + $0x30] sm:$0xff] %v740
      %773 = vst [vmem:[#allocation2 + $0x38] sm:$0xff] %v741
      %774 = vst [vmem:[#allocation2 + $0x40] sm:$0xff] %v742
      %775 = vst [vmem:[#allocation2 + $0x48] sm:$0xff] %v743
      %776 = vst [vmem:[#allocation2 + $0x50] sm:$0xff] %v744
      %777 = vst [vmem:[#allocation2 + $0x58] sm:$0xff] %v745
      %778 = vst [vmem:[#allocation2 + $0x60] sm:$0xff] %v746
      %779 = vst [vmem:[#allocation2 + $0x68] sm:$0xff] %v747
      %780 = vst [vmem:[#allocation2 + $0x70] sm:$0xff] %v748
      %781 = vst [vmem:[#allocation2 + $0x78] sm:$0xff] %v749
      %782 = vst [vmem:[#allocation2 + $0x80] sm:$0xff] %v750
      %783 = vst [vmem:[#allocation2 + $0x88] sm:$0xff] %v751
      %784 = vst [vmem:[#allocation2 + $0x90] sm:$0xff] %v752
      %785 = vst [vmem:[#allocation2 + $0x98] sm:$0xff] %v753
      %786 = vst [vmem:[#allocation2 + $0xa0] sm:$0xff] %v754
      %787 = vst [vmem:[#allocation2 + $0xa8] sm:$0xff] %v755
      %788 = vst [vmem:[#allocation2 + $0xb0] sm:$0xff] %v756
      %789 = vst [vmem:[#allocation2 + $0xb8] sm:$0xff] %v757
      %790 = vst [vmem:[#allocation2 + $0xc0] sm:$0xff] %v758
      %791 = vst [vmem:[#allocation2 + $0xc8] sm:$0xff] %v759
      %792 = vst [vmem:[#allocation2 + $0xd0] sm:$0xff] %v760
      %793 = vst [vmem:[#allocation2 + $0xd8] sm:$0xff] %v761
      %794 = vst [vmem:[#allocation2 + $0xe0] sm:$0xff] %v762
      %795 = vst [vmem:[#allocation2 + $0xe8] sm:$0xff] %v763
      %796 = vst [vmem:[#allocation2 + $0xf0] sm:$0xff] %v764
      %797 = vst [vmem:[#allocation2 + $0xf8] sm:$0xff] %v765
      %798 = vrot.lane.b32.xlu0 %v286, 16
      %v799 = vpop.permute.xlu0 %798
      %800 = vrot.lane.b32.xlu0 %v288, 16
      %v801 = vpop.permute.xlu0 %800
      %802 = vrot.lane.b32.xlu0 %v290, 16
      %v803 = vpop.permute.xlu0 %802
      %804 = vrot.lane.b32.xlu0 %v292, 16
      %v805 = vpop.permute.xlu0 %804
      %806 = vrot.lane.b32.xlu0 %v294, 16
      %v807 = vpop.permute.xlu0 %806
      %808 = vrot.lane.b32.xlu0 %v287, 16
      %v809 = vpop.permute.xlu0 %808
      %810 = vrot.lane.b32.xlu0 %v289, 16
      %v811 = vpop.permute.xlu0 %810
      %812 = vrot.lane.b32.xlu0 %v291, 16
      %v813 = vpop.permute.xlu0 %812
      %814 = vrot.lane.b32.xlu0 %v293, 16
      %v815 = vpop.permute.xlu0 %814
      %816 = vrot.lane.b32.xlu0 %v295, 16
      %v817 = vpop.permute.xlu0 %816
      %vm818 = vcmp.lt.s32.totalorder %v461, 16
      %v819 = vsel %vm818, %v799, %v809
      %v820 = vsel %vm818, %v801, %v811
      %v821 = vsel %vm818, %v803, %v813
      %v822 = vsel %vm818, %v805, %v815
      %v823 = vsel %vm818, %v807, %v817
      %v824 = vsel %vm818, %v809, %v799
      %v825 = vsel %vm818, %v811, %v801
      %v826 = vsel %vm818, %v813, %v803
      %v827 = vsel %vm818, %v815, %v805
      %v828 = vsel %vm818, %v817, %v807
      %s829 = scalar_lea.vmem %s2, 2
      %v830 = vld [vmem:[%s829] sm:$0x3]
      %v832 = vlaneseq
      %v833 = vshrl.u32 %v832, 7
      %v834 = vsub.s32 0, %v833
      %v835 = vrot.slane %v830, %v834
      %v836 = vlaneseq
      %v837 = vshrl.u32 %v836, 7
      %v838 = vsub.s32 1, %v837
      %v839 = vrot.slane %v830, %v838
      %v842 = vmul.f32 %v824, %v835
      %v843 = vmul.f32 %v819, %v839
      %v844 = vmul.f32 %v825, %v835
      %v845 = vmul.f32 %v820, %v839
      %v846 = vmul.f32 %v826, %v835
      %v847 = vmul.f32 %v821, %v839
      %v848 = vmul.f32 %v827, %v835
      %v849 = vmul.f32 %v822, %v839
      %v850 = vmul.f32 %v828, %v835
      %v851 = vmul.f32 %v823, %v839
      %v852 = vpack.c.bf16 %v844, %v842
      %v853 = vpack.c.bf16 %v845, %v843
      %v854 = vpack.c.bf16 %v848, %v846
      %v855 = vpack.c.bf16 %v849, %v847
      %v856 = vpack.c.bf16 %v850, %v850
      %v857 = vpack.c.bf16 %v851, %v851
      %v858 = vld [vmem:[#allocation2] sm:$0xff]
      %v859 = vld [vmem:[#allocation2 + $0x8] sm:$0xff]
      %v860 = vld [vmem:[#allocation2 + $0x10] sm:$0xff]
      %v861 = vld [vmem:[#allocation2 + $0x18] sm:$0xff]
      %v862 = vld [vmem:[#allocation2 + $0x20] sm:$0xff]
      %v863 = vld [vmem:[#allocation2 + $0x28] sm:$0xff]
      %v864 = vld [vmem:[#allocation2 + $0x30] sm:$0xff]
      %v865 = vld [vmem:[#allocation2 + $0x38] sm:$0xff]
      %v866 = vld [vmem:[#allocation2 + $0x40] sm:$0xff]
      %v867 = vld [vmem:[#allocation2 + $0x48] sm:$0xff]
      %v868 = vld [vmem:[#allocation2 + $0x50] sm:$0xff]
      %v869 = vld [vmem:[#allocation2 + $0x58] sm:$0xff]
      %v870 = vld [vmem:[#allocation2 + $0x60] sm:$0xff]
      %v871 = vld [vmem:[#allocation2 + $0x68] sm:$0xff]
      %v872 = vld [vmem:[#allocation2 + $0x70] sm:$0xff]
      %v873 = vld [vmem:[#allocation2 + $0x78] sm:$0xff]
      %v874 = vld [vmem:[#allocation2 + $0x80] sm:$0xff]
      %v875 = vld [vmem:[#allocation2 + $0x88] sm:$0xff]
      %v876 = vld [vmem:[#allocation2 + $0x90] sm:$0xff]
      %v877 = vld [vmem:[#allocation2 + $0x98] sm:$0xff]
      %v878 = vld [vmem:[#allocation2 + $0xa0] sm:$0xff]
      %v879 = vld [vmem:[#allocation2 + $0xa8] sm:$0xff]
      %v880 = vld [vmem:[#allocation2 + $0xb0] sm:$0xff]
      %v881 = vld [vmem:[#allocation2 + $0xb8] sm:$0xff]
      %v882 = vld [vmem:[#allocation2 + $0xc0] sm:$0xff]
      %v883 = vld [vmem:[#allocation2 + $0xc8] sm:$0xff]
      %v884 = vld [vmem:[#allocation2 + $0xd0] sm:$0xff]
      %v885 = vld [vmem:[#allocation2 + $0xd8] sm:$0xff]
      %v886 = vld [vmem:[#allocation2 + $0xe0] sm:$0xff]
      %v887 = vld [vmem:[#allocation2 + $0xe8] sm:$0xff]
      %v888 = vld [vmem:[#allocation2 + $0xf0] sm:$0xff]
      %v889 = vld [vmem:[#allocation2 + $0xf8] sm:$0xff]
      %s890 = scalar_lea.vmem %s1, 64
      %v891 = vld [vmem:[%s890] sm:$0xf]
      %v892 = vld [vmem:[%s890 + $0x4] sm:$0xf]
      %v893 = vld [vmem:[%s890 + $0x8] sm:$0xf]
      %v894 = vld [vmem:[%s890 + $0xc] sm:$0xf]
      %v895 = vld [vmem:[%s890 + $0x10] sm:$0xf]
      %v896 = vld [vmem:[%s890 + $0x14] sm:$0xf]
      %v897 = vld [vmem:[%s890 + $0x18] sm:$0xf]
      %v898 = vld [vmem:[%s890 + $0x1c] sm:$0xf]
      %v899 = vld [vmem:[%s890 + $0x20] sm:$0xf]
      %v900 = vld [vmem:[%s890 + $0x24] sm:$0xf]
      %v901 = vld [vmem:[%s890 + $0x28] sm:$0xf]
      %v902 = vld [vmem:[%s890 + $0x2c] sm:$0xf]
      %v903 = vld [vmem:[%s890 + $0x30] sm:$0xf]
      %v904 = vld [vmem:[%s890 + $0x34] sm:$0xf]
      %v905 = vld [vmem:[%s890 + $0x38] sm:$0xf]
      %v906 = vld [vmem:[%s890 + $0x3c] sm:$0xf]
      %v923 = vunpack.c.l.b16 %v891
      %v924 = vunpack.c.l.b16 %v892
      %v925 = vunpack.c.l.b16 %v893
      %v926 = vunpack.c.l.b16 %v894
      %v927 = vunpack.c.l.b16 %v895
      %v928 = vunpack.c.l.b16 %v896
      %v929 = vunpack.c.l.b16 %v897
      %v930 = vunpack.c.l.b16 %v898
      %v931 = vunpack.c.l.b16 %v899
      %v932 = vunpack.c.l.b16 %v900
      %v933 = vunpack.c.l.b16 %v901
      %v934 = vunpack.c.l.b16 %v902
      %v935 = vunpack.c.l.b16 %v903
      %v936 = vunpack.c.l.b16 %v904
      %v937 = vunpack.c.l.b16 %v905
      %v938 = vunpack.c.l.b16 %v906
      %v939 = vpack.c.b16 %v924, %v923
      %v940 = vpack.c.b16 %v926, %v925
      %v941 = vpack.c.b16 %v928, %v927
      %v942 = vpack.c.b16 %v930, %v929
      %v943 = vpack.c.b16 %v932, %v931
      %v944 = vpack.c.b16 %v934, %v933
      %v945 = vpack.c.b16 %v936, %v935
      %v946 = vpack.c.b16 %v938, %v937
      %v948 = vsel %vm589, %v939, 0
      %v951 = vsel %vm589, %v940, 0
      %v954 = vsel %vm589, %v941, 0
      %v957 = vsel %vm589, %v942, 0
      %v960 = vsel %vm589, %v943, 0
      %v963 = vsel %vm589, %v944, 0
      %v966 = vsel %vm589, %v945, 0
      %v969 = vsel %vm589, %v946, 0
      %v972 = vsel %vm614, %v856, 0
      %v975 = vsel %vm614, %v857, 0
      %977 = vmatprep.subr.bf16.mxu0 0
      %978 = vmatpush1.bf16.msra.mxu0 0
      %979 = vmatprep.subr.bf16.mxu0 0
      %980 = vmatpush1.bf16.msra.mxu0 0
      %981 = vmatprep.subr.bf16.mxu0 0
      %982 = vmatpush1.bf16.msra.mxu0 0
      %983 = vmatprep.subr.bf16.mxu0 0
      %984 = vmatpush1.bf16.msra.mxu0 0
      %985 = vmatprep.subr.bf16.mxu0 0
      %986 = vmatpush1.bf16.msra.mxu0 0
      %987 = vmatprep.subr.bf16.mxu0 %v975
      %988 = vmatpush1.bf16.msra.mxu0 %v972
      %989 = vmatprep.subr.bf16.mxu0 %v855
      %990 = vmatpush1.bf16.msra.mxu0 %v854
      %991 = vmatprep.subr.bf16.mxu0 %v853
      %992 = vmatpush1.bf16.msra.mxu0 %v852
      %993 = vmatprep.subr.bf16.mxu0 0
      %994 = vmatpush2.bf16.msra.mxu0 0
      %995 = vmatprep.subr.bf16.mxu0 0
      %996 = vmatpush2.bf16.msra.mxu0 0
      %997 = vmatprep.subr.bf16.mxu0 0
      %998 = vmatpush2.bf16.msra.mxu0 0
      %999 = vmatprep.subr.bf16.mxu0 0
      %1000 = vmatpush2.bf16.msra.mxu0 0
      %1001 = vmatprep.subr.bf16.mxu0 0
      %1002 = vmatpush2.bf16.msra.mxu0 0
      %1003 = vmatprep.subr.bf16.mxu0 0
      %1004 = vmatpush2.bf16.msra.mxu0 0
      %1005 = vmatprep.subr.bf16.mxu0 0
      %1006 = vmatpush2.bf16.msra.mxu0 0
      %1007 = vmatprep.subr.bf16.mxu0 0
      %1008 = vmatpush2.bf16.msra.mxu0 0
      %1009 = vmatprep.mubr.bf16.mxu0 0
      %1010 = vmatmul.mubr.bf16.gmra.mxu0 %v948
      %v1011 = vpop.f32.mrf.mxu0
      %v1012 = vadd.f32 0.0, %v1011
      %v1013 = vpop.f32.mrf.mxu0
      %v1014 = vadd.f32 0.0, %v1013
      %v1015 = vpop.f32.mrf.mxu0
      %v1016 = vadd.f32 0.0, %v1015
      %v1017 = vpop.f32.mrf.mxu0
      %v1018 = vadd.f32 0.0, %v1017
      %1019 = vmatprep.mubr.bf16.mxu0 0
      %1020 = vmatmul.mubr.bf16.gmra.mxu0 %v951
      %v1021 = vpop.f32.mrf.mxu0
      %v1022 = vadd.f32 0.0, %v1021
      %v1023 = vpop.f32.mrf.mxu0
      %v1024 = vadd.f32 0.0, %v1023
      %v1025 = vpop.f32.mrf.mxu0
      %v1026 = vadd.f32 0.0, %v1025
      %v1027 = vpop.f32.mrf.mxu0
      %v1028 = vadd.f32 0.0, %v1027
      %1029 = vmatprep.mubr.bf16.mxu0 0
      %1030 = vmatmul.mubr.bf16.gmra.mxu0 %v954
      %v1031 = vpop.f32.mrf.mxu0
      %v1032 = vadd.f32 0.0, %v1031
      %v1033 = vpop.f32.mrf.mxu0
      %v1034 = vadd.f32 0.0, %v1033
      %v1035 = vpop.f32.mrf.mxu0
      %v1036 = vadd.f32 0.0, %v1035
      %v1037 = vpop.f32.mrf.mxu0
      %v1038 = vadd.f32 0.0, %v1037
      %1039 = vmatprep.mubr.bf16.mxu0 0
      %1040 = vmatmul.mubr.bf16.gmra.mxu0 %v957
      %v1041 = vpop.f32.mrf.mxu0
      %v1042 = vadd.f32 0.0, %v1041
      %v1043 = vpop.f32.mrf.mxu0
      %v1044 = vadd.f32 0.0, %v1043
      %v1045 = vpop.f32.mrf.mxu0
      %v1046 = vadd.f32 0.0, %v1045
      %v1047 = vpop.f32.mrf.mxu0
      %v1048 = vadd.f32 0.0, %v1047
      %1049 = vmatprep.mubr.bf16.mxu0 0
      %1050 = vmatmul.mubr.bf16.gmra.mxu0 %v960
      %v1051 = vpop.f32.mrf.mxu0
      %v1052 = vadd.f32 0.0, %v1051
      %v1053 = vpop.f32.mrf.mxu0
      %v1054 = vadd.f32 0.0, %v1053
      %v1055 = vpop.f32.mrf.mxu0
      %v1056 = vadd.f32 0.0, %v1055
      %v1057 = vpop.f32.mrf.mxu0
      %v1058 = vadd.f32 0.0, %v1057
      %1059 = vmatprep.mubr.bf16.mxu0 0
      %1060 = vmatmul.mubr.bf16.gmra.mxu0 %v963
      %v1061 = vpop.f32.mrf.mxu0
      %v1062 = vadd.f32 0.0, %v1061
      %v1063 = vpop.f32.mrf.mxu0
      %v1064 = vadd.f32 0.0, %v1063
      %v1065 = vpop.f32.mrf.mxu0
      %v1066 = vadd.f32 0.0, %v1065
      %v1067 = vpop.f32.mrf.mxu0
      %v1068 = vadd.f32 0.0, %v1067
      %1069 = vmatprep.mubr.bf16.mxu0 0
      %1070 = vmatmul.mubr.bf16.gmra.mxu0 %v966
      %v1071 = vpop.f32.mrf.mxu0
      %v1072 = vadd.f32 0.0, %v1071
      %v1073 = vpop.f32.mrf.mxu0
      %v1074 = vadd.f32 0.0, %v1073
      %v1075 = vpop.f32.mrf.mxu0
      %v1076 = vadd.f32 0.0, %v1075
      %v1077 = vpop.f32.mrf.mxu0
      %v1078 = vadd.f32 0.0, %v1077
      %1079 = vmatprep.mubr.bf16.mxu0 0
      %1080 = vmatmul.mubr.bf16.gmra.mxu0 %v969
      %v1081 = vpop.f32.mrf.mxu0
      %v1082 = vadd.f32 0.0, %v1081
      %v1083 = vpop.f32.mrf.mxu0
      %v1084 = vadd.f32 0.0, %v1083
      %v1085 = vpop.f32.mrf.mxu0
      %v1086 = vadd.f32 0.0, %v1085
      %v1087 = vpop.f32.mrf.mxu0
      %v1088 = vadd.f32 0.0, %v1087
      %1089 = vdwg.mxu0
      %v1090 = vadd.f32 %v858, %v1012
      %v1091 = vadd.f32 %v859, %v1014
      %v1092 = vadd.f32 %v860, %v1016
      %v1093 = vadd.f32 %v861, %v1018
      %v1094 = vadd.f32 %v862, %v1022
      %v1095 = vadd.f32 %v863, %v1024
      %v1096 = vadd.f32 %v864, %v1026
      %v1097 = vadd.f32 %v865, %v1028
      %v1098 = vadd.f32 %v866, %v1032
      %v1099 = vadd.f32 %v867, %v1034
      %v1100 = vadd.f32 %v868, %v1036
      %v1101 = vadd.f32 %v869, %v1038
      %v1102 = vadd.f32 %v870, %v1042
      %v1103 = vadd.f32 %v871, %v1044
      %v1104 = vadd.f32 %v872, %v1046
      %v1105 = vadd.f32 %v873, %v1048
      %v1106 = vadd.f32 %v874, %v1052
      %v1107 = vadd.f32 %v875, %v1054
      %v1108 = vadd.f32 %v876, %v1056
      %v1109 = vadd.f32 %v877, %v1058
      %v1110 = vadd.f32 %v878, %v1062
      %v1111 = vadd.f32 %v879, %v1064
      %v1112 = vadd.f32 %v880, %v1066
      %v1113 = vadd.f32 %v881, %v1068
      %v1114 = vadd.f32 %v882, %v1072
      %v1115 = vadd.f32 %v883, %v1074
      %v1116 = vadd.f32 %v884, %v1076
      %v1117 = vadd.f32 %v885, %v1078
      %v1118 = vadd.f32 %v886, %v1082
      %v1119 = vadd.f32 %v887, %v1084
      %v1120 = vadd.f32 %v888, %v1086
      %v1121 = vadd.f32 %v889, %v1088
      %1122 = vst [vmem:[#allocation2] sm:$0xff] %v1090
      %1123 = vst [vmem:[#allocation2 + $0x8] sm:$0xff] %v1091
      %1124 = vst [vmem:[#allocation2 + $0x10] sm:$0xff] %v1092
      %1125 = vst [vmem:[#allocation2 + $0x18] sm:$0xff] %v1093
      %1126 = vst [vmem:[#allocation2 + $0x20] sm:$0xff] %v1094
      %1127 = vst [vmem:[#allocation2 + $0x28] sm:$0xff] %v1095
      %1128 = vst [vmem:[#allocation2 + $0x30] sm:$0xff] %v1096
      %1129 = vst [vmem:[#allocation2 + $0x38] sm:$0xff] %v1097
      %1130 = vst [vmem:[#allocation2 + $0x40] sm:$0xff] %v1098
      %1131 = vst [vmem:[#allocation2 + $0x48] sm:$0xff] %v1099
      %1132 = vst [vmem:[#allocation2 + $0x50] sm:$0xff] %v1100
      %1133 = vst [vmem:[#allocation2 + $0x58] sm:$0xff] %v1101
      %1134 = vst [vmem:[#allocation2 + $0x60] sm:$0xff] %v1102
      %1135 = vst [vmem:[#allocation2 + $0x68] sm:$0xff] %v1103
      %1136 = vst [vmem:[#allocation2 + $0x70] sm:$0xff] %v1104
      %1137 = vst [vmem:[#allocation2 + $0x78] sm:$0xff] %v1105
      %1138 = vst [vmem:[#allocation2 + $0x80] sm:$0xff] %v1106
      %1139 = vst [vmem:[#allocation2 + $0x88] sm:$0xff] %v1107
      %1140 = vst [vmem:[#allocation2 + $0x90] sm:$0xff] %v1108
      %1141 = vst [vmem:[#allocation2 + $0x98] sm:$0xff] %v1109
      %1142 = vst [vmem:[#allocation2 + $0xa0] sm:$0xff] %v1110
      %1143 = vst [vmem:[#allocation2 + $0xa8] sm:$0xff] %v1111
      %1144 = vst [vmem:[#allocation2 + $0xb0] sm:$0xff] %v1112
      %1145 = vst [vmem:[#allocation2 + $0xb8] sm:$0xff] %v1113
      %1146 = vst [vmem:[#allocation2 + $0xc0] sm:$0xff] %v1114
      %1147 = vst [vmem:[#allocation2 + $0xc8] sm:$0xff] %v1115
      %1148 = vst [vmem:[#allocation2 + $0xd0] sm:$0xff] %v1116
      %1149 = vst [vmem:[#allocation2 + $0xd8] sm:$0xff] %v1117
      %1150 = vst [vmem:[#allocation2 + $0xe0] sm:$0xff] %v1118
      %1151 = vst [vmem:[#allocation2 + $0xe8] sm:$0xff] %v1119
      %1152 = vst [vmem:[#allocation2 + $0xf0] sm:$0xff] %v1120
      %1153 = vst [vmem:[#allocation2 + $0xf8] sm:$0xff] %v1121
      %1154 = vrot.lane.b32.xlu0 %v286, 15
      %v1155 = vpop.permute.xlu0 %1154
      %1156 = vrot.lane.b32.xlu0 %v288, 15
      %v1157 = vpop.permute.xlu0 %1156
      %1158 = vrot.lane.b32.xlu0 %v290, 15
      %v1159 = vpop.permute.xlu0 %1158
      %1160 = vrot.lane.b32.xlu0 %v292, 15
      %v1161 = vpop.permute.xlu0 %1160
      %1162 = vrot.lane.b32.xlu0 %v294, 15
      %v1163 = vpop.permute.xlu0 %1162
      %1164 = vrot.lane.b32.xlu0 %v287, 15
      %v1165 = vpop.permute.xlu0 %1164
      %1166 = vrot.lane.b32.xlu0 %v289, 15
      %v1167 = vpop.permute.xlu0 %1166
      %1168 = vrot.lane.b32.xlu0 %v291, 15
      %v1169 = vpop.permute.xlu0 %1168
      %1170 = vrot.lane.b32.xlu0 %v293, 15
      %v1171 = vpop.permute.xlu0 %1170
      %1172 = vrot.lane.b32.xlu0 %v295, 15
      %v1173 = vpop.permute.xlu0 %1172
      %vm1174 = vcmp.lt.s32.totalorder %v461, 15
      %v1175 = vsel %vm1174, %v1155, %v1165
      %v1176 = vsel %vm1174, %v1157, %v1167
      %v1177 = vsel %vm1174, %v1159, %v1169
      %v1178 = vsel %vm1174, %v1161, %v1171
      %v1179 = vsel %vm1174, %v1163, %v1173
      %v1180 = vsel %vm1174, %v1165, %v1155
      %v1181 = vsel %vm1174, %v1167, %v1157
      %v1182 = vsel %vm1174, %v1169, %v1159
      %v1183 = vsel %vm1174, %v1171, %v1161
      %v1184 = vsel %vm1174, %v1173, %v1163
      %s1185 = scalar_lea.vmem %s2, 4
      %v1186 = vld [vmem:[%s1185] sm:$0x3]
      %v1188 = vlaneseq
      %v1189 = vshrl.u32 %v1188, 7
      %v1190 = vsub.s32 0, %v1189
      %v1191 = vrot.slane %v1186, %v1190
      %v1192 = vlaneseq
      %v1193 = vshrl.u32 %v1192, 7
      %v1194 = vsub.s32 1, %v1193
      %v1195 = vrot.slane %v1186, %v1194
      %v1198 = vmul.f32 %v1180, %v1191
      %v1199 = vmul.f32 %v1175, %v1195
      %v1200 = vmul.f32 %v1181, %v1191
      %v1201 = vmul.f32 %v1176, %v1195
      %v1202 = vmul.f32 %v1182, %v1191
      %v1203 = vmul.f32 %v1177, %v1195
      %v1204 = vmul.f32 %v1183, %v1191
      %v1205 = vmul.f32 %v1178, %v1195
      %v1206 = vmul.f32 %v1184, %v1191
      %v1207 = vmul.f32 %v1179, %v1195
      %v1208 = vpack.c.bf16 %v1200, %v1198
      %v1209 = vpack.c.bf16 %v1201, %v1199
      %v1210 = vpack.c.bf16 %v1204, %v1202
      %v1211 = vpack.c.bf16 %v1205, %v1203
      %v1212 = vpack.c.bf16 %v1206, %v1206
      %v1213 = vpack.c.bf16 %v1207, %v1207
      %v1214 = vld [vmem:[#allocation2] sm:$0xff]
      %v1215 = vld [vmem:[#allocation2 + $0x8] sm:$0xff]
      %v1216 = vld [vmem:[#allocation2 + $0x10] sm:$0xff]
      %v1217 = vld [vmem:[#allocation2 + $0x18] sm:$0xff]
      %v1218 = vld [vmem:[#allocation2 + $0x20] sm:$0xff]
      %v1219 = vld [vmem:[#allocation2 + $0x28] sm:$0xff]
      %v1220 = vld [vmem:[#allocation2 + $0x30] sm:$0xff]
      %v1221 = vld [vmem:[#allocation2 + $0x38] sm:$0xff]
      %v1222 = vld [vmem:[#allocation2 + $0x40] sm:$0xff]
      %v1223 = vld [vmem:[#allocation2 + $0x48] sm:$0xff]
      %v1224 = vld [vmem:[#allocation2 + $0x50] sm:$0xff]
      %v1225 = vld [vmem:[#allocation2 + $0x58] sm:$0xff]
      %v1226 = vld [vmem:[#allocation2 + $0x60] sm:$0xff]
      %v1227 = vld [vmem:[#allocation2 + $0x68] sm:$0xff]
      %v1228 = vld [vmem:[#allocation2 + $0x70] sm:$0xff]
      %v1229 = vld [vmem:[#allocation2 + $0x78] sm:$0xff]
      %v1230 = vld [vmem:[#allocation2 + $0x80] sm:$0xff]
      %v1231 = vld [vmem:[#allocation2 + $0x88] sm:$0xff]
      %v1232 = vld [vmem:[#allocation2 + $0x90] sm:$0xff]
      %v1233 = vld [vmem:[#allocation2 + $0x98] sm:$0xff]
      %v1234 = vld [vmem:[#allocation2 + $0xa0] sm:$0xff]
      %v1235 = vld [vmem:[#allocation2 + $0xa8] sm:$0xff]
      %v1236 = vld [vmem:[#allocation2 + $0xb0] sm:$0xff]
      %v1237 = vld [vmem:[#allocation2 + $0xb8] sm:$0xff]
      %v1238 = vld [vmem:[#allocation2 + $0xc0] sm:$0xff]
      %v1239 = vld [vmem:[#allocation2 + $0xc8] sm:$0xff]
      %v1240 = vld [vmem:[#allocation2 + $0xd0] sm:$0xff]
      %v1241 = vld [vmem:[#allocation2 + $0xd8] sm:$0xff]
      %v1242 = vld [vmem:[#allocation2 + $0xe0] sm:$0xff]
      %v1243 = vld [vmem:[#allocation2 + $0xe8] sm:$0xff]
      %v1244 = vld [vmem:[#allocation2 + $0xf0] sm:$0xff]
      %v1245 = vld [vmem:[#allocation2 + $0xf8] sm:$0xff]
      %s1246 = scalar_lea.vmem %s1, 128
      %v1247 = vld [vmem:[%s1246] sm:$0xf]
      %v1248 = vld [vmem:[%s1246 + $0x4] sm:$0xf]
      %v1249 = vld [vmem:[%s1246 + $0x8] sm:$0xf]
      %v1250 = vld [vmem:[%s1246 + $0xc] sm:$0xf]
      %v1251 = vld [vmem:[%s1246 + $0x10] sm:$0xf]
      %v1252 = vld [vmem:[%s1246 + $0x14] sm:$0xf]
      %v1253 = vld [vmem:[%s1246 + $0x18] sm:$0xf]
      %v1254 = vld [vmem:[%s1246 + $0x1c] sm:$0xf]
      %v1255 = vld [vmem:[%s1246 + $0x20] sm:$0xf]
      %v1256 = vld [vmem:[%s1246 + $0x24] sm:$0xf]
      %v1257 = vld [vmem:[%s1246 + $0x28] sm:$0xf]
      %v1258 = vld [vmem:[%s1246 + $0x2c] sm:$0xf]
      %v1259 = vld [vmem:[%s1246 + $0x30] sm:$0xf]
      %v1260 = vld [vmem:[%s1246 + $0x34] sm:$0xf]
      %v1261 = vld [vmem:[%s1246 + $0x38] sm:$0xf]
      %v1262 = vld [vmem:[%s1246 + $0x3c] sm:$0xf]
      %v1279 = vunpack.c.l.b16 %v1247
      %v1280 = vunpack.c.l.b16 %v1248
      %v1281 = vunpack.c.l.b16 %v1249
      %v1282 = vunpack.c.l.b16 %v1250
      %v1283 = vunpack.c.l.b16 %v1251
      %v1284 = vunpack.c.l.b16 %v1252
      %v1285 = vunpack.c.l.b16 %v1253
      %v1286 = vunpack.c.l.b16 %v1254
      %v1287 = vunpack.c.l.b16 %v1255
      %v1288 = vunpack.c.l.b16 %v1256
      %v1289 = vunpack.c.l.b16 %v1257
      %v1290 = vunpack.c.l.b16 %v1258
      %v1291 = vunpack.c.l.b16 %v1259
      %v1292 = vunpack.c.l.b16 %v1260
      %v1293 = vunpack.c.l.b16 %v1261
      %v1294 = vunpack.c.l.b16 %v1262
      %v1295 = vpack.c.b16 %v1280, %v1279
      %v1296 = vpack.c.b16 %v1282, %v1281
      %v1297 = vpack.c.b16 %v1284, %v1283
      %v1298 = vpack.c.b16 %v1286, %v1285
      %v1299 = vpack.c.b16 %v1288, %v1287
      %v1300 = vpack.c.b16 %v1290, %v1289
      %v1301 = vpack.c.b16 %v1292, %v1291
      %v1302 = vpack.c.b16 %v1294, %v1293
      %v1304 = vsel %vm589, %v1295, 0
      %v1307 = vsel %vm589, %v1296, 0
      %v1310 = vsel %vm589, %v1297, 0
      %v1313 = vsel %vm589, %v1298, 0
      %v1316 = vsel %vm589, %v1299, 0
      %v1319 = vsel %vm589, %v1300, 0
      %v1322 = vsel %vm589, %v1301, 0
      %v1325 = vsel %vm589, %v1302, 0
      %v1328 = vsel %vm614, %v1212, 0
      %v1331 = vsel %vm614, %v1213, 0
      %1333 = vmatprep.subr.bf16.mxu0 0
      %1334 = vmatpush1.bf16.msra.mxu0 0
      %1335 = vmatprep.subr.bf16.mxu0 0
      %1336 = vmatpush1.bf16.msra.mxu0 0
      %1337 = vmatprep.subr.bf16.mxu0 0
      %1338 = vmatpush1.bf16.msra.mxu0 0
      %1339 = vmatprep.subr.bf16.mxu0 0
      %1340 = vmatpush1.bf16.msra.mxu0 0
      %1341 = vmatprep.subr.bf16.mxu0 0
      %1342 = vmatpush1.bf16.msra.mxu0 0
      %1343 = vmatprep.subr.bf16.mxu0 %v1331
      %1344 = vmatpush1.bf16.msra.mxu0 %v1328
      %1345 = vmatprep.subr.bf16.mxu0 %v1211
      %1346 = vmatpush1.bf16.msra.mxu0 %v1210
      %1347 = vmatprep.subr.bf16.mxu0 %v1209
      %1348 = vmatpush1.bf16.msra.mxu0 %v1208
      %1349 = vmatprep.subr.bf16.mxu0 0
      %1350 = vmatpush2.bf16.msra.mxu0 0
      %1351 = vmatprep.subr.bf16.mxu0 0
      %1352 = vmatpush2.bf16.msra.mxu0 0
      %1353 = vmatprep.subr.bf16.mxu0 0
      %1354 = vmatpush2.bf16.msra.mxu0 0
      %1355 = vmatprep.subr.bf16.mxu0 0
      %1356 = vmatpush2.bf16.msra.mxu0 0
      %1357 = vmatprep.subr.bf16.mxu0 0
      %1358 = vmatpush2.bf16.msra.mxu0 0
      %1359 = vmatprep.subr.bf16.mxu0 0
      %1360 = vmatpush2.bf16.msra.mxu0 0
      %1361 = vmatprep.subr.bf16.mxu0 0
      %1362 = vmatpush2.bf16.msra.mxu0 0
      %1363 = vmatprep.subr.bf16.mxu0 0
      %1364 = vmatpush2.bf16.msra.mxu0 0
      %1365 = vmatprep.mubr.bf16.mxu0 0
      %1366 = vmatmul.mubr.bf16.gmra.mxu0 %v1304
      %v1367 = vpop.f32.mrf.mxu0
      %v1368 = vadd.f32 0.0, %v1367
      %v1369 = vpop.f32.mrf.mxu0
      %v1370 = vadd.f32 0.0, %v1369
      %v1371 = vpop.f32.mrf.mxu0
      %v1372 = vadd.f32 0.0, %v1371
      %v1373 = vpop.f32.mrf.mxu0
      %v1374 = vadd.f32 0.0, %v1373
      %1375 = vmatprep.mubr.bf16.mxu0 0
      %1376 = vmatmul.mubr.bf16.gmra.mxu0 %v1307
      %v1377 = vpop.f32.mrf.mxu0
      %v1378 = vadd.f32 0.0, %v1377
      %v1379 = vpop.f32.mrf.mxu0
      %v1380 = vadd.f32 0.0, %v1379
      %v1381 = vpop.f32.mrf.mxu0
      %v1382 = vadd.f32 0.0, %v1381
      %v1383 = vpop.f32.mrf.mxu0
      %v1384 = vadd.f32 0.0, %v1383
      %1385 = vmatprep.mubr.bf16.mxu0 0
      %1386 = vmatmul.mubr.bf16.gmra.mxu0 %v1310
      %v1387 = vpop.f32.mrf.mxu0
      %v1388 = vadd.f32 0.0, %v1387
      %v1389 = vpop.f32.mrf.mxu0
      %v1390 = vadd.f32 0.0, %v1389
      %v1391 = vpop.f32.mrf.mxu0
      %v1392 = vadd.f32 0.0, %v1391
      %v1393 = vpop.f32.mrf.mxu0
      %v1394 = vadd.f32 0.0, %v1393
      %1395 = vmatprep.mubr.bf16.mxu0 0
      %1396 = vmatmul.mubr.bf16.gmra.mxu0 %v1313
      %v1397 = vpop.f32.mrf.mxu0
      %v1398 = vadd.f32 0.0, %v1397
      %v1399 = vpop.f32.mrf.mxu0
      %v1400 = vadd.f32 0.0, %v1399
      %v1401 = vpop.f32.mrf.mxu0
      %v1402 = vadd.f32 0.0, %v1401
      %v1403 = vpop.f32.mrf.mxu0
      %v1404 = vadd.f32 0.0, %v1403
      %1405 = vmatprep.mubr.bf16.mxu0 0
      %1406 = vmatmul.mubr.bf16.gmra.mxu0 %v1316
      %v1407 = vpop.f32.mrf.mxu0
      %v1408 = vadd.f32 0.0, %v1407
      %v1409 = vpop.f32.mrf.mxu0
      %v1410 = vadd.f32 0.0, %v1409
      %v1411 = vpop.f32.mrf.mxu0
      %v1412 = vadd.f32 0.0, %v1411
      %v1413 = vpop.f32.mrf.mxu0
      %v1414 = vadd.f32 0.0, %v1413
      %1415 = vmatprep.mubr.bf16.mxu0 0
      %1416 = vmatmul.mubr.bf16.gmra.mxu0 %v1319
      %v1417 = vpop.f32.mrf.mxu0
      %v1418 = vadd.f32 0.0, %v1417
      %v1419 = vpop.f32.mrf.mxu0
      %v1420 = vadd.f32 0.0, %v1419
      %v1421 = vpop.f32.mrf.mxu0
      %v1422 = vadd.f32 0.0, %v1421
      %v1423 = vpop.f32.mrf.mxu0
      %v1424 = vadd.f32 0.0, %v1423
      %1425 = vmatprep.mubr.bf16.mxu0 0
      %1426 = vmatmul.mubr.bf16.gmra.mxu0 %v1322
      %v1427 = vpop.f32.mrf.mxu0
      %v1428 = vadd.f32 0.0, %v1427
      %v1429 = vpop.f32.mrf.mxu0
      %v1430 = vadd.f32 0.0, %v1429
      %v1431 = vpop.f32.mrf.mxu0
      %v1432 = vadd.f32 0.0, %v1431
      %v1433 = vpop.f32.mrf.mxu0
      %v1434 = vadd.f32 0.0, %v1433
      %1435 = vmatprep.mubr.bf16.mxu0 0
      %1436 = vmatmul.mubr.bf16.gmra.mxu0 %v1325
      %v1437 = vpop.f32.mrf.mxu0
      %v1438 = vadd.f32 0.0, %v1437
      %v1439 = vpop.f32.mrf.mxu0
      %v1440 = vadd.f32 0.0, %v1439
      %v1441 = vpop.f32.mrf.mxu0
      %v1442 = vadd.f32 0.0, %v1441
      %v1443 = vpop.f32.mrf.mxu0
      %v1444 = vadd.f32 0.0, %v1443
      %1445 = vdwg.mxu0
      %v1446 = vadd.f32 %v1214, %v1368
      %v1447 = vadd.f32 %v1215, %v1370
      %v1448 = vadd.f32 %v1216, %v1372
      %v1449 = vadd.f32 %v1217, %v1374
      %v1450 = vadd.f32 %v1218, %v1378
      %v1451 = vadd.f32 %v1219, %v1380
      %v1452 = vadd.f32 %v1220, %v1382
      %v1453 = vadd.f32 %v1221, %v1384
      %v1454 = vadd.f32 %v1222, %v1388
      %v1455 = vadd.f32 %v1223, %v1390
      %v1456 = vadd.f32 %v1224, %v1392
      %v1457 = vadd.f32 %v1225, %v1394
      %v1458 = vadd.f32 %v1226, %v1398
      %v1459 = vadd.f32 %v1227, %v1400
      %v1460 = vadd.f32 %v1228, %v1402
      %v1461 = vadd.f32 %v1229, %v1404
      %v1462 = vadd.f32 %v1230, %v1408
      %v1463 = vadd.f32 %v1231, %v1410
      %v1464 = vadd.f32 %v1232, %v1412
      %v1465 = vadd.f32 %v1233, %v1414
      %v1466 = vadd.f32 %v1234, %v1418
      %v1467 = vadd.f32 %v1235, %v1420
      %v1468 = vadd.f32 %v1236, %v1422
      %v1469 = vadd.f32 %v1237, %v1424
      %v1470 = vadd.f32 %v1238, %v1428
      %v1471 = vadd.f32 %v1239, %v1430
      %v1472 = vadd.f32 %v1240, %v1432
      %v1473 = vadd.f32 %v1241, %v1434
      %v1474 = vadd.f32 %v1242, %v1438
      %v1475 = vadd.f32 %v1243, %v1440
      %v1476 = vadd.f32 %v1244, %v1442
      %v1477 = vadd.f32 %v1245, %v1444
      %1478 = vst [vmem:[#allocation2] sm:$0xff] %v1446
      %1479 = vst [vmem:[#allocation2 + $0x8] sm:$0xff] %v1447
      %1480 = vst [vmem:[#allocation2 + $0x10] sm:$0xff] %v1448
      %1481 = vst [vmem:[#allocation2 + $0x18] sm:$0xff] %v1449
      %1482 = vst [vmem:[#allocation2 + $0x20] sm:$0xff] %v1450
      %1483 = vst [vmem:[#allocation2 + $0x28] sm:$0xff] %v1451
      %1484 = vst [vmem:[#allocation2 + $0x30] sm:$0xff] %v1452
      %1485 = vst [vmem:[#allocation2 + $0x38] sm:$0xff] %v1453
      %1486 = vst [vmem:[#allocation2 + $0x40] sm:$0xff] %v1454
      %1487 = vst [vmem:[#allocation2 + $0x48] sm:$0xff] %v1455
      %1488 = vst [vmem:[#allocation2 + $0x50] sm:$0xff] %v1456
      %1489 = vst [vmem:[#allocation2 + $0x58] sm:$0xff] %v1457
      %1490 = vst [vmem:[#allocation2 + $0x60] sm:$0xff] %v1458
      %1491 = vst [vmem:[#allocation2 + $0x68] sm:$0xff] %v1459
      %1492 = vst [vmem:[#allocation2 + $0x70] sm:$0xff] %v1460
      %1493 = vst [vmem:[#allocation2 + $0x78] sm:$0xff] %v1461
      %1494 = vst [vmem:[#allocation2 + $0x80] sm:$0xff] %v1462
      %1495 = vst [vmem:[#allocation2 + $0x88] sm:$0xff] %v1463
      %1496 = vst [vmem:[#allocation2 + $0x90] sm:$0xff] %v1464
      %1497 = vst [vmem:[#allocation2 + $0x98] sm:$0xff] %v1465
      %1498 = vst [vmem:[#allocation2 + $0xa0] sm:$0xff] %v1466
      %1499 = vst [vmem:[#allocation2 + $0xa8] sm:$0xff] %v1467
      %1500 = vst [vmem:[#allocation2 + $0xb0] sm:$0xff] %v1468
      %1501 = vst [vmem:[#allocation2 + $0xb8] sm:$0xff] %v1469
      %1502 = vst [vmem:[#allocation2 + $0xc0] sm:$0xff] %v1470
      %1503 = vst [vmem:[#allocation2 + $0xc8] sm:$0xff] %v1471
      %1504 = vst [vmem:[#allocation2 + $0xd0] sm:$0xff] %v1472
      %1505 = vst [vmem:[#allocation2 + $0xd8] sm:$0xff] %v1473
      %1506 = vst [vmem:[#allocation2 + $0xe0] sm:$0xff] %v1474
      %1507 = vst [vmem:[#allocation2 + $0xe8] sm:$0xff] %v1475
      %1508 = vst [vmem:[#allocation2 + $0xf0] sm:$0xff] %v1476
      %1509 = vst [vmem:[#allocation2 + $0xf8] sm:$0xff] %v1477
      %1510 = vrot.lane.b32.xlu0 %v286, 1
      %v1511 = vpop.permute.xlu0 %1510
      %1512 = vrot.lane.b32.xlu0 %v288, 1
      %v1513 = vpop.permute.xlu0 %1512
      %1514 = vrot.lane.b32.xlu0 %v290, 1
      %v1515 = vpop.permute.xlu0 %1514
      %1516 = vrot.lane.b32.xlu0 %v292, 1
      %v1517 = vpop.permute.xlu0 %1516
      %1518 = vrot.lane.b32.xlu0 %v294, 1
      %v1519 = vpop.permute.xlu0 %1518
      %1520 = vrot.lane.b32.xlu0 %v287, 1
      %v1521 = vpop.permute.xlu0 %1520
      %1522 = vrot.lane.b32.xlu0 %v289, 1
      %v1523 = vpop.permute.xlu0 %1522
      %1524 = vrot.lane.b32.xlu0 %v291, 1
      %v1525 = vpop.permute.xlu0 %1524
      %1526 = vrot.lane.b32.xlu0 %v293, 1
      %v1527 = vpop.permute.xlu0 %1526
      %1528 = vrot.lane.b32.xlu0 %v295, 1
      %v1529 = vpop.permute.xlu0 %1528
      %vm1530 = vcmp.lt.s32.totalorder %v461, 1
      %v1531 = vsel %vm1530, %v1511, %v1521
      %v1532 = vsel %vm1530, %v1513, %v1523
      %v1533 = vsel %vm1530, %v1515, %v1525
      %v1534 = vsel %vm1530, %v1517, %v1527
      %v1535 = vsel %vm1530, %v1519, %v1529
      %v1536 = vsel %vm1530, %v1521, %v1511
      %v1537 = vsel %vm1530, %v1523, %v1513
      %v1538 = vsel %vm1530, %v1525, %v1515
      %v1539 = vsel %vm1530, %v1527, %v1517
      %v1540 = vsel %vm1530, %v1529, %v1519
      %s1541 = scalar_lea.vmem %s2, 6
      %v1542 = vld [vmem:[%s1541] sm:$0x3]
      %v1544 = vlaneseq
      %v1545 = vshrl.u32 %v1544, 7
      %v1546 = vsub.s32 0, %v1545
      %v1547 = vrot.slane %v1542, %v1546
      %v1548 = vlaneseq
      %v1549 = vshrl.u32 %v1548, 7
      %v1550 = vsub.s32 1, %v1549
      %v1551 = vrot.slane %v1542, %v1550
      %v1554 = vmul.f32 %v1536, %v1547
      %v1555 = vmul.f32 %v1531, %v1551
      %v1556 = vmul.f32 %v1537, %v1547
      %v1557 = vmul.f32 %v1532, %v1551
      %v1558 = vmul.f32 %v1538, %v1547
      %v1559 = vmul.f32 %v1533, %v1551
      %v1560 = vmul.f32 %v1539, %v1547
      %v1561 = vmul.f32 %v1534, %v1551
      %v1562 = vmul.f32 %v1540, %v1547
      %v1563 = vmul.f32 %v1535, %v1551
      %v1564 = vpack.c.bf16 %v1556, %v1554
      %v1565 = vpack.c.bf16 %v1557, %v1555
      %v1566 = vpack.c.bf16 %v1560, %v1558
      %v1567 = vpack.c.bf16 %v1561, %v1559
      %v1568 = vpack.c.bf16 %v1562, %v1562
      %v1569 = vpack.c.bf16 %v1563, %v1563
      %v1570 = vld [vmem:[#allocation2] sm:$0xff]
      %v1571 = vld [vmem:[#allocation2 + $0x8] sm:$0xff]
      %v1572 = vld [vmem:[#allocation2 + $0x10] sm:$0xff]
      %v1573 = vld [vmem:[#allocation2 + $0x18] sm:$0xff]
      %v1574 = vld [vmem:[#allocation2 + $0x20] sm:$0xff]
      %v1575 = vld [vmem:[#allocation2 + $0x28] sm:$0xff]
      %v1576 = vld [vmem:[#allocation2 + $0x30] sm:$0xff]
      %v1577 = vld [vmem:[#allocation2 + $0x38] sm:$0xff]
      %v1578 = vld [vmem:[#allocation2 + $0x40] sm:$0xff]
      %v1579 = vld [vmem:[#allocation2 + $0x48] sm:$0xff]
      %v1580 = vld [vmem:[#allocation2 + $0x50] sm:$0xff]
      %v1581 = vld [vmem:[#allocation2 + $0x58] sm:$0xff]
      %v1582 = vld [vmem:[#allocation2 + $0x60] sm:$0xff]
      %v1583 = vld [vmem:[#allocation2 + $0x68] sm:$0xff]
      %v1584 = vld [vmem:[#allocation2 + $0x70] sm:$0xff]
      %v1585 = vld [vmem:[#allocation2 + $0x78] sm:$0xff]
      %v1586 = vld [vmem:[#allocation2 + $0x80] sm:$0xff]
      %v1587 = vld [vmem:[#allocation2 + $0x88] sm:$0xff]
      %v1588 = vld [vmem:[#allocation2 + $0x90] sm:$0xff]
      %v1589 = vld [vmem:[#allocation2 + $0x98] sm:$0xff]
      %v1590 = vld [vmem:[#allocation2 + $0xa0] sm:$0xff]
      %v1591 = vld [vmem:[#allocation2 + $0xa8] sm:$0xff]
      %v1592 = vld [vmem:[#allocation2 + $0xb0] sm:$0xff]
      %v1593 = vld [vmem:[#allocation2 + $0xb8] sm:$0xff]
      %v1594 = vld [vmem:[#allocation2 + $0xc0] sm:$0xff]
      %v1595 = vld [vmem:[#allocation2 + $0xc8] sm:$0xff]
      %v1596 = vld [vmem:[#allocation2 + $0xd0] sm:$0xff]
      %v1597 = vld [vmem:[#allocation2 + $0xd8] sm:$0xff]
      %v1598 = vld [vmem:[#allocation2 + $0xe0] sm:$0xff]
      %v1599 = vld [vmem:[#allocation2 + $0xe8] sm:$0xff]
      %v1600 = vld [vmem:[#allocation2 + $0xf0] sm:$0xff]
      %v1601 = vld [vmem:[#allocation2 + $0xf8] sm:$0xff]
      %s1602 = scalar_lea.vmem %s1, 192
      %v1603 = vld [vmem:[%s1602] sm:$0xf]
      %v1604 = vld [vmem:[%s1602 + $0x4] sm:$0xf]
      %v1605 = vld [vmem:[%s1602 + $0x8] sm:$0xf]
      %v1606 = vld [vmem:[%s1602 + $0xc] sm:$0xf]
      %v1607 = vld [vmem:[%s1602 + $0x10] sm:$0xf]
      %v1608 = vld [vmem:[%s1602 + $0x14] sm:$0xf]
      %v1609 = vld [vmem:[%s1602 + $0x18] sm:$0xf]
      %v1610 = vld [vmem:[%s1602 + $0x1c] sm:$0xf]
      %v1611 = vld [vmem:[%s1602 + $0x20] sm:$0xf]
      %v1612 = vld [vmem:[%s1602 + $0x24] sm:$0xf]
      %v1613 = vld [vmem:[%s1602 + $0x28] sm:$0xf]
      %v1614 = vld [vmem:[%s1602 + $0x2c] sm:$0xf]
      %v1615 = vld [vmem:[%s1602 + $0x30] sm:$0xf]
      %v1616 = vld [vmem:[%s1602 + $0x34] sm:$0xf]
      %v1617 = vld [vmem:[%s1602 + $0x38] sm:$0xf]
      %v1618 = vld [vmem:[%s1602 + $0x3c] sm:$0xf]
      %v1635 = vunpack.c.l.b16 %v1603
      %v1636 = vunpack.c.l.b16 %v1604
      %v1637 = vunpack.c.l.b16 %v1605
      %v1638 = vunpack.c.l.b16 %v1606
      %v1639 = vunpack.c.l.b16 %v1607
      %v1640 = vunpack.c.l.b16 %v1608
      %v1641 = vunpack.c.l.b16 %v1609
      %v1642 = vunpack.c.l.b16 %v1610
      %v1643 = vunpack.c.l.b16 %v1611
      %v1644 = vunpack.c.l.b16 %v1612
      %v1645 = vunpack.c.l.b16 %v1613
      %v1646 = vunpack.c.l.b16 %v1614
      %v1647 = vunpack.c.l.b16 %v1615
      %v1648 = vunpack.c.l.b16 %v1616
      %v1649 = vunpack.c.l.b16 %v1617
      %v1650 = vunpack.c.l.b16 %v1618
      %v1651 = vpack.c.b16 %v1636, %v1635
      %v1652 = vpack.c.b16 %v1638, %v1637
      %v1653 = vpack.c.b16 %v1640, %v1639
      %v1654 = vpack.c.b16 %v1642, %v1641
      %v1655 = vpack.c.b16 %v1644, %v1643
      %v1656 = vpack.c.b16 %v1646, %v1645
      %v1657 = vpack.c.b16 %v1648, %v1647
      %v1658 = vpack.c.b16 %v1650, %v1649
      %v1660 = vsel %vm589, %v1651, 0
      %v1663 = vsel %vm589, %v1652, 0
      %v1666 = vsel %vm589, %v1653, 0
      %v1669 = vsel %vm589, %v1654, 0
      %v1672 = vsel %vm589, %v1655, 0
      %v1675 = vsel %vm589, %v1656, 0
      %v1678 = vsel %vm589, %v1657, 0
      %v1681 = vsel %vm589, %v1658, 0
      %v1684 = vsel %vm614, %v1568, 0
      %v1687 = vsel %vm614, %v1569, 0
      %1689 = vmatprep.subr.bf16.mxu0 0
      %1690 = vmatpush1.bf16.msra.mxu0 0
      %1691 = vmatprep.subr.bf16.mxu0 0
      %1692 = vmatpush1.bf16.msra.mxu0 0
      %1693 = vmatprep.subr.bf16.mxu0 0
      %1694 = vmatpush1.bf16.msra.mxu0 0
      %1695 = vmatprep.subr.bf16.mxu0 0
      %1696 = vmatpush1.bf16.msra.mxu0 0
      %1697 = vmatprep.subr.bf16.mxu0 0
      %1698 = vmatpush1.bf16.msra.mxu0 0
      %1699 = vmatprep.subr.bf16.mxu0 %v1687
      %1700 = vmatpush1.bf16.msra.mxu0 %v1684
      %1701 = vmatprep.subr.bf16.mxu0 %v1567
      %1702 = vmatpush1.bf16.msra.mxu0 %v1566
      %1703 = vmatprep.subr.bf16.mxu0 %v1565
      %1704 = vmatpush1.bf16.msra.mxu0 %v1564
      %1705 = vmatprep.subr.bf16.mxu0 0
      %1706 = vmatpush2.bf16.msra.mxu0 0
      %1707 = vmatprep.subr.bf16.mxu0 0
      %1708 = vmatpush2.bf16.msra.mxu0 0
      %1709 = vmatprep.subr.bf16.mxu0 0
      %1710 = vmatpush2.bf16.msra.mxu0 0
      %1711 = vmatprep.subr.bf16.mxu0 0
      %1712 = vmatpush2.bf16.msra.mxu0 0
      %1713 = vmatprep.subr.bf16.mxu0 0
      %1714 = vmatpush2.bf16.msra.mxu0 0
      %1715 = vmatprep.subr.bf16.mxu0 0
      %1716 = vmatpush2.bf16.msra.mxu0 0
      %1717 = vmatprep.subr.bf16.mxu0 0
      %1718 = vmatpush2.bf16.msra.mxu0 0
      %1719 = vmatprep.subr.bf16.mxu0 0
      %1720 = vmatpush2.bf16.msra.mxu0 0
      %1721 = vmatprep.mubr.bf16.mxu0 0
      %1722 = vmatmul.mubr.bf16.gmra.mxu0 %v1660
      %v1723 = vpop.f32.mrf.mxu0
      %v1724 = vadd.f32 0.0, %v1723
      %v1725 = vpop.f32.mrf.mxu0
      %v1726 = vadd.f32 0.0, %v1725
      %v1727 = vpop.f32.mrf.mxu0
      %v1728 = vadd.f32 0.0, %v1727
      %v1729 = vpop.f32.mrf.mxu0
      %v1730 = vadd.f32 0.0, %v1729
      %1731 = vmatprep.mubr.bf16.mxu0 0
      %1732 = vmatmul.mubr.bf16.gmra.mxu0 %v1663
      %v1733 = vpop.f32.mrf.mxu0
      %v1734 = vadd.f32 0.0, %v1733
      %v1735 = vpop.f32.mrf.mxu0
      %v1736 = vadd.f32 0.0, %v1735
      %v1737 = vpop.f32.mrf.mxu0
      %v1738 = vadd.f32 0.0, %v1737
      %v1739 = vpop.f32.mrf.mxu0
      %v1740 = vadd.f32 0.0, %v1739
      %1741 = vmatprep.mubr.bf16.mxu0 0
      %1742 = vmatmul.mubr.bf16.gmra.mxu0 %v1666
      %v1743 = vpop.f32.mrf.mxu0
      %v1744 = vadd.f32 0.0, %v1743
      %v1745 = vpop.f32.mrf.mxu0
      %v1746 = vadd.f32 0.0, %v1745
      %v1747 = vpop.f32.mrf.mxu0
      %v1748 = vadd.f32 0.0, %v1747
      %v1749 = vpop.f32.mrf.mxu0
      %v1750 = vadd.f32 0.0, %v1749
      %1751 = vmatprep.mubr.bf16.mxu0 0
      %1752 = vmatmul.mubr.bf16.gmra.mxu0 %v1669
      %v1753 = vpop.f32.mrf.mxu0
      %v1754 = vadd.f32 0.0, %v1753
      %v1755 = vpop.f32.mrf.mxu0
      %v1756 = vadd.f32 0.0, %v1755
      %v1757 = vpop.f32.mrf.mxu0
      %v1758 = vadd.f32 0.0, %v1757
      %v1759 = vpop.f32.mrf.mxu0
      %v1760 = vadd.f32 0.0, %v1759
      %1761 = vmatprep.mubr.bf16.mxu0 0
      %1762 = vmatmul.mubr.bf16.gmra.mxu0 %v1672
      %v1763 = vpop.f32.mrf.mxu0
      %v1764 = vadd.f32 0.0, %v1763
      %v1765 = vpop.f32.mrf.mxu0
      %v1766 = vadd.f32 0.0, %v1765
      %v1767 = vpop.f32.mrf.mxu0
      %v1768 = vadd.f32 0.0, %v1767
      %v1769 = vpop.f32.mrf.mxu0
      %v1770 = vadd.f32 0.0, %v1769
      %1771 = vmatprep.mubr.bf16.mxu0 0
      %1772 = vmatmul.mubr.bf16.gmra.mxu0 %v1675
      %v1773 = vpop.f32.mrf.mxu0
      %v1774 = vadd.f32 0.0, %v1773
      %v1775 = vpop.f32.mrf.mxu0
      %v1776 = vadd.f32 0.0, %v1775
      %v1777 = vpop.f32.mrf.mxu0
      %v1778 = vadd.f32 0.0, %v1777
      %v1779 = vpop.f32.mrf.mxu0
      %v1780 = vadd.f32 0.0, %v1779
      %1781 = vmatprep.mubr.bf16.mxu0 0
      %1782 = vmatmul.mubr.bf16.gmra.mxu0 %v1678
      %v1783 = vpop.f32.mrf.mxu0
      %v1784 = vadd.f32 0.0, %v1783
      %v1785 = vpop.f32.mrf.mxu0
      %v1786 = vadd.f32 0.0, %v1785
      %v1787 = vpop.f32.mrf.mxu0
      %v1788 = vadd.f32 0.0, %v1787
      %v1789 = vpop.f32.mrf.mxu0
      %v1790 = vadd.f32 0.0, %v1789
      %1791 = vmatprep.mubr.bf16.mxu0 0
      %1792 = vmatmul.mubr.bf16.gmra.mxu0 %v1681
      %v1793 = vpop.f32.mrf.mxu0
      %v1794 = vadd.f32 0.0, %v1793
      %v1795 = vpop.f32.mrf.mxu0
      %v1796 = vadd.f32 0.0, %v1795
      %v1797 = vpop.f32.mrf.mxu0
      %v1798 = vadd.f32 0.0, %v1797
      %v1799 = vpop.f32.mrf.mxu0
      %v1800 = vadd.f32 0.0, %v1799
      %1801 = vdwg.mxu0
      %v1802 = vadd.f32 %v1570, %v1724
      %v1803 = vadd.f32 %v1571, %v1726
      %v1804 = vadd.f32 %v1572, %v1728
      %v1805 = vadd.f32 %v1573, %v1730
      %v1806 = vadd.f32 %v1574, %v1734
      %v1807 = vadd.f32 %v1575, %v1736
      %v1808 = vadd.f32 %v1576, %v1738
      %v1809 = vadd.f32 %v1577, %v1740
      %v1810 = vadd.f32 %v1578, %v1744
      %v1811 = vadd.f32 %v1579, %v1746
      %v1812 = vadd.f32 %v1580, %v1748
      %v1813 = vadd.f32 %v1581, %v1750
      %v1814 = vadd.f32 %v1582, %v1754
      %v1815 = vadd.f32 %v1583, %v1756
      %v1816 = vadd.f32 %v1584, %v1758
      %v1817 = vadd.f32 %v1585, %v1760
      %v1818 = vadd.f32 %v1586, %v1764
      %v1819 = vadd.f32 %v1587, %v1766
      %v1820 = vadd.f32 %v1588, %v1768
      %v1821 = vadd.f32 %v1589, %v1770
      %v1822 = vadd.f32 %v1590, %v1774
      %v1823 = vadd.f32 %v1591, %v1776
      %v1824 = vadd.f32 %v1592, %v1778
      %v1825 = vadd.f32 %v1593, %v1780
      %v1826 = vadd.f32 %v1594, %v1784
      %v1827 = vadd.f32 %v1595, %v1786
      %v1828 = vadd.f32 %v1596, %v1788
      %v1829 = vadd.f32 %v1597, %v1790
      %v1830 = vadd.f32 %v1598, %v1794
      %v1831 = vadd.f32 %v1599, %v1796
      %v1832 = vadd.f32 %v1600, %v1798
      %v1833 = vadd.f32 %v1601, %v1800
      %1834 = vst [vmem:[#allocation2] sm:$0xff] %v1802
      %1835 = vst [vmem:[#allocation2 + $0x8] sm:$0xff] %v1803
      %1836 = vst [vmem:[#allocation2 + $0x10] sm:$0xff] %v1804
      %1837 = vst [vmem:[#allocation2 + $0x18] sm:$0xff] %v1805
      %1838 = vst [vmem:[#allocation2 + $0x20] sm:$0xff] %v1806
      %1839 = vst [vmem:[#allocation2 + $0x28] sm:$0xff] %v1807
      %1840 = vst [vmem:[#allocation2 + $0x30] sm:$0xff] %v1808
      %1841 = vst [vmem:[#allocation2 + $0x38] sm:$0xff] %v1809
      %1842 = vst [vmem:[#allocation2 + $0x40] sm:$0xff] %v1810
      %1843 = vst [vmem:[#allocation2 + $0x48] sm:$0xff] %v1811
      %1844 = vst [vmem:[#allocation2 + $0x50] sm:$0xff] %v1812
      %1845 = vst [vmem:[#allocation2 + $0x58] sm:$0xff] %v1813
      %1846 = vst [vmem:[#allocation2 + $0x60] sm:$0xff] %v1814
      %1847 = vst [vmem:[#allocation2 + $0x68] sm:$0xff] %v1815
      %1848 = vst [vmem:[#allocation2 + $0x70] sm:$0xff] %v1816
      %1849 = vst [vmem:[#allocation2 + $0x78] sm:$0xff] %v1817
      %1850 = vst [vmem:[#allocation2 + $0x80] sm:$0xff] %v1818
      %1851 = vst [vmem:[#allocation2 + $0x88] sm:$0xff] %v1819
      %1852 = vst [vmem:[#allocation2 + $0x90] sm:$0xff] %v1820
      %1853 = vst [vmem:[#allocation2 + $0x98] sm:$0xff] %v1821
      %1854 = vst [vmem:[#allocation2 + $0xa0] sm:$0xff] %v1822
      %1855 = vst [vmem:[#allocation2 + $0xa8] sm:$0xff] %v1823
      %1856 = vst [vmem:[#allocation2 + $0xb0] sm:$0xff] %v1824
      %1857 = vst [vmem:[#allocation2 + $0xb8] sm:$0xff] %v1825
      %1858 = vst [vmem:[#allocation2 + $0xc0] sm:$0xff] %v1826
      %1859 = vst [vmem:[#allocation2 + $0xc8] sm:$0xff] %v1827
      %1860 = vst [vmem:[#allocation2 + $0xd0] sm:$0xff] %v1828
      %1861 = vst [vmem:[#allocation2 + $0xd8] sm:$0xff] %v1829
      %1862 = vst [vmem:[#allocation2 + $0xe0] sm:$0xff] %v1830
      %1863 = vst [vmem:[#allocation2 + $0xe8] sm:$0xff] %v1831
      %1864 = vst [vmem:[#allocation2 + $0xf0] sm:$0xff] %v1832
      %1865 = vst [vmem:[#allocation2 + $0xf8] sm:$0xff] %v1833
      %s1866 = scalar_lea.vmem %s2, 8
      %v1867 = vld [vmem:[%s1866] sm:$0x3]
      %v1869 = vlaneseq
      %v1870 = vshrl.u32 %v1869, 7
      %v1871 = vsub.s32 0, %v1870
      %v1872 = vrot.slane %v1867, %v1871
      %v1873 = vlaneseq
      %v1874 = vshrl.u32 %v1873, 7
      %v1875 = vsub.s32 1, %v1874
      %v1876 = vrot.slane %v1867, %v1875
      %v1879 = vmul.f32 %v286, %v1872
      %v1880 = vmul.f32 %v287, %v1876
      %v1881 = vmul.f32 %v288, %v1872
      %v1882 = vmul.f32 %v289, %v1876
      %v1883 = vmul.f32 %v290, %v1872
      %v1884 = vmul.f32 %v291, %v1876
      %v1885 = vmul.f32 %v292, %v1872
      %v1886 = vmul.f32 %v293, %v1876
      %v1887 = vmul.f32 %v294, %v1872
      %v1888 = vmul.f32 %v295, %v1876
      %v1889 = vpack.c.bf16 %v1881, %v1879
      %v1890 = vpack.c.bf16 %v1882, %v1880
      %v1891 = vpack.c.bf16 %v1885, %v1883
      %v1892 = vpack.c.bf16 %v1886, %v1884
      %v1893 = vpack.c.bf16 %v1887, %v1887
      %v1894 = vpack.c.bf16 %v1888, %v1888
      %v1895 = vld [vmem:[#allocation2] sm:$0xff]
      %v1896 = vld [vmem:[#allocation2 + $0x8] sm:$0xff]
      %v1897 = vld [vmem:[#allocation2 + $0x10] sm:$0xff]
      %v1898 = vld [vmem:[#allocation2 + $0x18] sm:$0xff]
      %v1899 = vld [vmem:[#allocation2 + $0x20] sm:$0xff]
      %v1900 = vld [vmem:[#allocation2 + $0x28] sm:$0xff]
      %v1901 = vld [vmem:[#allocation2 + $0x30] sm:$0xff]
      %v1902 = vld [vmem:[#allocation2 + $0x38] sm:$0xff]
      %v1903 = vld [vmem:[#allocation2 + $0x40] sm:$0xff]
      %v1904 = vld [vmem:[#allocation2 + $0x48] sm:$0xff]
      %v1905 = vld [vmem:[#allocation2 + $0x50] sm:$0xff]
      %v1906 = vld [vmem:[#allocation2 + $0x58] sm:$0xff]
      %v1907 = vld [vmem:[#allocation2 + $0x60] sm:$0xff]
      %v1908 = vld [vmem:[#allocation2 + $0x68] sm:$0xff]
      %v1909 = vld [vmem:[#allocation2 + $0x70] sm:$0xff]
      %v1910 = vld [vmem:[#allocation2 + $0x78] sm:$0xff]
      %v1911 = vld [vmem:[#allocation2 + $0x80] sm:$0xff]
      %v1912 = vld [vmem:[#allocation2 + $0x88] sm:$0xff]
      %v1913 = vld [vmem:[#allocation2 + $0x90] sm:$0xff]
      %v1914 = vld [vmem:[#allocation2 + $0x98] sm:$0xff]
      %v1915 = vld [vmem:[#allocation2 + $0xa0] sm:$0xff]
      %v1916 = vld [vmem:[#allocation2 + $0xa8] sm:$0xff]
      %v1917 = vld [vmem:[#allocation2 + $0xb0] sm:$0xff]
      %v1918 = vld [vmem:[#allocation2 + $0xb8] sm:$0xff]
      %v1919 = vld [vmem:[#allocation2 + $0xc0] sm:$0xff]
      %v1920 = vld [vmem:[#allocation2 + $0xc8] sm:$0xff]
      %v1921 = vld [vmem:[#allocation2 + $0xd0] sm:$0xff]
      %v1922 = vld [vmem:[#allocation2 + $0xd8] sm:$0xff]
      %v1923 = vld [vmem:[#allocation2 + $0xe0] sm:$0xff]
      %v1924 = vld [vmem:[#allocation2 + $0xe8] sm:$0xff]
      %v1925 = vld [vmem:[#allocation2 + $0xf0] sm:$0xff]
      %v1926 = vld [vmem:[#allocation2 + $0xf8] sm:$0xff]
      %s1927 = scalar_lea.vmem %s1, 256
      %v1928 = vld [vmem:[%s1927] sm:$0xf]
      %v1929 = vld [vmem:[%s1927 + $0x4] sm:$0xf]
      %v1930 = vld [vmem:[%s1927 + $0x8] sm:$0xf]
      %v1931 = vld [vmem:[%s1927 + $0xc] sm:$0xf]
      %v1932 = vld [vmem:[%s1927 + $0x10] sm:$0xf]
      %v1933 = vld [vmem:[%s1927 + $0x14] sm:$0xf]
      %v1934 = vld [vmem:[%s1927 + $0x18] sm:$0xf]
      %v1935 = vld [vmem:[%s1927 + $0x1c] sm:$0xf]
      %v1936 = vld [vmem:[%s1927 + $0x20] sm:$0xf]
      %v1937 = vld [vmem:[%s1927 + $0x24] sm:$0xf]
      %v1938 = vld [vmem:[%s1927 + $0x28] sm:$0xf]
      %v1939 = vld [vmem:[%s1927 + $0x2c] sm:$0xf]
      %v1940 = vld [vmem:[%s1927 + $0x30] sm:$0xf]
      %v1941 = vld [vmem:[%s1927 + $0x34] sm:$0xf]
      %v1942 = vld [vmem:[%s1927 + $0x38] sm:$0xf]
      %v1943 = vld [vmem:[%s1927 + $0x3c] sm:$0xf]
      %v1960 = vunpack.c.l.b16 %v1928
      %v1961 = vunpack.c.l.b16 %v1929
      %v1962 = vunpack.c.l.b16 %v1930
      %v1963 = vunpack.c.l.b16 %v1931
      %v1964 = vunpack.c.l.b16 %v1932
      %v1965 = vunpack.c.l.b16 %v1933
      %v1966 = vunpack.c.l.b16 %v1934
      %v1967 = vunpack.c.l.b16 %v1935
      %v1968 = vunpack.c.l.b16 %v1936
      %v1969 = vunpack.c.l.b16 %v1937
      %v1970 = vunpack.c.l.b16 %v1938
      %v1971 = vunpack.c.l.b16 %v1939
      %v1972 = vunpack.c.l.b16 %v1940
      %v1973 = vunpack.c.l.b16 %v1941
      %v1974 = vunpack.c.l.b16 %v1942
      %v1975 = vunpack.c.l.b16 %v1943
      %v1976 = vpack.c.b16 %v1961, %v1960
      %v1977 = vpack.c.b16 %v1963, %v1962
      %v1978 = vpack.c.b16 %v1965, %v1964
      %v1979 = vpack.c.b16 %v1967, %v1966
      %v1980 = vpack.c.b16 %v1969, %v1968
      %v1981 = vpack.c.b16 %v1971, %v1970
      %v1982 = vpack.c.b16 %v1973, %v1972
      %v1983 = vpack.c.b16 %v1975, %v1974
      %v1985 = vsel %vm589, %v1976, 0
      %v1988 = vsel %vm589, %v1977, 0
      %v1991 = vsel %vm589, %v1978, 0
      %v1994 = vsel %vm589, %v1979, 0
      %v1997 = vsel %vm589, %v1980, 0
      %v2000 = vsel %vm589, %v1981, 0
      %v2003 = vsel %vm589, %v1982, 0
      %v2006 = vsel %vm589, %v1983, 0
      %v2009 = vsel %vm614, %v1893, 0
      %v2012 = vsel %vm614, %v1894, 0
      %2014 = vmatprep.subr.bf16.mxu0 0
      %2015 = vmatpush1.bf16.msra.mxu0 0
      %2016 = vmatprep.subr.bf16.mxu0 0
      %2017 = vmatpush1.bf16.msra.mxu0 0
      %2018 = vmatprep.subr.bf16.mxu0 0
      %2019 = vmatpush1.bf16.msra.mxu0 0
      %2020 = vmatprep.subr.bf16.mxu0 0
      %2021 = vmatpush1.bf16.msra.mxu0 0
      %2022 = vmatprep.subr.bf16.mxu0 0
      %2023 = vmatpush1.bf16.msra.mxu0 0
      %2024 = vmatprep.subr.bf16.mxu0 %v2012
      %2025 = vmatpush1.bf16.msra.mxu0 %v2009
      %2026 = vmatprep.subr.bf16.mxu0 %v1892
      %2027 = vmatpush1.bf16.msra.mxu0 %v1891
      %2028 = vmatprep.subr.bf16.mxu0 %v1890
      %2029 = vmatpush1.bf16.msra.mxu0 %v1889
      %2030 = vmatprep.subr.bf16.mxu0 0
      %2031 = vmatpush2.bf16.msra.mxu0 0
      %2032 = vmatprep.subr.bf16.mxu0 0
      %2033 = vmatpush2.bf16.msra.mxu0 0
      %2034 = vmatprep.subr.bf16.mxu0 0
      %2035 = vmatpush2.bf16.msra.mxu0 0
      %2036 = vmatprep.subr.bf16.mxu0 0
      %2037 = vmatpush2.bf16.msra.mxu0 0
      %2038 = vmatprep.subr.bf16.mxu0 0
      %2039 = vmatpush2.bf16.msra.mxu0 0
      %2040 = vmatprep.subr.bf16.mxu0 0
      %2041 = vmatpush2.bf16.msra.mxu0 0
      %2042 = vmatprep.subr.bf16.mxu0 0
      %2043 = vmatpush2.bf16.msra.mxu0 0
      %2044 = vmatprep.subr.bf16.mxu0 0
      %2045 = vmatpush2.bf16.msra.mxu0 0
      %2046 = vmatprep.mubr.bf16.mxu0 0
      %2047 = vmatmul.mubr.bf16.gmra.mxu0 %v1985
      %v2048 = vpop.f32.mrf.mxu0
      %v2049 = vadd.f32 0.0, %v2048
      %v2050 = vpop.f32.mrf.mxu0
      %v2051 = vadd.f32 0.0, %v2050
      %v2052 = vpop.f32.mrf.mxu0
      %v2053 = vadd.f32 0.0, %v2052
      %v2054 = vpop.f32.mrf.mxu0
      %v2055 = vadd.f32 0.0, %v2054
      %2056 = vmatprep.mubr.bf16.mxu0 0
      %2057 = vmatmul.mubr.bf16.gmra.mxu0 %v1988
      %v2058 = vpop.f32.mrf.mxu0
      %v2059 = vadd.f32 0.0, %v2058
      %v2060 = vpop.f32.mrf.mxu0
      %v2061 = vadd.f32 0.0, %v2060
      %v2062 = vpop.f32.mrf.mxu0
      %v2063 = vadd.f32 0.0, %v2062
      %v2064 = vpop.f32.mrf.mxu0
      %v2065 = vadd.f32 0.0, %v2064
      %2066 = vmatprep.mubr.bf16.mxu0 0
      %2067 = vmatmul.mubr.bf16.gmra.mxu0 %v1991
      %v2068 = vpop.f32.mrf.mxu0
      %v2069 = vadd.f32 0.0, %v2068
      %v2070 = vpop.f32.mrf.mxu0
      %v2071 = vadd.f32 0.0, %v2070
      %v2072 = vpop.f32.mrf.mxu0
      %v2073 = vadd.f32 0.0, %v2072
      %v2074 = vpop.f32.mrf.mxu0
      %v2075 = vadd.f32 0.0, %v2074
      %2076 = vmatprep.mubr.bf16.mxu0 0
      %2077 = vmatmul.mubr.bf16.gmra.mxu0 %v1994
      %v2078 = vpop.f32.mrf.mxu0
      %v2079 = vadd.f32 0.0, %v2078
      %v2080 = vpop.f32.mrf.mxu0
      %v2081 = vadd.f32 0.0, %v2080
      %v2082 = vpop.f32.mrf.mxu0
      %v2083 = vadd.f32 0.0, %v2082
      %v2084 = vpop.f32.mrf.mxu0
      %v2085 = vadd.f32 0.0, %v2084
      %2086 = vmatprep.mubr.bf16.mxu0 0
      %2087 = vmatmul.mubr.bf16.gmra.mxu0 %v1997
      %v2088 = vpop.f32.mrf.mxu0
      %v2089 = vadd.f32 0.0, %v2088
      %v2090 = vpop.f32.mrf.mxu0
      %v2091 = vadd.f32 0.0, %v2090
      %v2092 = vpop.f32.mrf.mxu0
      %v2093 = vadd.f32 0.0, %v2092
      %v2094 = vpop.f32.mrf.mxu0
      %v2095 = vadd.f32 0.0, %v2094
      %2096 = vmatprep.mubr.bf16.mxu0 0
      %2097 = vmatmul.mubr.bf16.gmra.mxu0 %v2000
      %v2098 = vpop.f32.mrf.mxu0
      %v2099 = vadd.f32 0.0, %v2098
      %v2100 = vpop.f32.mrf.mxu0
      %v2101 = vadd.f32 0.0, %v2100
      %v2102 = vpop.f32.mrf.mxu0
      %v2103 = vadd.f32 0.0, %v2102
      %v2104 = vpop.f32.mrf.mxu0
      %v2105 = vadd.f32 0.0, %v2104
      %2106 = vmatprep.mubr.bf16.mxu0 0
      %2107 = vmatmul.mubr.bf16.gmra.mxu0 %v2003
      %v2108 = vpop.f32.mrf.mxu0
      %v2109 = vadd.f32 0.0, %v2108
      %v2110 = vpop.f32.mrf.mxu0
      %v2111 = vadd.f32 0.0, %v2110
      %v2112 = vpop.f32.mrf.mxu0
      %v2113 = vadd.f32 0.0, %v2112
      %v2114 = vpop.f32.mrf.mxu0
      %v2115 = vadd.f32 0.0, %v2114
      %2116 = vmatprep.mubr.bf16.mxu0 0
      %2117 = vmatmul.mubr.bf16.gmra.mxu0 %v2006
      %v2118 = vpop.f32.mrf.mxu0
      %v2119 = vadd.f32 0.0, %v2118
      %v2120 = vpop.f32.mrf.mxu0
      %v2121 = vadd.f32 0.0, %v2120
      %v2122 = vpop.f32.mrf.mxu0
      %v2123 = vadd.f32 0.0, %v2122
      %v2124 = vpop.f32.mrf.mxu0
      %v2125 = vadd.f32 0.0, %v2124
      %2126 = vdwg.mxu0
      %v2127 = vadd.f32 %v1895, %v2049
      %v2128 = vadd.f32 %v1896, %v2051
      %v2129 = vadd.f32 %v1897, %v2053
      %v2130 = vadd.f32 %v1898, %v2055
      %v2131 = vadd.f32 %v1899, %v2059
      %v2132 = vadd.f32 %v1900, %v2061
      %v2133 = vadd.f32 %v1901, %v2063
      %v2134 = vadd.f32 %v1902, %v2065
      %v2135 = vadd.f32 %v1903, %v2069
      %v2136 = vadd.f32 %v1904, %v2071
      %v2137 = vadd.f32 %v1905, %v2073
      %v2138 = vadd.f32 %v1906, %v2075
      %v2139 = vadd.f32 %v1907, %v2079
      %v2140 = vadd.f32 %v1908, %v2081
      %v2141 = vadd.f32 %v1909, %v2083
      %v2142 = vadd.f32 %v1910, %v2085
      %v2143 = vadd.f32 %v1911, %v2089
      %v2144 = vadd.f32 %v1912, %v2091
      %v2145 = vadd.f32 %v1913, %v2093
      %v2146 = vadd.f32 %v1914, %v2095
      %v2147 = vadd.f32 %v1915, %v2099
      %v2148 = vadd.f32 %v1916, %v2101
      %v2149 = vadd.f32 %v1917, %v2103
      %v2150 = vadd.f32 %v1918, %v2105
      %v2151 = vadd.f32 %v1919, %v2109
      %v2152 = vadd.f32 %v1920, %v2111
      %v2153 = vadd.f32 %v1921, %v2113
      %v2154 = vadd.f32 %v1922, %v2115
      %v2155 = vadd.f32 %v1923, %v2119
      %v2156 = vadd.f32 %v1924, %v2121
      %v2157 = vadd.f32 %v1925, %v2123
      %v2158 = vadd.f32 %v1926, %v2125
      %2159 = vst [vmem:[#allocation2] sm:$0xff] %v2127
      %2160 = vst [vmem:[#allocation2 + $0x8] sm:$0xff] %v2128
      %2161 = vst [vmem:[#allocation2 + $0x10] sm:$0xff] %v2129
      %2162 = vst [vmem:[#allocation2 + $0x18] sm:$0xff] %v2130
      %2163 = vst [vmem:[#allocation2 + $0x20] sm:$0xff] %v2131
      %2164 = vst [vmem:[#allocation2 + $0x28] sm:$0xff] %v2132
      %2165 = vst [vmem:[#allocation2 + $0x30] sm:$0xff] %v2133
      %2166 = vst [vmem:[#allocation2 + $0x38] sm:$0xff] %v2134
      %2167 = vst [vmem:[#allocation2 + $0x40] sm:$0xff] %v2135
      %2168 = vst [vmem:[#allocation2 + $0x48] sm:$0xff] %v2136
      %2169 = vst [vmem:[#allocation2 + $0x50] sm:$0xff] %v2137
      %2170 = vst [vmem:[#allocation2 + $0x58] sm:$0xff] %v2138
      %2171 = vst [vmem:[#allocation2 + $0x60] sm:$0xff] %v2139
      %2172 = vst [vmem:[#allocation2 + $0x68] sm:$0xff] %v2140
      %2173 = vst [vmem:[#allocation2 + $0x70] sm:$0xff] %v2141
      %2174 = vst [vmem:[#allocation2 + $0x78] sm:$0xff] %v2142
      %2175 = vst [vmem:[#allocation2 + $0x80] sm:$0xff] %v2143
      %2176 = vst [vmem:[#allocation2 + $0x88] sm:$0xff] %v2144
      %2177 = vst [vmem:[#allocation2 + $0x90] sm:$0xff] %v2145
      %2178 = vst [vmem:[#allocation2 + $0x98] sm:$0xff] %v2146
      %2179 = vst [vmem:[#allocation2 + $0xa0] sm:$0xff] %v2147
      %2180 = vst [vmem:[#allocation2 + $0xa8] sm:$0xff] %v2148
      %2181 = vst [vmem:[#allocation2 + $0xb0] sm:$0xff] %v2149
      %2182 = vst [vmem:[#allocation2 + $0xb8] sm:$0xff] %v2150
      %2183 = vst [vmem:[#allocation2 + $0xc0] sm:$0xff] %v2151
      %2184 = vst [vmem:[#allocation2 + $0xc8] sm:$0xff] %v2152
      %2185 = vst [vmem:[#allocation2 + $0xd0] sm:$0xff] %v2153
      %2186 = vst [vmem:[#allocation2 + $0xd8] sm:$0xff] %v2154
      %2187 = vst [vmem:[#allocation2 + $0xe0] sm:$0xff] %v2155
      %2188 = vst [vmem:[#allocation2 + $0xe8] sm:$0xff] %v2156
      %2189 = vst [vmem:[#allocation2 + $0xf0] sm:$0xff] %v2157
      %2190 = vst [vmem:[#allocation2 + $0xf8] sm:$0xff] %v2158
      %2191 = vrot.lane.b32.xlu0 %v286, 127
      %v2192 = vpop.permute.xlu0 %2191
      %2193 = vrot.lane.b32.xlu0 %v288, 127
      %v2194 = vpop.permute.xlu0 %2193
      %2195 = vrot.lane.b32.xlu0 %v290, 127
      %v2196 = vpop.permute.xlu0 %2195
      %2197 = vrot.lane.b32.xlu0 %v292, 127
      %v2198 = vpop.permute.xlu0 %2197
      %2199 = vrot.lane.b32.xlu0 %v294, 127
      %v2200 = vpop.permute.xlu0 %2199
      %2201 = vrot.lane.b32.xlu0 %v287, 127
      %v2202 = vpop.permute.xlu0 %2201
      %2203 = vrot.lane.b32.xlu0 %v289, 127
      %v2204 = vpop.permute.xlu0 %2203
      %2205 = vrot.lane.b32.xlu0 %v291, 127
      %v2206 = vpop.permute.xlu0 %2205
      %2207 = vrot.lane.b32.xlu0 %v293, 127
      %v2208 = vpop.permute.xlu0 %2207
      %2209 = vrot.lane.b32.xlu0 %v295, 127
      %v2210 = vpop.permute.xlu0 %2209
      %vm2211 = vcmp.lt.s32.totalorder %v461, 127
      %v2212 = vsel %vm2211, %v2192, %v2202
      %v2213 = vsel %vm2211, %v2194, %v2204
      %v2214 = vsel %vm2211, %v2196, %v2206
      %v2215 = vsel %vm2211, %v2198, %v2208
      %v2216 = vsel %vm2211, %v2200, %v2210
      %v2217 = vsel %vm2211, %v2202, %v2192
      %v2218 = vsel %vm2211, %v2204, %v2194
      %v2219 = vsel %vm2211, %v2206, %v2196
      %v2220 = vsel %vm2211, %v2208, %v2198
      %v2221 = vsel %vm2211, %v2210, %v2200
      %s2222 = scalar_lea.vmem %s2, 10
      %v2223 = vld [vmem:[%s2222] sm:$0x3]
      %v2225 = vlaneseq
      %v2226 = vshrl.u32 %v2225, 7
      %v2227 = vsub.s32 0, %v2226
      %v2228 = vrot.slane %v2223, %v2227
      %v2229 = vlaneseq
      %v2230 = vshrl.u32 %v2229, 7
      %v2231 = vsub.s32 1, %v2230
      %v2232 = vrot.slane %v2223, %v2231
      %v2235 = vmul.f32 %v2212, %v2228
      %v2236 = vmul.f32 %v2217, %v2232
      %v2237 = vmul.f32 %v2213, %v2228
      %v2238 = vmul.f32 %v2218, %v2232
      %v2239 = vmul.f32 %v2214, %v2228
      %v2240 = vmul.f32 %v2219, %v2232
      %v2241 = vmul.f32 %v2215, %v2228
      %v2242 = vmul.f32 %v2220, %v2232
      %v2243 = vmul.f32 %v2216, %v2228
      %v2244 = vmul.f32 %v2221, %v2232
      %v2245 = vpack.c.bf16 %v2237, %v2235
      %v2246 = vpack.c.bf16 %v2238, %v2236
      %v2247 = vpack.c.bf16 %v2241, %v2239
      %v2248 = vpack.c.bf16 %v2242, %v2240
      %v2249 = vpack.c.bf16 %v2243, %v2243
      %v2250 = vpack.c.bf16 %v2244, %v2244
      %v2251 = vld [vmem:[#allocation2] sm:$0xff]
      %v2252 = vld [vmem:[#allocation2 + $0x8] sm:$0xff]
      %v2253 = vld [vmem:[#allocation2 + $0x10] sm:$0xff]
      %v2254 = vld [vmem:[#allocation2 + $0x18] sm:$0xff]
      %v2255 = vld [vmem:[#allocation2 + $0x20] sm:$0xff]
      %v2256 = vld [vmem:[#allocation2 + $0x28] sm:$0xff]
      %v2257 = vld [vmem:[#allocation2 + $0x30] sm:$0xff]
      %v2258 = vld [vmem:[#allocation2 + $0x38] sm:$0xff]
      %v2259 = vld [vmem:[#allocation2 + $0x40] sm:$0xff]
      %v2260 = vld [vmem:[#allocation2 + $0x48] sm:$0xff]
      %v2261 = vld [vmem:[#allocation2 + $0x50] sm:$0xff]
      %v2262 = vld [vmem:[#allocation2 + $0x58] sm:$0xff]
      %v2263 = vld [vmem:[#allocation2 + $0x60] sm:$0xff]
      %v2264 = vld [vmem:[#allocation2 + $0x68] sm:$0xff]
      %v2265 = vld [vmem:[#allocation2 + $0x70] sm:$0xff]
      %v2266 = vld [vmem:[#allocation2 + $0x78] sm:$0xff]
      %v2267 = vld [vmem:[#allocation2 + $0x80] sm:$0xff]
      %v2268 = vld [vmem:[#allocation2 + $0x88] sm:$0xff]
      %v2269 = vld [vmem:[#allocation2 + $0x90] sm:$0xff]
      %v2270 = vld [vmem:[#allocation2 + $0x98] sm:$0xff]
      %v2271 = vld [vmem:[#allocation2 + $0xa0] sm:$0xff]
      %v2272 = vld [vmem:[#allocation2 + $0xa8] sm:$0xff]
      %v2273 = vld [vmem:[#allocation2 + $0xb0] sm:$0xff]
      %v2274 = vld [vmem:[#allocation2 + $0xb8] sm:$0xff]
      %v2275 = vld [vmem:[#allocation2 + $0xc0] sm:$0xff]
      %v2276 = vld [vmem:[#allocation2 + $0xc8] sm:$0xff]
      %v2277 = vld [vmem:[#allocation2 + $0xd0] sm:$0xff]
      %v2278 = vld [vmem:[#allocation2 + $0xd8] sm:$0xff]
      %v2279 = vld [vmem:[#allocation2 + $0xe0] sm:$0xff]
      %v2280 = vld [vmem:[#allocation2 + $0xe8] sm:$0xff]
      %v2281 = vld [vmem:[#allocation2 + $0xf0] sm:$0xff]
      %v2282 = vld [vmem:[#allocation2 + $0xf8] sm:$0xff]
      %s2283 = scalar_lea.vmem %s1, 320
      %v2284 = vld [vmem:[%s2283] sm:$0xf]
      %v2285 = vld [vmem:[%s2283 + $0x4] sm:$0xf]
      %v2286 = vld [vmem:[%s2283 + $0x8] sm:$0xf]
      %v2287 = vld [vmem:[%s2283 + $0xc] sm:$0xf]
      %v2288 = vld [vmem:[%s2283 + $0x10] sm:$0xf]
      %v2289 = vld [vmem:[%s2283 + $0x14] sm:$0xf]
      %v2290 = vld [vmem:[%s2283 + $0x18] sm:$0xf]
      %v2291 = vld [vmem:[%s2283 + $0x1c] sm:$0xf]
      %v2292 = vld [vmem:[%s2283 + $0x20] sm:$0xf]
      %v2293 = vld [vmem:[%s2283 + $0x24] sm:$0xf]
      %v2294 = vld [vmem:[%s2283 + $0x28] sm:$0xf]
      %v2295 = vld [vmem:[%s2283 + $0x2c] sm:$0xf]
      %v2296 = vld [vmem:[%s2283 + $0x30] sm:$0xf]
      %v2297 = vld [vmem:[%s2283 + $0x34] sm:$0xf]
      %v2298 = vld [vmem:[%s2283 + $0x38] sm:$0xf]
      %v2299 = vld [vmem:[%s2283 + $0x3c] sm:$0xf]
      %v2316 = vunpack.c.l.b16 %v2284
      %v2317 = vunpack.c.l.b16 %v2285
      %v2318 = vunpack.c.l.b16 %v2286
      %v2319 = vunpack.c.l.b16 %v2287
      %v2320 = vunpack.c.l.b16 %v2288
      %v2321 = vunpack.c.l.b16 %v2289
      %v2322 = vunpack.c.l.b16 %v2290
      %v2323 = vunpack.c.l.b16 %v2291
      %v2324 = vunpack.c.l.b16 %v2292
      %v2325 = vunpack.c.l.b16 %v2293
      %v2326 = vunpack.c.l.b16 %v2294
      %v2327 = vunpack.c.l.b16 %v2295
      %v2328 = vunpack.c.l.b16 %v2296
      %v2329 = vunpack.c.l.b16 %v2297
      %v2330 = vunpack.c.l.b16 %v2298
      %v2331 = vunpack.c.l.b16 %v2299
      %v2332 = vpack.c.b16 %v2317, %v2316
      %v2333 = vpack.c.b16 %v2319, %v2318
      %v2334 = vpack.c.b16 %v2321, %v2320
      %v2335 = vpack.c.b16 %v2323, %v2322
      %v2336 = vpack.c.b16 %v2325, %v2324
      %v2337 = vpack.c.b16 %v2327, %v2326
      %v2338 = vpack.c.b16 %v2329, %v2328
      %v2339 = vpack.c.b16 %v2331, %v2330
      %v2341 = vsel %vm589, %v2332, 0
      %v2344 = vsel %vm589, %v2333, 0
      %v2347 = vsel %vm589, %v2334, 0
      %v2350 = vsel %vm589, %v2335, 0
      %v2353 = vsel %vm589, %v2336, 0
      %v2356 = vsel %vm589, %v2337, 0
      %v2359 = vsel %vm589, %v2338, 0
      %v2362 = vsel %vm589, %v2339, 0
      %v2365 = vsel %vm614, %v2249, 0
      %v2368 = vsel %vm614, %v2250, 0
      %2370 = vmatprep.subr.bf16.mxu0 0
      %2371 = vmatpush1.bf16.msra.mxu0 0
      %2372 = vmatprep.subr.bf16.mxu0 0
      %2373 = vmatpush1.bf16.msra.mxu0 0
      %2374 = vmatprep.subr.bf16.mxu0 0
      %2375 = vmatpush1.bf16.msra.mxu0 0
      %2376 = vmatprep.subr.bf16.mxu0 0
      %2377 = vmatpush1.bf16.msra.mxu0 0
      %2378 = vmatprep.subr.bf16.mxu0 0
      %2379 = vmatpush1.bf16.msra.mxu0 0
      %2380 = vmatprep.subr.bf16.mxu0 %v2368
      %2381 = vmatpush1.bf16.msra.mxu0 %v2365
      %2382 = vmatprep.subr.bf16.mxu0 %v2248
      %2383 = vmatpush1.bf16.msra.mxu0 %v2247
      %2384 = vmatprep.subr.bf16.mxu0 %v2246
      %2385 = vmatpush1.bf16.msra.mxu0 %v2245
      %2386 = vmatprep.subr.bf16.mxu0 0
      %2387 = vmatpush2.bf16.msra.mxu0 0
      %2388 = vmatprep.subr.bf16.mxu0 0
      %2389 = vmatpush2.bf16.msra.mxu0 0
      %2390 = vmatprep.subr.bf16.mxu0 0
      %2391 = vmatpush2.bf16.msra.mxu0 0
      %2392 = vmatprep.subr.bf16.mxu0 0
      %2393 = vmatpush2.bf16.msra.mxu0 0
      %2394 = vmatprep.subr.bf16.mxu0 0
      %2395 = vmatpush2.bf16.msra.mxu0 0
      %2396 = vmatprep.subr.bf16.mxu0 0
      %2397 = vmatpush2.bf16.msra.mxu0 0
      %2398 = vmatprep.subr.bf16.mxu0 0
      %2399 = vmatpush2.bf16.msra.mxu0 0
      %2400 = vmatprep.subr.bf16.mxu0 0
      %2401 = vmatpush2.bf16.msra.mxu0 0
      %2402 = vmatprep.mubr.bf16.mxu0 0
      %2403 = vmatmul.mubr.bf16.gmra.mxu0 %v2341
      %v2404 = vpop.f32.mrf.mxu0
      %v2405 = vadd.f32 0.0, %v2404
      %v2406 = vpop.f32.mrf.mxu0
      %v2407 = vadd.f32 0.0, %v2406
      %v2408 = vpop.f32.mrf.mxu0
      %v2409 = vadd.f32 0.0, %v2408
      %v2410 = vpop.f32.mrf.mxu0
      %v2411 = vadd.f32 0.0, %v2410
      %2412 = vmatprep.mubr.bf16.mxu0 0
      %2413 = vmatmul.mubr.bf16.gmra.mxu0 %v2344
      %v2414 = vpop.f32.mrf.mxu0
      %v2415 = vadd.f32 0.0, %v2414
      %v2416 = vpop.f32.mrf.mxu0
      %v2417 = vadd.f32 0.0, %v2416
      %v2418 = vpop.f32.mrf.mxu0
      %v2419 = vadd.f32 0.0, %v2418
      %v2420 = vpop.f32.mrf.mxu0
      %v2421 = vadd.f32 0.0, %v2420
      %2422 = vmatprep.mubr.bf16.mxu0 0
      %2423 = vmatmul.mubr.bf16.gmra.mxu0 %v2347
      %v2424 = vpop.f32.mrf.mxu0
      %v2425 = vadd.f32 0.0, %v2424
      %v2426 = vpop.f32.mrf.mxu0
      %v2427 = vadd.f32 0.0, %v2426
      %v2428 = vpop.f32.mrf.mxu0
      %v2429 = vadd.f32 0.0, %v2428
      %v2430 = vpop.f32.mrf.mxu0
      %v2431 = vadd.f32 0.0, %v2430
      %2432 = vmatprep.mubr.bf16.mxu0 0
      %2433 = vmatmul.mubr.bf16.gmra.mxu0 %v2350
      %v2434 = vpop.f32.mrf.mxu0
      %v2435 = vadd.f32 0.0, %v2434
      %v2436 = vpop.f32.mrf.mxu0
      %v2437 = vadd.f32 0.0, %v2436
      %v2438 = vpop.f32.mrf.mxu0
      %v2439 = vadd.f32 0.0, %v2438
      %v2440 = vpop.f32.mrf.mxu0
      %v2441 = vadd.f32 0.0, %v2440
      %2442 = vmatprep.mubr.bf16.mxu0 0
      %2443 = vmatmul.mubr.bf16.gmra.mxu0 %v2353
      %v2444 = vpop.f32.mrf.mxu0
      %v2445 = vadd.f32 0.0, %v2444
      %v2446 = vpop.f32.mrf.mxu0
      %v2447 = vadd.f32 0.0, %v2446
      %v2448 = vpop.f32.mrf.mxu0
      %v2449 = vadd.f32 0.0, %v2448
      %v2450 = vpop.f32.mrf.mxu0
      %v2451 = vadd.f32 0.0, %v2450
      %2452 = vmatprep.mubr.bf16.mxu0 0
      %2453 = vmatmul.mubr.bf16.gmra.mxu0 %v2356
      %v2454 = vpop.f32.mrf.mxu0
      %v2455 = vadd.f32 0.0, %v2454
      %v2456 = vpop.f32.mrf.mxu0
      %v2457 = vadd.f32 0.0, %v2456
      %v2458 = vpop.f32.mrf.mxu0
      %v2459 = vadd.f32 0.0, %v2458
      %v2460 = vpop.f32.mrf.mxu0
      %v2461 = vadd.f32 0.0, %v2460
      %2462 = vmatprep.mubr.bf16.mxu0 0
      %2463 = vmatmul.mubr.bf16.gmra.mxu0 %v2359
      %v2464 = vpop.f32.mrf.mxu0
      %v2465 = vadd.f32 0.0, %v2464
      %v2466 = vpop.f32.mrf.mxu0
      %v2467 = vadd.f32 0.0, %v2466
      %v2468 = vpop.f32.mrf.mxu0
      %v2469 = vadd.f32 0.0, %v2468
      %v2470 = vpop.f32.mrf.mxu0
      %v2471 = vadd.f32 0.0, %v2470
      %2472 = vmatprep.mubr.bf16.mxu0 0
      %2473 = vmatmul.mubr.bf16.gmra.mxu0 %v2362
      %v2474 = vpop.f32.mrf.mxu0
      %v2475 = vadd.f32 0.0, %v2474
      %v2476 = vpop.f32.mrf.mxu0
      %v2477 = vadd.f32 0.0, %v2476
      %v2478 = vpop.f32.mrf.mxu0
      %v2479 = vadd.f32 0.0, %v2478
      %v2480 = vpop.f32.mrf.mxu0
      %v2481 = vadd.f32 0.0, %v2480
      %2482 = vdwg.mxu0
      %v2483 = vadd.f32 %v2251, %v2405
      %v2484 = vadd.f32 %v2252, %v2407
      %v2485 = vadd.f32 %v2253, %v2409
      %v2486 = vadd.f32 %v2254, %v2411
      %v2487 = vadd.f32 %v2255, %v2415
      %v2488 = vadd.f32 %v2256, %v2417
      %v2489 = vadd.f32 %v2257, %v2419
      %v2490 = vadd.f32 %v2258, %v2421
      %v2491 = vadd.f32 %v2259, %v2425
      %v2492 = vadd.f32 %v2260, %v2427
      %v2493 = vadd.f32 %v2261, %v2429
      %v2494 = vadd.f32 %v2262, %v2431
      %v2495 = vadd.f32 %v2263, %v2435
      %v2496 = vadd.f32 %v2264, %v2437
      %v2497 = vadd.f32 %v2265, %v2439
      %v2498 = vadd.f32 %v2266, %v2441
      %v2499 = vadd.f32 %v2267, %v2445
      %v2500 = vadd.f32 %v2268, %v2447
      %v2501 = vadd.f32 %v2269, %v2449
      %v2502 = vadd.f32 %v2270, %v2451
      %v2503 = vadd.f32 %v2271, %v2455
      %v2504 = vadd.f32 %v2272, %v2457
      %v2505 = vadd.f32 %v2273, %v2459
      %v2506 = vadd.f32 %v2274, %v2461
      %v2507 = vadd.f32 %v2275, %v2465
      %v2508 = vadd.f32 %v2276, %v2467
      %v2509 = vadd.f32 %v2277, %v2469
      %v2510 = vadd.f32 %v2278, %v2471
      %v2511 = vadd.f32 %v2279, %v2475
      %v2512 = vadd.f32 %v2280, %v2477
      %v2513 = vadd.f32 %v2281, %v2479
      %v2514 = vadd.f32 %v2282, %v2481
      %2515 = vst [vmem:[#allocation2] sm:$0xff] %v2483
      %2516 = vst [vmem:[#allocation2 + $0x8] sm:$0xff] %v2484
      %2517 = vst [vmem:[#allocation2 + $0x10] sm:$0xff] %v2485
      %2518 = vst [vmem:[#allocation2 + $0x18] sm:$0xff] %v2486
      %2519 = vst [vmem:[#allocation2 + $0x20] sm:$0xff] %v2487
      %2520 = vst [vmem:[#allocation2 + $0x28] sm:$0xff] %v2488
      %2521 = vst [vmem:[#allocation2 + $0x30] sm:$0xff] %v2489
      %2522 = vst [vmem:[#allocation2 + $0x38] sm:$0xff] %v2490
      %2523 = vst [vmem:[#allocation2 + $0x40] sm:$0xff] %v2491
      %2524 = vst [vmem:[#allocation2 + $0x48] sm:$0xff] %v2492
      %2525 = vst [vmem:[#allocation2 + $0x50] sm:$0xff] %v2493
      %2526 = vst [vmem:[#allocation2 + $0x58] sm:$0xff] %v2494
      %2527 = vst [vmem:[#allocation2 + $0x60] sm:$0xff] %v2495
      %2528 = vst [vmem:[#allocation2 + $0x68] sm:$0xff] %v2496
      %2529 = vst [vmem:[#allocation2 + $0x70] sm:$0xff] %v2497
      %2530 = vst [vmem:[#allocation2 + $0x78] sm:$0xff] %v2498
      %2531 = vst [vmem:[#allocation2 + $0x80] sm:$0xff] %v2499
      %2532 = vst [vmem:[#allocation2 + $0x88] sm:$0xff] %v2500
      %2533 = vst [vmem:[#allocation2 + $0x90] sm:$0xff] %v2501
      %2534 = vst [vmem:[#allocation2 + $0x98] sm:$0xff] %v2502
      %2535 = vst [vmem:[#allocation2 + $0xa0] sm:$0xff] %v2503
      %2536 = vst [vmem:[#allocation2 + $0xa8] sm:$0xff] %v2504
      %2537 = vst [vmem:[#allocation2 + $0xb0] sm:$0xff] %v2505
      %2538 = vst [vmem:[#allocation2 + $0xb8] sm:$0xff] %v2506
      %2539 = vst [vmem:[#allocation2 + $0xc0] sm:$0xff] %v2507
      %2540 = vst [vmem:[#allocation2 + $0xc8] sm:$0xff] %v2508
      %2541 = vst [vmem:[#allocation2 + $0xd0] sm:$0xff] %v2509
      %2542 = vst [vmem:[#allocation2 + $0xd8] sm:$0xff] %v2510
      %2543 = vst [vmem:[#allocation2 + $0xe0] sm:$0xff] %v2511
      %2544 = vst [vmem:[#allocation2 + $0xe8] sm:$0xff] %v2512
      %2545 = vst [vmem:[#allocation2 + $0xf0] sm:$0xff] %v2513
      %2546 = vst [vmem:[#allocation2 + $0xf8] sm:$0xff] %v2514
      %2547 = vrot.lane.b32.xlu0 %v286, 113
      %v2548 = vpop.permute.xlu0 %2547
      %2549 = vrot.lane.b32.xlu0 %v288, 113
      %v2550 = vpop.permute.xlu0 %2549
      %2551 = vrot.lane.b32.xlu0 %v290, 113
      %v2552 = vpop.permute.xlu0 %2551
      %2553 = vrot.lane.b32.xlu0 %v292, 113
      %v2554 = vpop.permute.xlu0 %2553
      %2555 = vrot.lane.b32.xlu0 %v294, 113
      %v2556 = vpop.permute.xlu0 %2555
      %2557 = vrot.lane.b32.xlu0 %v287, 113
      %v2558 = vpop.permute.xlu0 %2557
      %2559 = vrot.lane.b32.xlu0 %v289, 113
      %v2560 = vpop.permute.xlu0 %2559
      %2561 = vrot.lane.b32.xlu0 %v291, 113
      %v2562 = vpop.permute.xlu0 %2561
      %2563 = vrot.lane.b32.xlu0 %v293, 113
      %v2564 = vpop.permute.xlu0 %2563
      %2565 = vrot.lane.b32.xlu0 %v295, 113
      %v2566 = vpop.permute.xlu0 %2565
      %vm2567 = vcmp.lt.s32.totalorder %v461, 113
      %v2568 = vsel %vm2567, %v2548, %v2558
      %v2569 = vsel %vm2567, %v2550, %v2560
      %v2570 = vsel %vm2567, %v2552, %v2562
      %v2571 = vsel %vm2567, %v2554, %v2564
      %v2572 = vsel %vm2567, %v2556, %v2566
      %v2573 = vsel %vm2567, %v2558, %v2548
      %v2574 = vsel %vm2567, %v2560, %v2550
      %v2575 = vsel %vm2567, %v2562, %v2552
      %v2576 = vsel %vm2567, %v2564, %v2554
      %v2577 = vsel %vm2567, %v2566, %v2556
      %s2578 = scalar_lea.vmem %s2, 12
      %v2579 = vld [vmem:[%s2578] sm:$0x3]
      %v2581 = vlaneseq
      %v2582 = vshrl.u32 %v2581, 7
      %v2583 = vsub.s32 0, %v2582
      %v2584 = vrot.slane %v2579, %v2583
      %v2585 = vlaneseq
      %v2586 = vshrl.u32 %v2585, 7
      %v2587 = vsub.s32 1, %v2586
      %v2588 = vrot.slane %v2579, %v2587
      %v2591 = vmul.f32 %v2568, %v2584
      %v2592 = vmul.f32 %v2573, %v2588
      %v2593 = vmul.f32 %v2569, %v2584
      %v2594 = vmul.f32 %v2574, %v2588
      %v2595 = vmul.f32 %v2570, %v2584
      %v2596 = vmul.f32 %v2575, %v2588
      %v2597 = vmul.f32 %v2571, %v2584
      %v2598 = vmul.f32 %v2576, %v2588
      %v2599 = vmul.f32 %v2572, %v2584
      %v2600 = vmul.f32 %v2577, %v2588
      %v2601 = vpack.c.bf16 %v2593, %v2591
      %v2602 = vpack.c.bf16 %v2594, %v2592
      %v2603 = vpack.c.bf16 %v2597, %v2595
      %v2604 = vpack.c.bf16 %v2598, %v2596
      %v2605 = vpack.c.bf16 %v2599, %v2599
      %v2606 = vpack.c.bf16 %v2600, %v2600
      %v2607 = vld [vmem:[#allocation2] sm:$0xff]
      %v2608 = vld [vmem:[#allocation2 + $0x8] sm:$0xff]
      %v2609 = vld [vmem:[#allocation2 + $0x10] sm:$0xff]
      %v2610 = vld [vmem:[#allocation2 + $0x18] sm:$0xff]
      %v2611 = vld [vmem:[#allocation2 + $0x20] sm:$0xff]
      %v2612 = vld [vmem:[#allocation2 + $0x28] sm:$0xff]
      %v2613 = vld [vmem:[#allocation2 + $0x30] sm:$0xff]
      %v2614 = vld [vmem:[#allocation2 + $0x38] sm:$0xff]
      %v2615 = vld [vmem:[#allocation2 + $0x40] sm:$0xff]
      %v2616 = vld [vmem:[#allocation2 + $0x48] sm:$0xff]
      %v2617 = vld [vmem:[#allocation2 + $0x50] sm:$0xff]
      %v2618 = vld [vmem:[#allocation2 + $0x58] sm:$0xff]
      %v2619 = vld [vmem:[#allocation2 + $0x60] sm:$0xff]
      %v2620 = vld [vmem:[#allocation2 + $0x68] sm:$0xff]
      %v2621 = vld [vmem:[#allocation2 + $0x70] sm:$0xff]
      %v2622 = vld [vmem:[#allocation2 + $0x78] sm:$0xff]
      %v2623 = vld [vmem:[#allocation2 + $0x80] sm:$0xff]
      %v2624 = vld [vmem:[#allocation2 + $0x88] sm:$0xff]
      %v2625 = vld [vmem:[#allocation2 + $0x90] sm:$0xff]
      %v2626 = vld [vmem:[#allocation2 + $0x98] sm:$0xff]
      %v2627 = vld [vmem:[#allocation2 + $0xa0] sm:$0xff]
      %v2628 = vld [vmem:[#allocation2 + $0xa8] sm:$0xff]
      %v2629 = vld [vmem:[#allocation2 + $0xb0] sm:$0xff]
      %v2630 = vld [vmem:[#allocation2 + $0xb8] sm:$0xff]
      %v2631 = vld [vmem:[#allocation2 + $0xc0] sm:$0xff]
      %v2632 = vld [vmem:[#allocation2 + $0xc8] sm:$0xff]
      %v2633 = vld [vmem:[#allocation2 + $0xd0] sm:$0xff]
      %v2634 = vld [vmem:[#allocation2 + $0xd8] sm:$0xff]
      %v2635 = vld [vmem:[#allocation2 + $0xe0] sm:$0xff]
      %v2636 = vld [vmem:[#allocation2 + $0xe8] sm:$0xff]
      %v2637 = vld [vmem:[#allocation2 + $0xf0] sm:$0xff]
      %v2638 = vld [vmem:[#allocation2 + $0xf8] sm:$0xff]
      %s2639 = scalar_lea.vmem %s1, 384
      %v2640 = vld [vmem:[%s2639] sm:$0xf]
      %v2641 = vld [vmem:[%s2639 + $0x4] sm:$0xf]
      %v2642 = vld [vmem:[%s2639 + $0x8] sm:$0xf]
      %v2643 = vld [vmem:[%s2639 + $0xc] sm:$0xf]
      %v2644 = vld [vmem:[%s2639 + $0x10] sm:$0xf]
      %v2645 = vld [vmem:[%s2639 + $0x14] sm:$0xf]
      %v2646 = vld [vmem:[%s2639 + $0x18] sm:$0xf]
      %v2647 = vld [vmem:[%s2639 + $0x1c] sm:$0xf]
      %v2648 = vld [vmem:[%s2639 + $0x20] sm:$0xf]
      %v2649 = vld [vmem:[%s2639 + $0x24] sm:$0xf]
      %v2650 = vld [vmem:[%s2639 + $0x28] sm:$0xf]
      %v2651 = vld [vmem:[%s2639 + $0x2c] sm:$0xf]
      %v2652 = vld [vmem:[%s2639 + $0x30] sm:$0xf]
      %v2653 = vld [vmem:[%s2639 + $0x34] sm:$0xf]
      %v2654 = vld [vmem:[%s2639 + $0x38] sm:$0xf]
      %v2655 = vld [vmem:[%s2639 + $0x3c] sm:$0xf]
      %v2672 = vunpack.c.l.b16 %v2640
      %v2673 = vunpack.c.l.b16 %v2641
      %v2674 = vunpack.c.l.b16 %v2642
      %v2675 = vunpack.c.l.b16 %v2643
      %v2676 = vunpack.c.l.b16 %v2644
      %v2677 = vunpack.c.l.b16 %v2645
      %v2678 = vunpack.c.l.b16 %v2646
      %v2679 = vunpack.c.l.b16 %v2647
      %v2680 = vunpack.c.l.b16 %v2648
      %v2681 = vunpack.c.l.b16 %v2649
      %v2682 = vunpack.c.l.b16 %v2650
      %v2683 = vunpack.c.l.b16 %v2651
      %v2684 = vunpack.c.l.b16 %v2652
      %v2685 = vunpack.c.l.b16 %v2653
      %v2686 = vunpack.c.l.b16 %v2654
      %v2687 = vunpack.c.l.b16 %v2655
      %v2688 = vpack.c.b16 %v2673, %v2672
      %v2689 = vpack.c.b16 %v2675, %v2674
      %v2690 = vpack.c.b16 %v2677, %v2676
      %v2691 = vpack.c.b16 %v2679, %v2678
      %v2692 = vpack.c.b16 %v2681, %v2680
      %v2693 = vpack.c.b16 %v2683, %v2682
      %v2694 = vpack.c.b16 %v2685, %v2684
      %v2695 = vpack.c.b16 %v2687, %v2686
      %v2697 = vsel %vm589, %v2688, 0
      %v2700 = vsel %vm589, %v2689, 0
      %v2703 = vsel %vm589, %v2690, 0
      %v2706 = vsel %vm589, %v2691, 0
      %v2709 = vsel %vm589, %v2692, 0
      %v2712 = vsel %vm589, %v2693, 0
      %v2715 = vsel %vm589, %v2694, 0
      %v2718 = vsel %vm589, %v2695, 0
      %v2721 = vsel %vm614, %v2605, 0
      %v2724 = vsel %vm614, %v2606, 0
      %2726 = vmatprep.subr.bf16.mxu0 0
      %2727 = vmatpush1.bf16.msra.mxu0 0
      %2728 = vmatprep.subr.bf16.mxu0 0
      %2729 = vmatpush1.bf16.msra.mxu0 0
      %2730 = vmatprep.subr.bf16.mxu0 0
      %2731 = vmatpush1.bf16.msra.mxu0 0
      %2732 = vmatprep.subr.bf16.mxu0 0
      %2733 = vmatpush1.bf16.msra.mxu0 0
      %2734 = vmatprep.subr.bf16.mxu0 0
      %2735 = vmatpush1.bf16.msra.mxu0 0
      %2736 = vmatprep.subr.bf16.mxu0 %v2724
      %2737 = vmatpush1.bf16.msra.mxu0 %v2721
      %2738 = vmatprep.subr.bf16.mxu0 %v2604
      %2739 = vmatpush1.bf16.msra.mxu0 %v2603
      %2740 = vmatprep.subr.bf16.mxu0 %v2602
      %2741 = vmatpush1.bf16.msra.mxu0 %v2601
      %2742 = vmatprep.subr.bf16.mxu0 0
      %2743 = vmatpush2.bf16.msra.mxu0 0
      %2744 = vmatprep.subr.bf16.mxu0 0
      %2745 = vmatpush2.bf16.msra.mxu0 0
      %2746 = vmatprep.subr.bf16.mxu0 0
      %2747 = vmatpush2.bf16.msra.mxu0 0
      %2748 = vmatprep.subr.bf16.mxu0 0
      %2749 = vmatpush2.bf16.msra.mxu0 0
      %2750 = vmatprep.subr.bf16.mxu0 0
      %2751 = vmatpush2.bf16.msra.mxu0 0
      %2752 = vmatprep.subr.bf16.mxu0 0
      %2753 = vmatpush2.bf16.msra.mxu0 0
      %2754 = vmatprep.subr.bf16.mxu0 0
      %2755 = vmatpush2.bf16.msra.mxu0 0
      %2756 = vmatprep.subr.bf16.mxu0 0
      %2757 = vmatpush2.bf16.msra.mxu0 0
      %2758 = vmatprep.mubr.bf16.mxu0 0
      %2759 = vmatmul.mubr.bf16.gmra.mxu0 %v2697
      %v2760 = vpop.f32.mrf.mxu0
      %v2761 = vadd.f32 0.0, %v2760
      %v2762 = vpop.f32.mrf.mxu0
      %v2763 = vadd.f32 0.0, %v2762
      %v2764 = vpop.f32.mrf.mxu0
      %v2765 = vadd.f32 0.0, %v2764
      %v2766 = vpop.f32.mrf.mxu0
      %v2767 = vadd.f32 0.0, %v2766
      %2768 = vmatprep.mubr.bf16.mxu0 0
      %2769 = vmatmul.mubr.bf16.gmra.mxu0 %v2700
      %v2770 = vpop.f32.mrf.mxu0
      %v2771 = vadd.f32 0.0, %v2770
      %v2772 = vpop.f32.mrf.mxu0
      %v2773 = vadd.f32 0.0, %v2772
      %v2774 = vpop.f32.mrf.mxu0
      %v2775 = vadd.f32 0.0, %v2774
      %v2776 = vpop.f32.mrf.mxu0
      %v2777 = vadd.f32 0.0, %v2776
      %2778 = vmatprep.mubr.bf16.mxu0 0
      %2779 = vmatmul.mubr.bf16.gmra.mxu0 %v2703
      %v2780 = vpop.f32.mrf.mxu0
      %v2781 = vadd.f32 0.0, %v2780
      %v2782 = vpop.f32.mrf.mxu0
      %v2783 = vadd.f32 0.0, %v2782
      %v2784 = vpop.f32.mrf.mxu0
      %v2785 = vadd.f32 0.0, %v2784
      %v2786 = vpop.f32.mrf.mxu0
      %v2787 = vadd.f32 0.0, %v2786
      %2788 = vmatprep.mubr.bf16.mxu0 0
      %2789 = vmatmul.mubr.bf16.gmra.mxu0 %v2706
      %v2790 = vpop.f32.mrf.mxu0
      %v2791 = vadd.f32 0.0, %v2790
      %v2792 = vpop.f32.mrf.mxu0
      %v2793 = vadd.f32 0.0, %v2792
      %v2794 = vpop.f32.mrf.mxu0
      %v2795 = vadd.f32 0.0, %v2794
      %v2796 = vpop.f32.mrf.mxu0
      %v2797 = vadd.f32 0.0, %v2796
      %2798 = vmatprep.mubr.bf16.mxu0 0
      %2799 = vmatmul.mubr.bf16.gmra.mxu0 %v2709
      %v2800 = vpop.f32.mrf.mxu0
      %v2801 = vadd.f32 0.0, %v2800
      %v2802 = vpop.f32.mrf.mxu0
      %v2803 = vadd.f32 0.0, %v2802
      %v2804 = vpop.f32.mrf.mxu0
      %v2805 = vadd.f32 0.0, %v2804
      %v2806 = vpop.f32.mrf.mxu0
      %v2807 = vadd.f32 0.0, %v2806
      %2808 = vmatprep.mubr.bf16.mxu0 0
      %2809 = vmatmul.mubr.bf16.gmra.mxu0 %v2712
      %v2810 = vpop.f32.mrf.mxu0
      %v2811 = vadd.f32 0.0, %v2810
      %v2812 = vpop.f32.mrf.mxu0
      %v2813 = vadd.f32 0.0, %v2812
      %v2814 = vpop.f32.mrf.mxu0
      %v2815 = vadd.f32 0.0, %v2814
      %v2816 = vpop.f32.mrf.mxu0
      %v2817 = vadd.f32 0.0, %v2816
      %2818 = vmatprep.mubr.bf16.mxu0 0
      %2819 = vmatmul.mubr.bf16.gmra.mxu0 %v2715
      %v2820 = vpop.f32.mrf.mxu0
      %v2821 = vadd.f32 0.0, %v2820
      %v2822 = vpop.f32.mrf.mxu0
      %v2823 = vadd.f32 0.0, %v2822
      %v2824 = vpop.f32.mrf.mxu0
      %v2825 = vadd.f32 0.0, %v2824
      %v2826 = vpop.f32.mrf.mxu0
      %v2827 = vadd.f32 0.0, %v2826
      %2828 = vmatprep.mubr.bf16.mxu0 0
      %2829 = vmatmul.mubr.bf16.gmra.mxu0 %v2718
      %v2830 = vpop.f32.mrf.mxu0
      %v2831 = vadd.f32 0.0, %v2830
      %v2832 = vpop.f32.mrf.mxu0
      %v2833 = vadd.f32 0.0, %v2832
      %v2834 = vpop.f32.mrf.mxu0
      %v2835 = vadd.f32 0.0, %v2834
      %v2836 = vpop.f32.mrf.mxu0
      %v2837 = vadd.f32 0.0, %v2836
      %2838 = vdwg.mxu0
      %v2839 = vadd.f32 %v2607, %v2761
      %v2840 = vadd.f32 %v2608, %v2763
      %v2841 = vadd.f32 %v2609, %v2765
      %v2842 = vadd.f32 %v2610, %v2767
      %v2843 = vadd.f32 %v2611, %v2771
      %v2844 = vadd.f32 %v2612, %v2773
      %v2845 = vadd.f32 %v2613, %v2775
      %v2846 = vadd.f32 %v2614, %v2777
      %v2847 = vadd.f32 %v2615, %v2781
      %v2848 = vadd.f32 %v2616, %v2783
      %v2849 = vadd.f32 %v2617, %v2785
      %v2850 = vadd.f32 %v2618, %v2787
      %v2851 = vadd.f32 %v2619, %v2791
      %v2852 = vadd.f32 %v2620, %v2793
      %v2853 = vadd.f32 %v2621, %v2795
      %v2854 = vadd.f32 %v2622, %v2797
      %v2855 = vadd.f32 %v2623, %v2801
      %v2856 = vadd.f32 %v2624, %v2803
      %v2857 = vadd.f32 %v2625, %v2805
      %v2858 = vadd.f32 %v2626, %v2807
      %v2859 = vadd.f32 %v2627, %v2811
      %v2860 = vadd.f32 %v2628, %v2813
      %v2861 = vadd.f32 %v2629, %v2815
      %v2862 = vadd.f32 %v2630, %v2817
      %v2863 = vadd.f32 %v2631, %v2821
      %v2864 = vadd.f32 %v2632, %v2823
      %v2865 = vadd.f32 %v2633, %v2825
      %v2866 = vadd.f32 %v2634, %v2827
      %v2867 = vadd.f32 %v2635, %v2831
      %v2868 = vadd.f32 %v2636, %v2833
      %v2869 = vadd.f32 %v2637, %v2835
      %v2870 = vadd.f32 %v2638, %v2837
      %2871 = vst [vmem:[#allocation2] sm:$0xff] %v2839
      %2872 = vst [vmem:[#allocation2 + $0x8] sm:$0xff] %v2840
      %2873 = vst [vmem:[#allocation2 + $0x10] sm:$0xff] %v2841
      %2874 = vst [vmem:[#allocation2 + $0x18] sm:$0xff] %v2842
      %2875 = vst [vmem:[#allocation2 + $0x20] sm:$0xff] %v2843
      %2876 = vst [vmem:[#allocation2 + $0x28] sm:$0xff] %v2844
      %2877 = vst [vmem:[#allocation2 + $0x30] sm:$0xff] %v2845
      %2878 = vst [vmem:[#allocation2 + $0x38] sm:$0xff] %v2846
      %2879 = vst [vmem:[#allocation2 + $0x40] sm:$0xff] %v2847
      %2880 = vst [vmem:[#allocation2 + $0x48] sm:$0xff] %v2848
      %2881 = vst [vmem:[#allocation2 + $0x50] sm:$0xff] %v2849
      %2882 = vst [vmem:[#allocation2 + $0x58] sm:$0xff] %v2850
      %2883 = vst [vmem:[#allocation2 + $0x60] sm:$0xff] %v2851
      %2884 = vst [vmem:[#allocation2 + $0x68] sm:$0xff] %v2852
      %2885 = vst [vmem:[#allocation2 + $0x70] sm:$0xff] %v2853
      %2886 = vst [vmem:[#allocation2 + $0x78] sm:$0xff] %v2854
      %2887 = vst [vmem:[#allocation2 + $0x80] sm:$0xff] %v2855
      %2888 = vst [vmem:[#allocation2 + $0x88] sm:$0xff] %v2856
      %2889 = vst [vmem:[#allocation2 + $0x90] sm:$0xff] %v2857
      %2890 = vst [vmem:[#allocation2 + $0x98] sm:$0xff] %v2858
      %2891 = vst [vmem:[#allocation2 + $0xa0] sm:$0xff] %v2859
      %2892 = vst [vmem:[#allocation2 + $0xa8] sm:$0xff] %v2860
      %2893 = vst [vmem:[#allocation2 + $0xb0] sm:$0xff] %v2861
      %2894 = vst [vmem:[#allocation2 + $0xb8] sm:$0xff] %v2862
      %2895 = vst [vmem:[#allocation2 + $0xc0] sm:$0xff] %v2863
      %2896 = vst [vmem:[#allocation2 + $0xc8] sm:$0xff] %v2864
      %2897 = vst [vmem:[#allocation2 + $0xd0] sm:$0xff] %v2865
      %2898 = vst [vmem:[#allocation2 + $0xd8] sm:$0xff] %v2866
      %2899 = vst [vmem:[#allocation2 + $0xe0] sm:$0xff] %v2867
      %2900 = vst [vmem:[#allocation2 + $0xe8] sm:$0xff] %v2868
      %2901 = vst [vmem:[#allocation2 + $0xf0] sm:$0xff] %v2869
      %2902 = vst [vmem:[#allocation2 + $0xf8] sm:$0xff] %v2870
      %2903 = vrot.lane.b32.xlu0 %v286, 112
      %v2904 = vpop.permute.xlu0 %2903
      %2905 = vrot.lane.b32.xlu0 %v288, 112
      %v2906 = vpop.permute.xlu0 %2905
      %2907 = vrot.lane.b32.xlu0 %v290, 112
      %v2908 = vpop.permute.xlu0 %2907
      %2909 = vrot.lane.b32.xlu0 %v292, 112
      %v2910 = vpop.permute.xlu0 %2909
      %2911 = vrot.lane.b32.xlu0 %v294, 112
      %v2912 = vpop.permute.xlu0 %2911
      %2913 = vrot.lane.b32.xlu0 %v287, 112
      %v2914 = vpop.permute.xlu0 %2913
      %2915 = vrot.lane.b32.xlu0 %v289, 112
      %v2916 = vpop.permute.xlu0 %2915
      %2917 = vrot.lane.b32.xlu0 %v291, 112
      %v2918 = vpop.permute.xlu0 %2917
      %2919 = vrot.lane.b32.xlu0 %v293, 112
      %v2920 = vpop.permute.xlu0 %2919
      %2921 = vrot.lane.b32.xlu0 %v295, 112
      %v2922 = vpop.permute.xlu0 %2921
      %vm2923 = vcmp.lt.s32.totalorder %v461, 112
      %v2924 = vsel %vm2923, %v2904, %v2914
      %v2925 = vsel %vm2923, %v2906, %v2916
      %v2926 = vsel %vm2923, %v2908, %v2918
      %v2927 = vsel %vm2923, %v2910, %v2920
      %v2928 = vsel %vm2923, %v2912, %v2922
      %v2929 = vsel %vm2923, %v2914, %v2904
      %v2930 = vsel %vm2923, %v2916, %v2906
      %v2931 = vsel %vm2923, %v2918, %v2908
      %v2932 = vsel %vm2923, %v2920, %v2910
      %v2933 = vsel %vm2923, %v2922, %v2912
      %s2934 = scalar_lea.vmem %s2, 14
      %v2935 = vld [vmem:[%s2934] sm:$0x3]
      %v2937 = vlaneseq
      %v2938 = vshrl.u32 %v2937, 7
      %v2939 = vsub.s32 0, %v2938
      %v2940 = vrot.slane %v2935, %v2939
      %v2941 = vlaneseq
      %v2942 = vshrl.u32 %v2941, 7
      %v2943 = vsub.s32 1, %v2942
      %v2944 = vrot.slane %v2935, %v2943
      %v2947 = vmul.f32 %v2924, %v2940
      %v2948 = vmul.f32 %v2929, %v2944
      %v2949 = vmul.f32 %v2925, %v2940
      %v2950 = vmul.f32 %v2930, %v2944
      %v2951 = vmul.f32 %v2926, %v2940
      %v2952 = vmul.f32 %v2931, %v2944
      %v2953 = vmul.f32 %v2927, %v2940
      %v2954 = vmul.f32 %v2932, %v2944
      %v2955 = vmul.f32 %v2928, %v2940
      %v2956 = vmul.f32 %v2933, %v2944
      %v2957 = vpack.c.bf16 %v2949, %v2947
      %v2958 = vpack.c.bf16 %v2950, %v2948
      %v2959 = vpack.c.bf16 %v2953, %v2951
      %v2960 = vpack.c.bf16 %v2954, %v2952
      %v2961 = vpack.c.bf16 %v2955, %v2955
      %v2962 = vpack.c.bf16 %v2956, %v2956
      %v2963 = vld [vmem:[#allocation2] sm:$0xff]
      %v2964 = vld [vmem:[#allocation2 + $0x8] sm:$0xff]
      %v2965 = vld [vmem:[#allocation2 + $0x10] sm:$0xff]
      %v2966 = vld [vmem:[#allocation2 + $0x18] sm:$0xff]
      %v2967 = vld [vmem:[#allocation2 + $0x20] sm:$0xff]
      %v2968 = vld [vmem:[#allocation2 + $0x28] sm:$0xff]
      %v2969 = vld [vmem:[#allocation2 + $0x30] sm:$0xff]
      %v2970 = vld [vmem:[#allocation2 + $0x38] sm:$0xff]
      %v2971 = vld [vmem:[#allocation2 + $0x40] sm:$0xff]
      %v2972 = vld [vmem:[#allocation2 + $0x48] sm:$0xff]
      %v2973 = vld [vmem:[#allocation2 + $0x50] sm:$0xff]
      %v2974 = vld [vmem:[#allocation2 + $0x58] sm:$0xff]
      %v2975 = vld [vmem:[#allocation2 + $0x60] sm:$0xff]
      %v2976 = vld [vmem:[#allocation2 + $0x68] sm:$0xff]
      %v2977 = vld [vmem:[#allocation2 + $0x70] sm:$0xff]
      %v2978 = vld [vmem:[#allocation2 + $0x78] sm:$0xff]
      %v2979 = vld [vmem:[#allocation2 + $0x80] sm:$0xff]
      %v2980 = vld [vmem:[#allocation2 + $0x88] sm:$0xff]
      %v2981 = vld [vmem:[#allocation2 + $0x90] sm:$0xff]
      %v2982 = vld [vmem:[#allocation2 + $0x98] sm:$0xff]
      %v2983 = vld [vmem:[#allocation2 + $0xa0] sm:$0xff]
      %v2984 = vld [vmem:[#allocation2 + $0xa8] sm:$0xff]
      %v2985 = vld [vmem:[#allocation2 + $0xb0] sm:$0xff]
      %v2986 = vld [vmem:[#allocation2 + $0xb8] sm:$0xff]
      %v2987 = vld [vmem:[#allocation2 + $0xc0] sm:$0xff]
      %v2988 = vld [vmem:[#allocation2 + $0xc8] sm:$0xff]
      %v2989 = vld [vmem:[#allocation2 + $0xd0] sm:$0xff]
      %v2990 = vld [vmem:[#allocation2 + $0xd8] sm:$0xff]
      %v2991 = vld [vmem:[#allocation2 + $0xe0] sm:$0xff]
      %v2992 = vld [vmem:[#allocation2 + $0xe8] sm:$0xff]
      %v2993 = vld [vmem:[#allocation2 + $0xf0] sm:$0xff]
      %v2994 = vld [vmem:[#allocation2 + $0xf8] sm:$0xff]
      %s2995 = scalar_lea.vmem %s1, 448
      %v2996 = vld [vmem:[%s2995] sm:$0xf]
      %v2997 = vld [vmem:[%s2995 + $0x4] sm:$0xf]
      %v2998 = vld [vmem:[%s2995 + $0x8] sm:$0xf]
      %v2999 = vld [vmem:[%s2995 + $0xc] sm:$0xf]
      %v3000 = vld [vmem:[%s2995 + $0x10] sm:$0xf]
      %v3001 = vld [vmem:[%s2995 + $0x14] sm:$0xf]
      %v3002 = vld [vmem:[%s2995 + $0x18] sm:$0xf]
      %v3003 = vld [vmem:[%s2995 + $0x1c] sm:$0xf]
      %v3004 = vld [vmem:[%s2995 + $0x20] sm:$0xf]
      %v3005 = vld [vmem:[%s2995 + $0x24] sm:$0xf]
      %v3006 = vld [vmem:[%s2995 + $0x28] sm:$0xf]
      %v3007 = vld [vmem:[%s2995 + $0x2c] sm:$0xf]
      %v3008 = vld [vmem:[%s2995 + $0x30] sm:$0xf]
      %v3009 = vld [vmem:[%s2995 + $0x34] sm:$0xf]
      %v3010 = vld [vmem:[%s2995 + $0x38] sm:$0xf]
      %v3011 = vld [vmem:[%s2995 + $0x3c] sm:$0xf]
      %v3028 = vunpack.c.l.b16 %v2996
      %v3029 = vunpack.c.l.b16 %v2997
      %v3030 = vunpack.c.l.b16 %v2998
      %v3031 = vunpack.c.l.b16 %v2999
      %v3032 = vunpack.c.l.b16 %v3000
      %v3033 = vunpack.c.l.b16 %v3001
      %v3034 = vunpack.c.l.b16 %v3002
      %v3035 = vunpack.c.l.b16 %v3003
      %v3036 = vunpack.c.l.b16 %v3004
      %v3037 = vunpack.c.l.b16 %v3005
      %v3038 = vunpack.c.l.b16 %v3006
      %v3039 = vunpack.c.l.b16 %v3007
      %v3040 = vunpack.c.l.b16 %v3008
      %v3041 = vunpack.c.l.b16 %v3009
      %v3042 = vunpack.c.l.b16 %v3010
      %v3043 = vunpack.c.l.b16 %v3011
      %v3044 = vpack.c.b16 %v3029, %v3028
      %v3045 = vpack.c.b16 %v3031, %v3030
      %v3046 = vpack.c.b16 %v3033, %v3032
      %v3047 = vpack.c.b16 %v3035, %v3034
      %v3048 = vpack.c.b16 %v3037, %v3036
      %v3049 = vpack.c.b16 %v3039, %v3038
      %v3050 = vpack.c.b16 %v3041, %v3040
      %v3051 = vpack.c.b16 %v3043, %v3042
      %v3053 = vsel %vm589, %v3044, 0
      %v3056 = vsel %vm589, %v3045, 0
      %v3059 = vsel %vm589, %v3046, 0
      %v3062 = vsel %vm589, %v3047, 0
      %v3065 = vsel %vm589, %v3048, 0
      %v3068 = vsel %vm589, %v3049, 0
      %v3071 = vsel %vm589, %v3050, 0
      %v3074 = vsel %vm589, %v3051, 0
      %v3077 = vsel %vm614, %v2961, 0
      %v3080 = vsel %vm614, %v2962, 0
      %3082 = vmatprep.subr.bf16.mxu0 0
      %3083 = vmatpush1.bf16.msra.mxu0 0
      %3084 = vmatprep.subr.bf16.mxu0 0
      %3085 = vmatpush1.bf16.msra.mxu0 0
      %3086 = vmatprep.subr.bf16.mxu0 0
      %3087 = vmatpush1.bf16.msra.mxu0 0
      %3088 = vmatprep.subr.bf16.mxu0 0
      %3089 = vmatpush1.bf16.msra.mxu0 0
      %3090 = vmatprep.subr.bf16.mxu0 0
      %3091 = vmatpush1.bf16.msra.mxu0 0
      %3092 = vmatprep.subr.bf16.mxu0 %v3080
      %3093 = vmatpush1.bf16.msra.mxu0 %v3077
      %3094 = vmatprep.subr.bf16.mxu0 %v2960
      %3095 = vmatpush1.bf16.msra.mxu0 %v2959
      %3096 = vmatprep.subr.bf16.mxu0 %v2958
      %3097 = vmatpush1.bf16.msra.mxu0 %v2957
      %3098 = vmatprep.subr.bf16.mxu0 0
      %3099 = vmatpush2.bf16.msra.mxu0 0
      %3100 = vmatprep.subr.bf16.mxu0 0
      %3101 = vmatpush2.bf16.msra.mxu0 0
      %3102 = vmatprep.subr.bf16.mxu0 0
      %3103 = vmatpush2.bf16.msra.mxu0 0
      %3104 = vmatprep.subr.bf16.mxu0 0
      %3105 = vmatpush2.bf16.msra.mxu0 0
      %3106 = vmatprep.subr.bf16.mxu0 0
      %3107 = vmatpush2.bf16.msra.mxu0 0
      %3108 = vmatprep.subr.bf16.mxu0 0
      %3109 = vmatpush2.bf16.msra.mxu0 0
      %3110 = vmatprep.subr.bf16.mxu0 0
      %3111 = vmatpush2.bf16.msra.mxu0 0
      %3112 = vmatprep.subr.bf16.mxu0 0
      %3113 = vmatpush2.bf16.msra.mxu0 0
      %3114 = vmatprep.mubr.bf16.mxu0 0
      %3115 = vmatmul.mubr.bf16.gmra.mxu0 %v3053
      %v3116 = vpop.f32.mrf.mxu0
      %v3117 = vadd.f32 0.0, %v3116
      %v3118 = vpop.f32.mrf.mxu0
      %v3119 = vadd.f32 0.0, %v3118
      %v3120 = vpop.f32.mrf.mxu0
      %v3121 = vadd.f32 0.0, %v3120
      %v3122 = vpop.f32.mrf.mxu0
      %v3123 = vadd.f32 0.0, %v3122
      %3124 = vmatprep.mubr.bf16.mxu0 0
      %3125 = vmatmul.mubr.bf16.gmra.mxu0 %v3056
      %v3126 = vpop.f32.mrf.mxu0
      %v3127 = vadd.f32 0.0, %v3126
      %v3128 = vpop.f32.mrf.mxu0
      %v3129 = vadd.f32 0.0, %v3128
      %v3130 = vpop.f32.mrf.mxu0
      %v3131 = vadd.f32 0.0, %v3130
      %v3132 = vpop.f32.mrf.mxu0
      %v3133 = vadd.f32 0.0, %v3132
      %3134 = vmatprep.mubr.bf16.mxu0 0
      %3135 = vmatmul.mubr.bf16.gmra.mxu0 %v3059
      %v3136 = vpop.f32.mrf.mxu0
      %v3137 = vadd.f32 0.0, %v3136
      %v3138 = vpop.f32.mrf.mxu0
      %v3139 = vadd.f32 0.0, %v3138
      %v3140 = vpop.f32.mrf.mxu0
      %v3141 = vadd.f32 0.0, %v3140
      %v3142 = vpop.f32.mrf.mxu0
      %v3143 = vadd.f32 0.0, %v3142
      %3144 = vmatprep.mubr.bf16.mxu0 0
      %3145 = vmatmul.mubr.bf16.gmra.mxu0 %v3062
      %v3146 = vpop.f32.mrf.mxu0
      %v3147 = vadd.f32 0.0, %v3146
      %v3148 = vpop.f32.mrf.mxu0
      %v3149 = vadd.f32 0.0, %v3148
      %v3150 = vpop.f32.mrf.mxu0
      %v3151 = vadd.f32 0.0, %v3150
      %v3152 = vpop.f32.mrf.mxu0
      %v3153 = vadd.f32 0.0, %v3152
      %3154 = vmatprep.mubr.bf16.mxu0 0
      %3155 = vmatmul.mubr.bf16.gmra.mxu0 %v3065
      %v3156 = vpop.f32.mrf.mxu0
      %v3157 = vadd.f32 0.0, %v3156
      %v3158 = vpop.f32.mrf.mxu0
      %v3159 = vadd.f32 0.0, %v3158
      %v3160 = vpop.f32.mrf.mxu0
      %v3161 = vadd.f32 0.0, %v3160
      %v3162 = vpop.f32.mrf.mxu0
      %v3163 = vadd.f32 0.0, %v3162
      %3164 = vmatprep.mubr.bf16.mxu0 0
      %3165 = vmatmul.mubr.bf16.gmra.mxu0 %v3068
      %v3166 = vpop.f32.mrf.mxu0
      %v3167 = vadd.f32 0.0, %v3166
      %v3168 = vpop.f32.mrf.mxu0
      %v3169 = vadd.f32 0.0, %v3168
      %v3170 = vpop.f32.mrf.mxu0
      %v3171 = vadd.f32 0.0, %v3170
      %v3172 = vpop.f32.mrf.mxu0
      %v3173 = vadd.f32 0.0, %v3172
      %3174 = vmatprep.mubr.bf16.mxu0 0
      %3175 = vmatmul.mubr.bf16.gmra.mxu0 %v3071
      %v3176 = vpop.f32.mrf.mxu0
      %v3177 = vadd.f32 0.0, %v3176
      %v3178 = vpop.f32.mrf.mxu0
      %v3179 = vadd.f32 0.0, %v3178
      %v3180 = vpop.f32.mrf.mxu0
      %v3181 = vadd.f32 0.0, %v3180
      %v3182 = vpop.f32.mrf.mxu0
      %v3183 = vadd.f32 0.0, %v3182
      %3184 = vmatprep.mubr.bf16.mxu0 0
      %3185 = vmatmul.mubr.bf16.gmra.mxu0 %v3074
      %v3186 = vpop.f32.mrf.mxu0
      %v3187 = vadd.f32 0.0, %v3186
      %v3188 = vpop.f32.mrf.mxu0
      %v3189 = vadd.f32 0.0, %v3188
      %v3190 = vpop.f32.mrf.mxu0
      %v3191 = vadd.f32 0.0, %v3190
      %v3192 = vpop.f32.mrf.mxu0
      %v3193 = vadd.f32 0.0, %v3192
      %3194 = vdwg.mxu0
      %v3195 = vadd.f32 %v2963, %v3117
      %v3196 = vadd.f32 %v2964, %v3119
      %v3197 = vadd.f32 %v2965, %v3121
      %v3198 = vadd.f32 %v2966, %v3123
      %v3199 = vadd.f32 %v2967, %v3127
      %v3200 = vadd.f32 %v2968, %v3129
      %v3201 = vadd.f32 %v2969, %v3131
      %v3202 = vadd.f32 %v2970, %v3133
      %v3203 = vadd.f32 %v2971, %v3137
      %v3204 = vadd.f32 %v2972, %v3139
      %v3205 = vadd.f32 %v2973, %v3141
      %v3206 = vadd.f32 %v2974, %v3143
      %v3207 = vadd.f32 %v2975, %v3147
      %v3208 = vadd.f32 %v2976, %v3149
      %v3209 = vadd.f32 %v2977, %v3151
      %v3210 = vadd.f32 %v2978, %v3153
      %v3211 = vadd.f32 %v2979, %v3157
      %v3212 = vadd.f32 %v2980, %v3159
      %v3213 = vadd.f32 %v2981, %v3161
      %v3214 = vadd.f32 %v2982, %v3163
      %v3215 = vadd.f32 %v2983, %v3167
      %v3216 = vadd.f32 %v2984, %v3169
      %v3217 = vadd.f32 %v2985, %v3171
      %v3218 = vadd.f32 %v2986, %v3173
      %v3219 = vadd.f32 %v2987, %v3177
      %v3220 = vadd.f32 %v2988, %v3179
      %v3221 = vadd.f32 %v2989, %v3181
      %v3222 = vadd.f32 %v2990, %v3183
      %v3223 = vadd.f32 %v2991, %v3187
      %v3224 = vadd.f32 %v2992, %v3189
      %v3225 = vadd.f32 %v2993, %v3191
      %v3226 = vadd.f32 %v2994, %v3193
      %3227 = vst [vmem:[#allocation2] sm:$0xff] %v3195
      %3228 = vst [vmem:[#allocation2 + $0x8] sm:$0xff] %v3196
      %3229 = vst [vmem:[#allocation2 + $0x10] sm:$0xff] %v3197
      %3230 = vst [vmem:[#allocation2 + $0x18] sm:$0xff] %v3198
      %3231 = vst [vmem:[#allocation2 + $0x20] sm:$0xff] %v3199
      %3232 = vst [vmem:[#allocation2 + $0x28] sm:$0xff] %v3200
      %3233 = vst [vmem:[#allocation2 + $0x30] sm:$0xff] %v3201
      %3234 = vst [vmem:[#allocation2 + $0x38] sm:$0xff] %v3202
      %3235 = vst [vmem:[#allocation2 + $0x40] sm:$0xff] %v3203
      %3236 = vst [vmem:[#allocation2 + $0x48] sm:$0xff] %v3204
      %3237 = vst [vmem:[#allocation2 + $0x50] sm:$0xff] %v3205
      %3238 = vst [vmem:[#allocation2 + $0x58] sm:$0xff] %v3206
      %3239 = vst [vmem:[#allocation2 + $0x60] sm:$0xff] %v3207
      %3240 = vst [vmem:[#allocation2 + $0x68] sm:$0xff] %v3208
      %3241 = vst [vmem:[#allocation2 + $0x70] sm:$0xff] %v3209
      %3242 = vst [vmem:[#allocation2 + $0x78] sm:$0xff] %v3210
      %3243 = vst [vmem:[#allocation2 + $0x80] sm:$0xff] %v3211
      %3244 = vst [vmem:[#allocation2 + $0x88] sm:$0xff] %v3212
      %3245 = vst [vmem:[#allocation2 + $0x90] sm:$0xff] %v3213
      %3246 = vst [vmem:[#allocation2 + $0x98] sm:$0xff] %v3214
      %3247 = vst [vmem:[#allocation2 + $0xa0] sm:$0xff] %v3215
      %3248 = vst [vmem:[#allocation2 + $0xa8] sm:$0xff] %v3216
      %3249 = vst [vmem:[#allocation2 + $0xb0] sm:$0xff] %v3217
      %3250 = vst [vmem:[#allocation2 + $0xb8] sm:$0xff] %v3218
      %3251 = vst [vmem:[#allocation2 + $0xc0] sm:$0xff] %v3219
      %3252 = vst [vmem:[#allocation2 + $0xc8] sm:$0xff] %v3220
      %3253 = vst [vmem:[#allocation2 + $0xd0] sm:$0xff] %v3221
      %3254 = vst [vmem:[#allocation2 + $0xd8] sm:$0xff] %v3222
      %3255 = vst [vmem:[#allocation2 + $0xe0] sm:$0xff] %v3223
      %3256 = vst [vmem:[#allocation2 + $0xe8] sm:$0xff] %v3224
      %3257 = vst [vmem:[#allocation2 + $0xf0] sm:$0xff] %v3225
      %3258 = vst [vmem:[#allocation2 + $0xf8] sm:$0xff] %v3226
      %3259 = vrot.lane.b32.xlu0 %v286, 111
      %v3260 = vpop.permute.xlu0 %3259
      %3261 = vrot.lane.b32.xlu0 %v288, 111
      %v3262 = vpop.permute.xlu0 %3261
      %3263 = vrot.lane.b32.xlu0 %v290, 111
      %v3264 = vpop.permute.xlu0 %3263
      %3265 = vrot.lane.b32.xlu0 %v292, 111
      %v3266 = vpop.permute.xlu0 %3265
      %3267 = vrot.lane.b32.xlu0 %v294, 111
      %v3268 = vpop.permute.xlu0 %3267
      %3269 = vrot.lane.b32.xlu0 %v287, 111
      %v3270 = vpop.permute.xlu0 %3269
      %3271 = vrot.lane.b32.xlu0 %v289, 111
      %v3272 = vpop.permute.xlu0 %3271
      %3273 = vrot.lane.b32.xlu0 %v291, 111
      %v3274 = vpop.permute.xlu0 %3273
      %3275 = vrot.lane.b32.xlu0 %v293, 111
      %v3276 = vpop.permute.xlu0 %3275
      %3277 = vrot.lane.b32.xlu0 %v295, 111
      %v3278 = vpop.permute.xlu0 %3277
      %vm3279 = vcmp.lt.s32.totalorder %v461, 111
      %v3280 = vsel %vm3279, %v3260, %v3270
      %v3281 = vsel %vm3279, %v3262, %v3272
      %v3282 = vsel %vm3279, %v3264, %v3274
      %v3283 = vsel %vm3279, %v3266, %v3276
      %v3284 = vsel %vm3279, %v3268, %v3278
      %v3285 = vsel %vm3279, %v3270, %v3260
      %v3286 = vsel %vm3279, %v3272, %v3262
      %v3287 = vsel %vm3279, %v3274, %v3264
      %v3288 = vsel %vm3279, %v3276, %v3266
      %v3289 = vsel %vm3279, %v3278, %v3268
      %s3290 = scalar_lea.vmem %s2, 16
      %v3291 = vld [vmem:[%s3290] sm:$0x3]
      %v3293 = vlaneseq
      %v3294 = vshrl.u32 %v3293, 7
      %v3295 = vsub.s32 0, %v3294
      %v3296 = vrot.slane %v3291, %v3295
      %v3297 = vlaneseq
      %v3298 = vshrl.u32 %v3297, 7
      %v3299 = vsub.s32 1, %v3298
      %v3300 = vrot.slane %v3291, %v3299
      %v3303 = vmul.f32 %v3280, %v3296
      %v3304 = vmul.f32 %v3285, %v3300
      %v3305 = vmul.f32 %v3281, %v3296
      %v3306 = vmul.f32 %v3286, %v3300
      %v3307 = vmul.f32 %v3282, %v3296
      %v3308 = vmul.f32 %v3287, %v3300
      %v3309 = vmul.f32 %v3283, %v3296
      %v3310 = vmul.f32 %v3288, %v3300
      %v3311 = vmul.f32 %v3284, %v3296
      %v3312 = vmul.f32 %v3289, %v3300
      %v3313 = vpack.c.bf16 %v3305, %v3303
      %v3314 = vpack.c.bf16 %v3306, %v3304
      %v3315 = vpack.c.bf16 %v3309, %v3307
      %v3316 = vpack.c.bf16 %v3310, %v3308
      %v3317 = vpack.c.bf16 %v3311, %v3311
      %v3318 = vpack.c.bf16 %v3312, %v3312
      %v3319 = vld [vmem:[#allocation2] sm:$0xff]
      %v3320 = vld [vmem:[#allocation2 + $0x8] sm:$0xff]
      %v3321 = vld [vmem:[#allocation2 + $0x10] sm:$0xff]
      %v3322 = vld [vmem:[#allocation2 + $0x18] sm:$0xff]
      %v3323 = vld [vmem:[#allocation2 + $0x20] sm:$0xff]
      %v3324 = vld [vmem:[#allocation2 + $0x28] sm:$0xff]
      %v3325 = vld [vmem:[#allocation2 + $0x30] sm:$0xff]
      %v3326 = vld [vmem:[#allocation2 + $0x38] sm:$0xff]
      %v3327 = vld [vmem:[#allocation2 + $0x40] sm:$0xff]
      %v3328 = vld [vmem:[#allocation2 + $0x48] sm:$0xff]
      %v3329 = vld [vmem:[#allocation2 + $0x50] sm:$0xff]
      %v3330 = vld [vmem:[#allocation2 + $0x58] sm:$0xff]
      %v3331 = vld [vmem:[#allocation2 + $0x60] sm:$0xff]
      %v3332 = vld [vmem:[#allocation2 + $0x68] sm:$0xff]
      %v3333 = vld [vmem:[#allocation2 + $0x70] sm:$0xff]
      %v3334 = vld [vmem:[#allocation2 + $0x78] sm:$0xff]
      %v3335 = vld [vmem:[#allocation2 + $0x80] sm:$0xff]
      %v3336 = vld [vmem:[#allocation2 + $0x88] sm:$0xff]
      %v3337 = vld [vmem:[#allocation2 + $0x90] sm:$0xff]
      %v3338 = vld [vmem:[#allocation2 + $0x98] sm:$0xff]
      %v3339 = vld [vmem:[#allocation2 + $0xa0] sm:$0xff]
      %v3340 = vld [vmem:[#allocation2 + $0xa8] sm:$0xff]
      %v3341 = vld [vmem:[#allocation2 + $0xb0] sm:$0xff]
      %v3342 = vld [vmem:[#allocation2 + $0xb8] sm:$0xff]
      %v3343 = vld [vmem:[#allocation2 + $0xc0] sm:$0xff]
      %v3344 = vld [vmem:[#allocation2 + $0xc8] sm:$0xff]
      %v3345 = vld [vmem:[#allocation2 + $0xd0] sm:$0xff]
      %v3346 = vld [vmem:[#allocation2 + $0xd8] sm:$0xff]
      %v3347 = vld [vmem:[#allocation2 + $0xe0] sm:$0xff]
      %v3348 = vld [vmem:[#allocation2 + $0xe8] sm:$0xff]
      %v3349 = vld [vmem:[#allocation2 + $0xf0] sm:$0xff]
      %v3350 = vld [vmem:[#allocation2 + $0xf8] sm:$0xff]
      %s3351 = scalar_lea.vmem %s1, 512
      %v3352 = vld [vmem:[%s3351] sm:$0xf]
      %v3353 = vld [vmem:[%s3351 + $0x4] sm:$0xf]
      %v3354 = vld [vmem:[%s3351 + $0x8] sm:$0xf]
      %v3355 = vld [vmem:[%s3351 + $0xc] sm:$0xf]
      %v3356 = vld [vmem:[%s3351 + $0x10] sm:$0xf]
      %v3357 = vld [vmem:[%s3351 + $0x14] sm:$0xf]
      %v3358 = vld [vmem:[%s3351 + $0x18] sm:$0xf]
      %v3359 = vld [vmem:[%s3351 + $0x1c] sm:$0xf]
      %v3360 = vld [vmem:[%s3351 + $0x20] sm:$0xf]
      %v3361 = vld [vmem:[%s3351 + $0x24] sm:$0xf]
      %v3362 = vld [vmem:[%s3351 + $0x28] sm:$0xf]
      %v3363 = vld [vmem:[%s3351 + $0x2c] sm:$0xf]
      %v3364 = vld [vmem:[%s3351 + $0x30] sm:$0xf]
      %v3365 = vld [vmem:[%s3351 + $0x34] sm:$0xf]
      %v3366 = vld [vmem:[%s3351 + $0x38] sm:$0xf]
      %v3367 = vld [vmem:[%s3351 + $0x3c] sm:$0xf]
      %v3384 = vunpack.c.l.b16 %v3352
      %v3385 = vunpack.c.l.b16 %v3353
      %v3386 = vunpack.c.l.b16 %v3354
      %v3387 = vunpack.c.l.b16 %v3355
      %v3388 = vunpack.c.l.b16 %v3356
      %v3389 = vunpack.c.l.b16 %v3357
      %v3390 = vunpack.c.l.b16 %v3358
      %v3391 = vunpack.c.l.b16 %v3359
      %v3392 = vunpack.c.l.b16 %v3360
      %v3393 = vunpack.c.l.b16 %v3361
      %v3394 = vunpack.c.l.b16 %v3362
      %v3395 = vunpack.c.l.b16 %v3363
      %v3396 = vunpack.c.l.b16 %v3364
      %v3397 = vunpack.c.l.b16 %v3365
      %v3398 = vunpack.c.l.b16 %v3366
      %v3399 = vunpack.c.l.b16 %v3367
      %v3400 = vpack.c.b16 %v3385, %v3384
      %v3401 = vpack.c.b16 %v3387, %v3386
      %v3402 = vpack.c.b16 %v3389, %v3388
      %v3403 = vpack.c.b16 %v3391, %v3390
      %v3404 = vpack.c.b16 %v3393, %v3392
      %v3405 = vpack.c.b16 %v3395, %v3394
      %v3406 = vpack.c.b16 %v3397, %v3396
      %v3407 = vpack.c.b16 %v3399, %v3398
      %v3409 = vsel %vm589, %v3400, 0
      %v3412 = vsel %vm589, %v3401, 0
      %v3415 = vsel %vm589, %v3402, 0
      %v3418 = vsel %vm589, %v3403, 0
      %v3421 = vsel %vm589, %v3404, 0
      %v3424 = vsel %vm589, %v3405, 0
      %v3427 = vsel %vm589, %v3406, 0
      %v3430 = vsel %vm589, %v3407, 0
      %v3433 = vsel %vm614, %v3317, 0
      %v3436 = vsel %vm614, %v3318, 0
      %3438 = vmatprep.subr.bf16.mxu0 0
      %3439 = vmatpush1.bf16.msra.mxu0 0
      %3440 = vmatprep.subr.bf16.mxu0 0
      %3441 = vmatpush1.bf16.msra.mxu0 0
      %3442 = vmatprep.subr.bf16.mxu0 0
      %3443 = vmatpush1.bf16.msra.mxu0 0
      %3444 = vmatprep.subr.bf16.mxu0 0
      %3445 = vmatpush1.bf16.msra.mxu0 0
      %3446 = vmatprep.subr.bf16.mxu0 0
      %3447 = vmatpush1.bf16.msra.mxu0 0
      %3448 = vmatprep.subr.bf16.mxu0 %v3436
      %3449 = vmatpush1.bf16.msra.mxu0 %v3433
      %3450 = vmatprep.subr.bf16.mxu0 %v3316
      %3451 = vmatpush1.bf16.msra.mxu0 %v3315
      %3452 = vmatprep.subr.bf16.mxu0 %v3314
      %3453 = vmatpush1.bf16.msra.mxu0 %v3313
      %3454 = vmatprep.subr.bf16.mxu0 0
      %3455 = vmatpush2.bf16.msra.mxu0 0
      %3456 = vmatprep.subr.bf16.mxu0 0
      %3457 = vmatpush2.bf16.msra.mxu0 0
      %3458 = vmatprep.subr.bf16.mxu0 0
      %3459 = vmatpush2.bf16.msra.mxu0 0
      %3460 = vmatprep.subr.bf16.mxu0 0
      %3461 = vmatpush2.bf16.msra.mxu0 0
      %3462 = vmatprep.subr.bf16.mxu0 0
      %3463 = vmatpush2.bf16.msra.mxu0 0
      %3464 = vmatprep.subr.bf16.mxu0 0
      %3465 = vmatpush2.bf16.msra.mxu0 0
      %3466 = vmatprep.subr.bf16.mxu0 0
      %3467 = vmatpush2.bf16.msra.mxu0 0
      %3468 = vmatprep.subr.bf16.mxu0 0
      %3469 = vmatpush2.bf16.msra.mxu0 0
      %3470 = vmatprep.mubr.bf16.mxu0 0
      %3471 = vmatmul.mubr.bf16.gmra.mxu0 %v3409
      %v3472 = vpop.f32.mrf.mxu0
      %v3473 = vadd.f32 0.0, %v3472
      %v3474 = vpop.f32.mrf.mxu0
      %v3475 = vadd.f32 0.0, %v3474
      %v3476 = vpop.f32.mrf.mxu0
      %v3477 = vadd.f32 0.0, %v3476
      %v3478 = vpop.f32.mrf.mxu0
      %v3479 = vadd.f32 0.0, %v3478
      %3480 = vmatprep.mubr.bf16.mxu0 0
      %3481 = vmatmul.mubr.bf16.gmra.mxu0 %v3412
      %v3482 = vpop.f32.mrf.mxu0
      %v3483 = vadd.f32 0.0, %v3482
      %v3484 = vpop.f32.mrf.mxu0
      %v3485 = vadd.f32 0.0, %v3484
      %v3486 = vpop.f32.mrf.mxu0
      %v3487 = vadd.f32 0.0, %v3486
      %v3488 = vpop.f32.mrf.mxu0
      %v3489 = vadd.f32 0.0, %v3488
      %3490 = vmatprep.mubr.bf16.mxu0 0
      %3491 = vmatmul.mubr.bf16.gmra.mxu0 %v3415
      %v3492 = vpop.f32.mrf.mxu0
      %v3493 = vadd.f32 0.0, %v3492
      %v3494 = vpop.f32.mrf.mxu0
      %v3495 = vadd.f32 0.0, %v3494
      %v3496 = vpop.f32.mrf.mxu0
      %v3497 = vadd.f32 0.0, %v3496
      %v3498 = vpop.f32.mrf.mxu0
      %v3499 = vadd.f32 0.0, %v3498
      %3500 = vmatprep.mubr.bf16.mxu0 0
      %3501 = vmatmul.mubr.bf16.gmra.mxu0 %v3418
      %v3502 = vpop.f32.mrf.mxu0
      %v3503 = vadd.f32 0.0, %v3502
      %v3504 = vpop.f32.mrf.mxu0
      %v3505 = vadd.f32 0.0, %v3504
      %v3506 = vpop.f32.mrf.mxu0
      %v3507 = vadd.f32 0.0, %v3506
      %v3508 = vpop.f32.mrf.mxu0
      %v3509 = vadd.f32 0.0, %v3508
      %3510 = vmatprep.mubr.bf16.mxu0 0
      %3511 = vmatmul.mubr.bf16.gmra.mxu0 %v3421
      %v3512 = vpop.f32.mrf.mxu0
      %v3513 = vadd.f32 0.0, %v3512
      %v3514 = vpop.f32.mrf.mxu0
      %v3515 = vadd.f32 0.0, %v3514
      %v3516 = vpop.f32.mrf.mxu0
      %v3517 = vadd.f32 0.0, %v3516
      %v3518 = vpop.f32.mrf.mxu0
      %v3519 = vadd.f32 0.0, %v3518
      %3520 = vmatprep.mubr.bf16.mxu0 0
      %3521 = vmatmul.mubr.bf16.gmra.mxu0 %v3424
      %v3522 = vpop.f32.mrf.mxu0
      %v3523 = vadd.f32 0.0, %v3522
      %v3524 = vpop.f32.mrf.mxu0
      %v3525 = vadd.f32 0.0, %v3524
      %v3526 = vpop.f32.mrf.mxu0
      %v3527 = vadd.f32 0.0, %v3526
      %v3528 = vpop.f32.mrf.mxu0
      %v3529 = vadd.f32 0.0, %v3528
      %3530 = vmatprep.mubr.bf16.mxu0 0
      %3531 = vmatmul.mubr.bf16.gmra.mxu0 %v3427
      %v3532 = vpop.f32.mrf.mxu0
      %v3533 = vadd.f32 0.0, %v3532
      %v3534 = vpop.f32.mrf.mxu0
      %v3535 = vadd.f32 0.0, %v3534
      %v3536 = vpop.f32.mrf.mxu0
      %v3537 = vadd.f32 0.0, %v3536
      %v3538 = vpop.f32.mrf.mxu0
      %v3539 = vadd.f32 0.0, %v3538
      %3540 = vmatprep.mubr.bf16.mxu0 0
      %3541 = vmatmul.mubr.bf16.gmra.mxu0 %v3430
      %v3542 = vpop.f32.mrf.mxu0
      %v3543 = vadd.f32 0.0, %v3542
      %v3544 = vpop.f32.mrf.mxu0
      %v3545 = vadd.f32 0.0, %v3544
      %v3546 = vpop.f32.mrf.mxu0
      %v3547 = vadd.f32 0.0, %v3546
      %v3548 = vpop.f32.mrf.mxu0
      %v3549 = vadd.f32 0.0, %v3548
      %3550 = vdwg.mxu0
      %v3551 = vadd.f32 %v3319, %v3473
      %v3552 = vadd.f32 %v3320, %v3475
      %v3553 = vadd.f32 %v3321, %v3477
      %v3554 = vadd.f32 %v3322, %v3479
      %v3555 = vadd.f32 %v3323, %v3483
      %v3556 = vadd.f32 %v3324, %v3485
      %v3557 = vadd.f32 %v3325, %v3487
      %v3558 = vadd.f32 %v3326, %v3489
      %v3559 = vadd.f32 %v3327, %v3493
      %v3560 = vadd.f32 %v3328, %v3495
      %v3561 = vadd.f32 %v3329, %v3497
      %v3562 = vadd.f32 %v3330, %v3499
      %v3563 = vadd.f32 %v3331, %v3503
      %v3564 = vadd.f32 %v3332, %v3505
      %v3565 = vadd.f32 %v3333, %v3507
      %v3566 = vadd.f32 %v3334, %v3509
      %v3567 = vadd.f32 %v3335, %v3513
      %v3568 = vadd.f32 %v3336, %v3515
      %v3569 = vadd.f32 %v3337, %v3517
      %v3570 = vadd.f32 %v3338, %v3519
      %v3571 = vadd.f32 %v3339, %v3523
      %v3572 = vadd.f32 %v3340, %v3525
      %v3573 = vadd.f32 %v3341, %v3527
      %v3574 = vadd.f32 %v3342, %v3529
      %v3575 = vadd.f32 %v3343, %v3533
      %v3576 = vadd.f32 %v3344, %v3535
      %v3577 = vadd.f32 %v3345, %v3537
      %v3578 = vadd.f32 %v3346, %v3539
      %v3579 = vadd.f32 %v3347, %v3543
      %v3580 = vadd.f32 %v3348, %v3545
      %v3581 = vadd.f32 %v3349, %v3547
      %v3582 = vadd.f32 %v3350, %v3549
      %3583 = vst [vmem:[#allocation2] sm:$0xff] %v3551
      %3584 = vst [vmem:[#allocation2 + $0x8] sm:$0xff] %v3552
      %3585 = vst [vmem:[#allocation2 + $0x10] sm:$0xff] %v3553
      %3586 = vst [vmem:[#allocation2 + $0x18] sm:$0xff] %v3554
      %3587 = vst [vmem:[#allocation2 + $0x20] sm:$0xff] %v3555
      %3588 = vst [vmem:[#allocation2 + $0x28] sm:$0xff] %v3556
      %3589 = vst [vmem:[#allocation2 + $0x30] sm:$0xff] %v3557
      %3590 = vst [vmem:[#allocation2 + $0x38] sm:$0xff] %v3558
      %3591 = vst [vmem:[#allocation2 + $0x40] sm:$0xff] %v3559
      %3592 = vst [vmem:[#allocation2 + $0x48] sm:$0xff] %v3560
      %3593 = vst [vmem:[#allocation2 + $0x50] sm:$0xff] %v3561
      %3594 = vst [vmem:[#allocation2 + $0x58] sm:$0xff] %v3562
      %3595 = vst [vmem:[#allocation2 + $0x60] sm:$0xff] %v3563
      %3596 = vst [vmem:[#allocation2 + $0x68] sm:$0xff] %v3564
      %3597 = vst [vmem:[#allocation2 + $0x70] sm:$0xff] %v3565
      %3598 = vst [vmem:[#allocation2 + $0x78] sm:$0xff] %v3566
      %3599 = vst [vmem:[#allocation2 + $0x80] sm:$0xff] %v3567
      %3600 = vst [vmem:[#allocation2 + $0x88] sm:$0xff] %v3568
      %3601 = vst [vmem:[#allocation2 + $0x90] sm:$0xff] %v3569
      %3602 = vst [vmem:[#allocation2 + $0x98] sm:$0xff] %v3570
      %3603 = vst [vmem:[#allocation2 + $0xa0] sm:$0xff] %v3571
      %3604 = vst [vmem:[#allocation2 + $0xa8] sm:$0xff] %v3572
      %3605 = vst [vmem:[#allocation2 + $0xb0] sm:$0xff] %v3573
      %3606 = vst [vmem:[#allocation2 + $0xb8] sm:$0xff] %v3574
      %3607 = vst [vmem:[#allocation2 + $0xc0] sm:$0xff] %v3575
      %3608 = vst [vmem:[#allocation2 + $0xc8] sm:$0xff] %v3576
      %3609 = vst [vmem:[#allocation2 + $0xd0] sm:$0xff] %v3577
      %3610 = vst [vmem:[#allocation2 + $0xd8] sm:$0xff] %v3578
      %3611 = vst [vmem:[#allocation2 + $0xe0] sm:$0xff] %v3579
      %3612 = vst [vmem:[#allocation2 + $0xe8] sm:$0xff] %v3580
      %3613 = vst [vmem:[#allocation2 + $0xf0] sm:$0xff] %v3581
      %3614 = vst [vmem:[#allocation2 + $0xf8] sm:$0xff] %v3582
      %v3615 = vld [vmem:[#allocation2] sm:$0xff]
      %v3616 = vld [vmem:[#allocation2 + $0x8] sm:$0xff]
      %v3617 = vld [vmem:[#allocation2 + $0x10] sm:$0xff]
      %v3618 = vld [vmem:[#allocation2 + $0x18] sm:$0xff]
      %v3619 = vld [vmem:[#allocation2 + $0x20] sm:$0xff]
      %v3620 = vld [vmem:[#allocation2 + $0x28] sm:$0xff]
      %v3621 = vld [vmem:[#allocation2 + $0x30] sm:$0xff]
      %v3622 = vld [vmem:[#allocation2 + $0x38] sm:$0xff]
      %v3623 = vxor.u32 %v3615, 2147483648
      %v3624 = vxor.u32 %v3616, 2147483648
      %v3625 = vxor.u32 %v3617, 2147483648
      %v3626 = vxor.u32 %v3618, 2147483648
      %v3627 = vxor.u32 %v3619, 2147483648
      %v3628 = vxor.u32 %v3620, 2147483648
      %v3629 = vxor.u32 %v3621, 2147483648
      %v3630 = vxor.u32 %v3622, 2147483648
      %v3631 = vmul.f32 %v3623, 1.442695
      %v3632 = vpow.pop %v3631
      %v3633 = vmul.f32 %v3624, 1.442695
      %v3634 = vpow.pop %v3633
      %v3635 = vmul.f32 %v3625, 1.442695
      %v3636 = vpow.pop %v3635
      %v3637 = vmul.f32 %v3626, 1.442695
      %v3638 = vpow.pop %v3637
      %v3639 = vmul.f32 %v3627, 1.442695
      %v3640 = vpow.pop %v3639
      %v3641 = vmul.f32 %v3628, 1.442695
      %v3642 = vpow.pop %v3641
      %v3643 = vmul.f32 %v3629, 1.442695
      %v3644 = vpow.pop %v3643
      %v3645 = vmul.f32 %v3630, 1.442695
      %v3646 = vpow.pop %v3645
      %v3647 = vadd.f32 %v3632, 1.0
      %v3648 = vadd.f32 %v3634, 1.0
      %v3649 = vadd.f32 %v3636, 1.0
      %v3650 = vadd.f32 %v3638, 1.0
      %v3651 = vadd.f32 %v3640, 1.0
      %v3652 = vadd.f32 %v3642, 1.0
      %v3653 = vadd.f32 %v3644, 1.0
      %v3654 = vadd.f32 %v3646, 1.0
      %v3655 = vrcp.pop %v3647
      %v3656 = vmul.f32 1.0, %v3655
      %v3657 = vrcp.pop %v3648
      %v3658 = vmul.f32 1.0, %v3657
      %v3659 = vrcp.pop %v3649
      %v3660 = vmul.f32 1.0, %v3659
      %v3661 = vrcp.pop %v3650
      %v3662 = vmul.f32 1.0, %v3661
      %v3663 = vrcp.pop %v3651
      %v3664 = vmul.f32 1.0, %v3663
      %v3665 = vrcp.pop %v3652
      %v3666 = vmul.f32 1.0, %v3665
      %v3667 = vrcp.pop %v3653
      %v3668 = vmul.f32 1.0, %v3667
      %v3669 = vrcp.pop %v3654
      %v3670 = vmul.f32 1.0, %v3669
      %v3671 = vld [vmem:[#allocation2 + $0x40] sm:$0xff]
      %v3672 = vld [vmem:[#allocation2 + $0x48] sm:$0xff]
      %v3673 = vld [vmem:[#allocation2 + $0x50] sm:$0xff]
      %v3674 = vld [vmem:[#allocation2 + $0x58] sm:$0xff]
      %v3675 = vld [vmem:[#allocation2 + $0x60] sm:$0xff]
      %v3676 = vld [vmem:[#allocation2 + $0x68] sm:$0xff]
      %v3677 = vld [vmem:[#allocation2 + $0x70] sm:$0xff]
      %v3678 = vld [vmem:[#allocation2 + $0x78] sm:$0xff]
      %v3679 = vxor.u32 %v3671, 2147483648
      %v3680 = vxor.u32 %v3672, 2147483648
      %v3681 = vxor.u32 %v3673, 2147483648
      %v3682 = vxor.u32 %v3674, 2147483648
      %v3683 = vxor.u32 %v3675, 2147483648
      %v3684 = vxor.u32 %v3676, 2147483648
      %v3685 = vxor.u32 %v3677, 2147483648
      %v3686 = vxor.u32 %v3678, 2147483648
      %v3687 = vmul.f32 %v3679, 1.442695
      %v3688 = vpow.pop %v3687
      %v3689 = vmul.f32 %v3680, 1.442695
      %v3690 = vpow.pop %v3689
      %v3691 = vmul.f32 %v3681, 1.442695
      %v3692 = vpow.pop %v3691
      %v3693 = vmul.f32 %v3682, 1.442695
      %v3694 = vpow.pop %v3693
      %v3695 = vmul.f32 %v3683, 1.442695
      %v3696 = vpow.pop %v3695
      %v3697 = vmul.f32 %v3684, 1.442695
      %v3698 = vpow.pop %v3697
      %v3699 = vmul.f32 %v3685, 1.442695
      %v3700 = vpow.pop %v3699
      %v3701 = vmul.f32 %v3686, 1.442695
      %v3702 = vpow.pop %v3701
      %v3703 = vadd.f32 %v3688, 1.0
      %v3704 = vadd.f32 %v3690, 1.0
      %v3705 = vadd.f32 %v3692, 1.0
      %v3706 = vadd.f32 %v3694, 1.0
      %v3707 = vadd.f32 %v3696, 1.0
      %v3708 = vadd.f32 %v3698, 1.0
      %v3709 = vadd.f32 %v3700, 1.0
      %v3710 = vadd.f32 %v3702, 1.0
      %v3711 = vrcp.pop %v3703
      %v3712 = vmul.f32 1.0, %v3711
      %v3713 = vrcp.pop %v3704
      %v3714 = vmul.f32 1.0, %v3713
      %v3715 = vrcp.pop %v3705
      %v3716 = vmul.f32 1.0, %v3715
      %v3717 = vrcp.pop %v3706
      %v3718 = vmul.f32 1.0, %v3717
      %v3719 = vrcp.pop %v3707
      %v3720 = vmul.f32 1.0, %v3719
      %v3721 = vrcp.pop %v3708
      %v3722 = vmul.f32 1.0, %v3721
      %v3723 = vrcp.pop %v3709
      %v3724 = vmul.f32 1.0, %v3723
      %v3725 = vrcp.pop %v3710
      %v3726 = vmul.f32 1.0, %v3725
      %v3727 = vld [vmem:[#allocation2 + $0x80] sm:$0xff]
      %v3728 = vld [vmem:[#allocation2 + $0x88] sm:$0xff]
      %v3729 = vld [vmem:[#allocation2 + $0x90] sm:$0xff]
      %v3730 = vld [vmem:[#allocation2 + $0x98] sm:$0xff]
      %v3731 = vld [vmem:[#allocation2 + $0xa0] sm:$0xff]
      %v3732 = vld [vmem:[#allocation2 + $0xa8] sm:$0xff]
      %v3733 = vld [vmem:[#allocation2 + $0xb0] sm:$0xff]
      %v3734 = vld [vmem:[#allocation2 + $0xb8] sm:$0xff]
      %v3735 = vxor.u32 %v3727, 2147483648
      %v3736 = vxor.u32 %v3728, 2147483648
      %v3737 = vxor.u32 %v3729, 2147483648
      %v3738 = vxor.u32 %v3730, 2147483648
      %v3739 = vxor.u32 %v3731, 2147483648
      %v3740 = vxor.u32 %v3732, 2147483648
      %v3741 = vxor.u32 %v3733, 2147483648
      %v3742 = vxor.u32 %v3734, 2147483648
      %v3743 = vmul.f32 %v3735, 1.442695
      %v3744 = vpow.pop %v3743
      %v3745 = vmul.f32 %v3736, 1.442695
      %v3746 = vpow.pop %v3745
      %v3747 = vmul.f32 %v3737, 1.442695
      %v3748 = vpow.pop %v3747
      %v3749 = vmul.f32 %v3738, 1.442695
      %v3750 = vpow.pop %v3749
      %v3751 = vmul.f32 %v3739, 1.442695
      %v3752 = vpow.pop %v3751
      %v3753 = vmul.f32 %v3740, 1.442695
      %v3754 = vpow.pop %v3753
      %v3755 = vmul.f32 %v3741, 1.442695
      %v3756 = vpow.pop %v3755
      %v3757 = vmul.f32 %v3742, 1.442695
      %v3758 = vpow.pop %v3757
      %v3759 = vadd.f32 %v3744, 1.0
      %v3760 = vadd.f32 %v3746, 1.0
      %v3761 = vadd.f32 %v3748, 1.0
      %v3762 = vadd.f32 %v3750, 1.0
      %v3763 = vadd.f32 %v3752, 1.0
      %v3764 = vadd.f32 %v3754, 1.0
      %v3765 = vadd.f32 %v3756, 1.0
      %v3766 = vadd.f32 %v3758, 1.0
      %v3767 = vrcp.pop %v3759
      %v3768 = vmul.f32 1.0, %v3767
      %v3769 = vrcp.pop %v3760
      %v3770 = vmul.f32 1.0, %v3769
      %v3771 = vrcp.pop %v3761
      %v3772 = vmul.f32 1.0, %v3771
      %v3773 = vrcp.pop %v3762
      %v3774 = vmul.f32 1.0, %v3773
      %v3775 = vrcp.pop %v3763
      %v3776 = vmul.f32 1.0, %v3775
      %v3777 = vrcp.pop %v3764
      %v3778 = vmul.f32 1.0, %v3777
      %v3779 = vrcp.pop %v3765
      %v3780 = vmul.f32 1.0, %v3779
      %v3781 = vrcp.pop %v3766
      %v3782 = vmul.f32 1.0, %v3781
      %v3783 = vld [vmem:[#allocation2 + $0xc0] sm:$0xff]
      %v3784 = vld [vmem:[#allocation2 + $0xc8] sm:$0xff]
      %v3785 = vld [vmem:[#allocation2 + $0xd0] sm:$0xff]
      %v3786 = vld [vmem:[#allocation2 + $0xd8] sm:$0xff]
      %v3787 = vld [vmem:[#allocation2 + $0xe0] sm:$0xff]
      %v3788 = vld [vmem:[#allocation2 + $0xe8] sm:$0xff]
      %v3789 = vld [vmem:[#allocation2 + $0xf0] sm:$0xff]
      %v3790 = vld [vmem:[#allocation2 + $0xf8] sm:$0xff]
      %v3791 = vtanh.pop %v3783
      %v3792 = vtanh.pop %v3784
      %v3793 = vtanh.pop %v3785
      %v3794 = vtanh.pop %v3786
      %v3795 = vtanh.pop %v3787
      %v3796 = vtanh.pop %v3788
      %v3797 = vtanh.pop %v3789
      %v3798 = vtanh.pop %v3790
      %v3799 = vld [vmem:[%s274] sm:$0xff]
      %v3800 = vld [vmem:[%s274 + $0x8] sm:$0xff]
      %v3801 = vld [vmem:[%s274 + $0x10] sm:$0xff]
      %v3802 = vld [vmem:[%s274 + $0x18] sm:$0xff]
      %v3803 = vld [vmem:[%s274 + $0x20] sm:$0xff]
      %v3804 = vld [vmem:[%s274 + $0x28] sm:$0xff]
      %v3805 = vld [vmem:[%s274 + $0x30] sm:$0xff]
      %v3806 = vld [vmem:[%s274 + $0x38] sm:$0xff]
      %v3807 = vmul.f32 %v3712, %v3799
      %v3808 = vmul.f32 %v3714, %v3800
      %v3809 = vmul.f32 %v3716, %v3801
      %v3810 = vmul.f32 %v3718, %v3802
      %v3811 = vmul.f32 %v3720, %v3803
      %v3812 = vmul.f32 %v3722, %v3804
      %v3813 = vmul.f32 %v3724, %v3805
      %v3814 = vmul.f32 %v3726, %v3806
      %v3815 = vmul.f32 %v3656, %v3791
      %v3816 = vmul.f32 %v3658, %v3792
      %v3817 = vmul.f32 %v3660, %v3793
      %v3818 = vmul.f32 %v3662, %v3794
      %v3819 = vmul.f32 %v3664, %v3795
      %v3820 = vmul.f32 %v3666, %v3796
      %v3821 = vmul.f32 %v3668, %v3797
      %v3822 = vmul.f32 %v3670, %v3798
      %v3823 = vadd.f32 %v3807, %v3815
      %v3824 = vadd.f32 %v3808, %v3816
      %v3825 = vadd.f32 %v3809, %v3817
      %v3826 = vadd.f32 %v3810, %v3818
      %v3827 = vadd.f32 %v3811, %v3819
      %v3828 = vadd.f32 %v3812, %v3820
      %v3829 = vadd.f32 %v3813, %v3821
      %v3830 = vadd.f32 %v3814, %v3822
      %v3831 = vtanh.pop %v3823
      %v3832 = vtanh.pop %v3824
      %v3833 = vtanh.pop %v3825
      %v3834 = vtanh.pop %v3826
      %v3835 = vtanh.pop %v3827
      %v3836 = vtanh.pop %v3828
      %v3837 = vtanh.pop %v3829
      %v3838 = vtanh.pop %v3830
      %v3839 = vmul.f32 %v3768, %v3831
      %v3840 = vmul.f32 %v3770, %v3832
      %v3841 = vmul.f32 %v3772, %v3833
      %v3842 = vmul.f32 %v3774, %v3834
      %v3843 = vmul.f32 %v3776, %v3835
      %v3844 = vmul.f32 %v3778, %v3836
      %v3845 = vmul.f32 %v3780, %v3837
      %v3846 = vmul.f32 %v3782, %v3838
      %3847 = vst [vmem:[%s279] sm:$0xff] %v3839
      %3848 = vst [vmem:[%s279 + $0x8] sm:$0xff] %v3840
      %3849 = vst [vmem:[%s279 + $0x10] sm:$0xff] %v3841
      %3850 = vst [vmem:[%s279 + $0x18] sm:$0xff] %v3842
      %3851 = vst [vmem:[%s279 + $0x20] sm:$0xff] %v3843
      %3852 = vst [vmem:[%s279 + $0x28] sm:$0xff] %v3844
      %3853 = vst [vmem:[%s279 + $0x30] sm:$0xff] %v3845
      %3854 = vst [vmem:[%s279 + $0x38] sm:$0xff] %v3846
      %3855 = vst [vmem:[%s284] sm:$0xff] %v3823
      %3856 = vst [vmem:[%s284 + $0x8] sm:$0xff] %v3824
      %3857 = vst [vmem:[%s284 + $0x10] sm:$0xff] %v3825
      %3858 = vst [vmem:[%s284 + $0x18] sm:$0xff] %v3826
      %3859 = vst [vmem:[%s284 + $0x20] sm:$0xff] %v3827
      %3860 = vst [vmem:[%s284 + $0x28] sm:$0xff] %v3828
      %3861 = vst [vmem:[%s284 + $0x30] sm:$0xff] %v3829
      %3862 = vst [vmem:[%s284 + $0x38] sm:$0xff] %v3830
      %p3863 = scmp.lt.s32.totalorder %s18, 1
      %s3864 = scalar_select %p3863, %s18, 1
      %s3865 = smul.addr %s3864, 8
      %s3866 = smul.addr %s3865, 8
      %s3867 = scalar_lea.vmem %s5, %s3866
      %p3868 = scmp.lt.s32.totalorder %s18, 1
      %s3869 = scalar_select %p3868, %s18, 1
      %s3870 = smul.addr %s3869, 8
      %s3871 = smul.addr %s3870, 8
      %s3872 = scalar_lea.vmem %s6, %s3871
      // Predicated region
      $region41: #{conv_lstm_cell_forward.1} parent=39 // pred_check
        %p3873 = pneg %p151
      $region42: #{conv_lstm_cell_forward.1} parent=39 // pred_check_branch
        %3875 = sbr.rel (%p3873) target = $region44
      $region43: #{conv_lstm_cell_forward.1} parent=39 // pred_region
        _
      $region44: #{conv_lstm_cell_forward.1} parent=39 // pred_fallthru
        _
      // Predicated region
      $region45: #{conv_lstm_cell_forward.1} parent=39 // pred_check
        %p3876 = pneg %p177
      $region46: #{conv_lstm_cell_forward.1} parent=39 // pred_check_branch
        %3878 = sbr.rel (%p3876) target = $region48
      $region47: #{conv_lstm_cell_forward.1} parent=39 // pred_region
        _
      $region48: #{conv_lstm_cell_forward.1} parent=39 // pred_fallthru
        _
    $region40: #{conv_lstm_cell_forward.1} parent=5 // pred_fallthru
      _
    %p3879 = scmp.le.s32.totalorder 2, %s13
    // Predicated region
    $region49: #{conv_lstm_cell_forward.1} parent=5 // pred_check
      %p3880 = pneg %p3879
    $region50: #{conv_lstm_cell_forward.1} parent=5 // pred_check_branch
      %3882 = sbr.rel (%p3880) target = $region52
    $region51: #{conv_lstm_cell_forward.1} parent=5 // pred_region
      %s3883 = ssub.s32 %s13, 2
      // Predicated region
      $region53: #{conv_lstm_cell_forward.1} parent=51 // pred_check
        %p3884 = pneg %p157
      $region54: #{conv_lstm_cell_forward.1} parent=51 // pred_check_branch
        %3886 = sbr.rel (%p3884) target = $region56
      $region55: #{conv_lstm_cell_forward.1} parent=51 // pred_region
        %p3887 = scmp.lt.s32.totalorder %s19, 1
        %s3888 = scalar_select %p3887, %s19, 1
        %s3889 = smul.addr %s3888, 8
        %s3890 = smul.addr %s3889, 8
        %s3891 = scalar_lea.vmem %s5, %s3890
      $region56: #{conv_lstm_cell_forward.1} parent=51 // pred_fallthru
        _
      // Predicated region
      $region57: #{conv_lstm_cell_forward.1} parent=51 // pred_check
        %p3892 = pneg %p183
      $region58: #{conv_lstm_cell_forward.1} parent=51 // pred_check_branch
        %3894 = sbr.rel (%p3892) target = $region60
      $region59: #{conv_lstm_cell_forward.1} parent=51 // pred_region
        %p3895 = scmp.lt.s32.totalorder %s19, 1
        %s3896 = scalar_select %p3895, %s19, 1
        %s3897 = smul.addr %s3896, 8
        %s3898 = smul.addr %s3897, 8
        %s3899 = scalar_lea.vmem %s6, %s3898
      $region60: #{conv_lstm_cell_forward.1} parent=51 // pred_fallthru
        _
    $region52: #{conv_lstm_cell_forward.1} parent=5 // pred_fallthru
      _
  $region6: #{conv_lstm_cell_forward.1} parent=0 // loop_footer
    %s17 = sadd.s32 1, %s13
  $region7: #{conv_lstm_cell_forward.1} parent=0 // loop_footer_branch
    %12 = sbr.rel target = $region3
  $region8: #{conv_lstm_cell_forward.1} parent=0 // loop_exit
    _

</llo_original>
